<compile_context>
chip_gen: v7x
topology: tpu7x:2x2x1
jax: 0.10.0
libtpu: 0.0.40
codegen_flags: <defaults>
</compile_context>

<pallas_src>
import jax
import jax.numpy as jnp
from jax.experimental import pallas as pl
from jax.experimental.pallas import tpu as pltpu

# ----------------------------- model config (small synthetic GPT-2) ---------
PREFIX_LENGTH = 4                       # ClipCaptionModel.prefix_length
PREFIX_SIZE   = 32                      # prefix_size (768 in original)
EMBED         = 32                      # gpt_embedding_size (768 in gpt2)
N_HEADS       = 2
HEAD_DIM      = EMBED // N_HEADS
N_LAYERS      = 2
VOCAB         = 128
N_POS         = 64
MLP_HIDDEN    = 4 * EMBED
CLIP_HID      = EMBED * PREFIX_LENGTH // 2
LN_EPS        = 1e-5
NEG_INF       = -1e9                    # fine for f32 score math

_VMEM = pl.BlockSpec(memory_space=pltpu.MemorySpace.VMEM)

F32  = jnp.float32
BF16 = jnp.bfloat16


# ----------------------------- in-kernel helpers (f32 math) ------------------
def _layernorm(x, g, b):
    mu = jnp.mean(x, axis=-1, keepdims=True)
    var = jnp.mean((x - mu) ** 2, axis=-1, keepdims=True)
    return (x - mu) * jax.lax.rsqrt(var + LN_EPS) * g + b


def _gelu_new(x):
    # GPT-2 "gelu_new" (tanh approximation)
    return 0.5 * x * (1.0 + jnp.tanh(
        jnp.sqrt(2.0 / jnp.pi) * (x + 0.044715 * x ** 3)))


# ----------------------------- single fused forward kernel -------------------
def clipcap_fused_kernel(tok_ref, prefix_ref,
                         cw1_ref, cb1_ref, cw2_ref, cb2_ref,
                         wte_ref, wte_t_ref, wpe_ref,
                         w_qkv_ref, b_qkv_ref, w_oh_ref,
                         w_fc_ref, b_fc_ref, w_proj_ref,
                         lvec_ref, lnf_ref,
                         o_ref):
    B, S, V = o_ref.shape
    D, H, Hd = EMBED, N_HEADS, HEAD_DIM
    T = S - PREFIX_LENGTH

    # ---------------- clip_project MLP: Linear -> tanh -> Linear --------------
    ch = jnp.dot(prefix_ref[...], cw1_ref[...], preferred_element_type=F32)
    ch = jnp.tanh(ch + cb1_ref[...].astype(F32)).astype(BF16)          # (B, CLIP_HID)
    prefix_rows = []
    for l in range(PREFIX_LENGTH):                                     # per-position
        p = jnp.dot(ch, cw2_ref[l], preferred_element_type=F32)        # (B, D)
        p = p + cb2_ref[l].astype(F32)
        prefix_rows.append(p.reshape(B, 1, D))

    # ------------- token embedding gather as one-hot MXU matmul ---------------
    iota_v = jax.lax.broadcasted_iota(jnp.int32, (B * T, V), 1)
    onehot = (tok_ref[...] == iota_v).astype(BF16)                     # (B*T, V)
    emb_text = jnp.dot(onehot, wte_ref[...],
                       preferred_element_type=F32).reshape(B, T, D)    # (B, T, D)

    # ------------- cat((prefix_projections, embedding_text)) + pos emb --------
    x = jnp.concatenate(prefix_rows + [emb_text], axis=1)              # (B, S, D) f32
    x = x + wpe_ref[...].astype(F32)[None, :, :]

    # causal mask / scale hoisted out of the layer & head loops
    row = jax.lax.broadcasted_iota(jnp.int32, (S, S), 0)
    col = jax.lax.broadcasted_iota(jnp.int32, (S, S), 1)
    causal = (col <= row)[None, :, :]                                   # (1, S, S)
    scale = jnp.float32(1.0 / (HEAD_DIM ** 0.5))

    for l in range(N_LAYERS):                                           # static unroll
        lv = lvec_ref[l].astype(F32)                                    # (6, D) packed
        ln1_g, ln1_b = lv[0:1], lv[1:2]
        b_o          = lv[2:3]
        ln2_g, ln2_b = lv[3:4], lv[4:5]
        b_proj       = lv[5:6]
        w_qkv = w_qkv_ref[l]                                            # (3H, D, Hd) bf16
        b_qkv = b_qkv_ref[l].astype(F32)                                # (3H, Hd)
        w_oh  = w_oh_ref[l]                                             # (H, Hd, D)  bf16
        w_fc  = w_fc_ref[l]                                             # (D, 4D)     bf16
        b_fc  = b_fc_ref[l].astype(F32)                                 # (1, 4D)
        w_pr  = w_proj_ref[l]                                           # (4D, D)     bf16

        # ---------------- attention ----------------
        h = _layernorm(x, ln1_g, ln1_b)
        hb = h.reshape(B * S, D).astype(BF16)

        # per-head projections: weights indexed on LEADING axes (no lane slicing)
        def head_proj(kind, hd):
            idx = kind * H + hd
            y = jnp.dot(hb, w_qkv[idx], preferred_element_type=F32)
            return (y + b_qkv[idx:idx + 1, :]).reshape(B, S, Hd)

        q_all = jnp.concatenate([head_proj(0, hd) for hd in range(H)], axis=0)
        k_all = jnp.concatenate([head_proj(1, hd) for hd in range(H)], axis=0)
        v_all = jnp.concatenate([head_proj(2, hd) for hd in range(H)], axis=0)
        # q_all/k_all/v_all: (H*B, S, Hd) -> single batched score / PV matmuls

        s = jnp.einsum('bqd,bkd->bqk', q_all.astype(BF16), k_all.astype(BF16),
                       preferred_element_type=F32) * scale
        s = jnp.where(causal, s, NEG_INF)
        s = s - jnp.max(s, axis=-1, keepdims=True)
        p = jnp.exp(s)
        p = p * pl.reciprocal(jnp.sum(p, axis=-1, keepdims=True), approx=True)
        ctx = jnp.einsum('bqk,bkd->bqd', p.astype(BF16), v_all.astype(BF16),
                         preferred_element_type=F32)                    # (H*B, S, Hd)

        # per-head output projection accumulated (no lane-dim concat of heads)
        attn = b_o                                                      # (1, D) bcast
        for hd in range(H):
            ctx_h = ctx[hd * B:(hd + 1) * B].reshape(B * S, Hd)
            attn = attn + jnp.dot(ctx_h.astype(BF16), w_oh[hd],
                                  preferred_element_type=F32)
        x = x + attn.reshape(B, S, D)

        # ---------------- MLP ----------------
        h2 = _layernorm(x, ln2_g, ln2_b).reshape(B * S, D).astype(BF16)
        m = jnp.dot(h2, w_fc, preferred_element_type=F32) + b_fc
        m = _gelu_new(m).astype(BF16)
        m = jnp.dot(m, w_pr, preferred_element_type=F32) + b_proj
        x = x + m.reshape(B, S, D)

    # ---------------- final LN + tied lm_head (wte pre-transposed) -----------
    lnf = lnf_ref[...].astype(F32)                                      # (2, D)
    hf = _layernorm(x, lnf[0:1], lnf[1:2]).reshape(B * S, D).astype(BF16)
    logits = jnp.dot(hf, wte_t_ref[...], preferred_element_type=F32)
    o_ref[...] = logits.reshape(B, S, V)                                # lane-dense V=128


# ----------------------------- parameter init + packing ----------------------
def init_params(key):
    ks = iter(jax.random.split(key, 64))
    n = lambda shape, s=0.02: (s * jax.random.normal(next(ks), shape)).astype(F32)

    params = {
        'clip_w1': n((PREFIX_SIZE, CLIP_HID)),
        'clip_b1': n((1, CLIP_HID)),
        'clip_w2': n((CLIP_HID, EMBED * PREFIX_LENGTH)),
        'clip_b2': n((1, EMBED * PREFIX_LENGTH)),
        'wte': n((VOCAB, EMBED)),
        'wpe': n((N_POS, EMBED)),
        'lnf_g': jnp.ones((EMBED,), F32),
        'lnf_b': jnp.zeros((EMBED,), F32),
        'blocks': [],
    }
    for _ in range(N_LAYERS):
        params['blocks'].append({
            'ln1_g': jnp.ones((EMBED,), F32), 'ln1_b': jnp.zeros((EMBED,), F32),
            'w_q': n((EMBED, EMBED)), 'b_q': n((EMBED,)),
            'w_k': n((EMBED, EMBED)), 'b_k': n((EMBED,)),
            'w_v': n((EMBED, EMBED)), 'b_v': n((EMBED,)),
            'w_o': n((EMBED, EMBED)), 'b_o': n((EMBED,)),
            'ln2_g': jnp.ones((EMBED,), F32), 'ln2_b': jnp.zeros((EMBED,), F32),
            'w_fc': n((EMBED, MLP_HIDDEN)), 'b_fc': n((MLP_HIDDEN,)),
            'w_proj': n((MLP_HIDDEN, EMBED)), 'b_proj': n((EMBED,)),
        })
    return params


def pack_params(params):
    """One-time host-side packing: per-head weight split (leading axes),
    per-prefix-position clip_w2 split, wte transpose, bias/LN packing, bf16."""
    H, Hd, D, L = N_HEADS, HEAD_DIM, EMBED, PREFIX_LENGTH
    w_qkv_h, b_qkv_h, w_oh = [], [], []
    w_fc, b_fc, w_proj, lvec = [], [], [], []
    for blk in params['blocks']:
        per_head_w, per_head_b = [], []
        for name in ('q', 'k', 'v'):
            w = blk[f'w_{name}'].reshape(D, H, Hd)          # split output cols by head
            per_head_w.append(jnp.transpose(w, (1, 0, 2)))  # (H, D, Hd)
            per_head_b.append(blk[f'b_{name}'].reshape(H, Hd))
        w_qkv_h.append(jnp.concatenate(per_head_w, axis=0))    # (3H, D, Hd)
        b_qkv_h.append(jnp.concatenate(per_head_b, axis=0))    # (3H, Hd)
        w_oh.append(blk['w_o'].reshape(H, Hd, D))               # split input rows by head
        w_fc.append(blk['w_fc'])
        b_fc.append(blk['b_fc'].reshape(1, MLP_HIDDEN))
        w_proj.append(blk['w_proj'])
        lvec.append(jnp.stack([blk['ln1_g'], blk['ln1_b'], blk['b_o'],
                               blk['ln2_g'], blk['ln2_b'], blk['b_proj']], axis=0))
    # clip_project second layer, split per prefix position (avoids in-kernel lane split)
    cw2 = jnp.transpose(params['clip_w2'].reshape(CLIP_HID, L, D), (1, 0, 2))  # (L,CH,D)
    cb2 = params['clip_b2'].reshape(L, 1, D)                                   # (L,1,D)
    return {
        'clip_w1': params['clip_w1'].astype(BF16),
        'clip_b1': params['clip_b1'].astype(BF16),
        'clip_w2': cw2.astype(BF16),
        'clip_b2': cb2.astype(BF16),
        'wte':     params['wte'].astype(BF16),                # (V, D) for embedding
        'wte_t':   params['wte'].T.astype(BF16),              # (D, V) for lm_head
        'wpe':     params['wpe'].astype(BF16),
        'w_qkv_h': jnp.stack(w_qkv_h).astype(BF16),           # (Lyr, 3H, D, Hd)
        'b_qkv_h': jnp.stack(b_qkv_h).astype(BF16),           # (Lyr, 3H, Hd)
        'w_oh':    jnp.stack(w_oh).astype(BF16),              # (Lyr, H, Hd, D)
        'w_fc':    jnp.stack(w_fc).astype(BF16),              # (Lyr, D, 4D)
        'b_fc':    jnp.stack(b_fc).astype(BF16),              # (Lyr, 1, 4D)
        'w_proj':  jnp.stack(w_proj).astype(BF16),            # (Lyr, 4D, D)
        'lvec':    jnp.stack(lvec).astype(BF16),              # (Lyr, 6, D)
        'lnf':     jnp.stack([params['lnf_g'], params['lnf_b']]).astype(BF16),
    }


# ----------------------------- full forward ----------------------------------
def clip_caption_forward(packed, tokens, prefix):
    """Mirrors ClipCaptionModel.forward(tokens, prefix, mask=None, labels=None).
    Returns GPT-2 logits of shape (B, prefix_length + T, vocab) from a SINGLE
    fused Pallas kernel."""
    B, T = tokens.shape
    S = PREFIX_LENGTH + T
    tok2 = tokens.reshape(B * T, 1).astype(jnp.int32)   # layout-ready for one-hot gather

    logits = pl.pallas_call(
        clipcap_fused_kernel,
        out_shape=jax.ShapeDtypeStruct((B, S, VOCAB), F32),
        in_specs=[_VMEM] * 17,
        out_specs=_VMEM,
    )(tok2, prefix.astype(BF16),
      packed['clip_w1'], packed['clip_b1'], packed['clip_w2'], packed['clip_b2'],
      packed['wte'], packed['wte_t'], packed['wpe'][:S],
      packed['w_qkv_h'], packed['b_qkv_h'], packed['w_oh'],
      packed['w_fc'], packed['b_fc'], packed['w_proj'],
      packed['lvec'], packed['lnf'])
    # TODO(synk): attention_mask / labels (loss) paths of GPT2LMHeadModel not implemented
    #             (this is the mask=None, labels=None forward path).
    # TODO(synk): at real GPT-2 sizes (D=768, V=50257, 12 layers) add a grid over
    #             (batch, vocab-tile) with "parallel" semantics for v7x dual-TC and
    #             stream per-layer weights via pl.Buffered to fit v7x's 64 MiB VMEM.
    return logits


# ----------------------------- main -------------------------------------------
if __name__ == "__main__":
    key = jax.random.PRNGKey(0)
    k_par, k_tok, k_pre = jax.random.split(key, 3)

    params = init_params(k_par)
    packed = pack_params(params)

    B, T = 2, 8
    tokens = jax.random.randint(k_tok, (B, T), 0, VOCAB, dtype=jnp.int32)
    prefix = jax.random.normal(k_pre, (B, PREFIX_SIZE), dtype=jnp.float32)

    fwd = jax.jit(clip_caption_forward)
    logits = fwd(packed, tokens, prefix)
    logits = jax.block_until_ready(logits)

    assert logits.shape == (B, PREFIX_LENGTH + T, VOCAB)
    assert logits.dtype == jnp.float32
    assert bool(jnp.all(jnp.isfinite(logits)))
    print("KERNEL_OK")
</pallas_src>

<mosaic_0001>
module attributes {stable_mosaic.version = 11 : i64} {
  func.func @clipcap_fused_kernel(%arg0: memref<16x1xi32, #tpu.memory_space<vmem>>, %arg1: memref<2x32xbf16, #tpu.memory_space<vmem>>, %arg2: memref<32x64xbf16, #tpu.memory_space<vmem>>, %arg3: memref<1x64xbf16, #tpu.memory_space<vmem>>, %arg4: memref<4x64x32xbf16, #tpu.memory_space<vmem>>, %arg5: memref<4x1x32xbf16, #tpu.memory_space<vmem>>, %arg6: memref<128x32xbf16, #tpu.memory_space<vmem>>, %arg7: memref<32x128xbf16, #tpu.memory_space<vmem>>, %arg8: memref<12x32xbf16, #tpu.memory_space<vmem>>, %arg9: memref<2x6x32x16xbf16, #tpu.memory_space<vmem>>, %arg10: memref<2x6x16xbf16, #tpu.memory_space<vmem>>, %arg11: memref<2x2x16x32xbf16, #tpu.memory_space<vmem>>, %arg12: memref<2x32x128xbf16, #tpu.memory_space<vmem>>, %arg13: memref<2x1x128xbf16, #tpu.memory_space<vmem>>, %arg14: memref<2x128x32xbf16, #tpu.memory_space<vmem>>, %arg15: memref<2x6x32xbf16, #tpu.memory_space<vmem>>, %arg16: memref<2x32xbf16, #tpu.memory_space<vmem>>, %arg17: memref<2x12x128xf32, #tpu.memory_space<vmem>>) attributes {dimension_semantics = [], scalar_prefetch = 0 : i64, scratch_operands = 0 : i64, tpu.core_type = #tpu.core_type<tc>} {
    %c0 = arith.constant 0 : index
    %c0_0 = arith.constant 0 : index
    %0 = vector.load %arg1[%c0, %c0_0] : memref<2x32xbf16, #tpu.memory_space<vmem>>, vector<2x32xbf16>
    %c0_1 = arith.constant 0 : index
    %c0_2 = arith.constant 0 : index
    %1 = vector.load %arg2[%c0_1, %c0_2] : memref<32x64xbf16, #tpu.memory_space<vmem>>, vector<32x64xbf16>
    %cst = arith.constant dense<0.000000e+00> : vector<2x64xf32>
    %2 = tpu.matmul %0, %1, %cst {dimension_numbers = #tpu.dot_dimension_numbers<[1], [0], [0], [1], [0, 0, 1, 1], [], []>} : vector<2x32xbf16>, vector<32x64xbf16>, vector<2x64xf32> -> vector<2x64xf32>
    %c0_3 = arith.constant 0 : index
    %c0_4 = arith.constant 0 : index
    %3 = vector.load %arg3[%c0_3, %c0_4] : memref<1x64xbf16, #tpu.memory_space<vmem>>, vector<1x64xbf16>
    %4 = arith.extf %3 : vector<1x64xbf16> to vector<1x64xf32>
    %5 = vector.broadcast %4 : vector<1x64xf32> to vector<2x64xf32>
    %6 = arith.addf %2, %5 : vector<2x64xf32>
    %7 = math.tanh %6 : vector<2x64xf32>
    %8 = arith.truncf %7 : vector<2x64xf32> to vector<2x64xbf16>
    %c0_5 = arith.constant 0 : index
    %c0_6 = arith.constant 0 : index
    %c0_7 = arith.constant 0 : index
    %9 = vector.load %arg4[%c0_5, %c0_6, %c0_7] : memref<4x64x32xbf16, #tpu.memory_space<vmem>>, vector<1x64x32xbf16>
    %10 = vector.shape_cast %9 : vector<1x64x32xbf16> to vector<64x32xbf16>
    %cst_8 = arith.constant dense<0.000000e+00> : vector<2x32xf32>
    %11 = tpu.matmul %8, %10, %cst_8 {dimension_numbers = #tpu.dot_dimension_numbers<[1], [0], [0], [1], [0, 0, 1, 1], [], []>} : vector<2x64xbf16>, vector<64x32xbf16>, vector<2x32xf32> -> vector<2x32xf32>
    %c0_9 = arith.constant 0 : index
    %c0_10 = arith.constant 0 : index
    %c0_11 = arith.constant 0 : index
    %12 = vector.load %arg5[%c0_9, %c0_10, %c0_11] : memref<4x1x32xbf16, #tpu.memory_space<vmem>>, vector<1x1x32xbf16>
    %13 = vector.shape_cast %12 : vector<1x1x32xbf16> to vector<1x32xbf16>
    %14 = arith.extf %13 : vector<1x32xbf16> to vector<1x32xf32>
    %15 = vector.broadcast %14 : vector<1x32xf32> to vector<2x32xf32>
    %16 = arith.addf %11, %15 : vector<2x32xf32>
    %17 = vector.shape_cast %16 : vector<2x32xf32> to vector<2x1x32xf32>
    %c1 = arith.constant 1 : index
    %c0_12 = arith.constant 0 : index
    %c0_13 = arith.constant 0 : index
    %18 = vector.load %arg4[%c1, %c0_12, %c0_13] : memref<4x64x32xbf16, #tpu.memory_space<vmem>>, vector<1x64x32xbf16>
    %19 = vector.shape_cast %18 : vector<1x64x32xbf16> to vector<64x32xbf16>
    %cst_14 = arith.constant dense<0.000000e+00> : vector<2x32xf32>
    %20 = tpu.matmul %8, %19, %cst_14 {dimension_numbers = #tpu.dot_dimension_numbers<[1], [0], [0], [1], [0, 0, 1, 1], [], []>} : vector<2x64xbf16>, vector<64x32xbf16>, vector<2x32xf32> -> vector<2x32xf32>
    %c1_15 = arith.constant 1 : index
    %c0_16 = arith.constant 0 : index
    %c0_17 = arith.constant 0 : index
    %21 = vector.load %arg5[%c1_15, %c0_16, %c0_17] : memref<4x1x32xbf16, #tpu.memory_space<vmem>>, vector<1x1x32xbf16>
    %22 = vector.shape_cast %21 : vector<1x1x32xbf16> to vector<1x32xbf16>
    %23 = arith.extf %22 : vector<1x32xbf16> to vector<1x32xf32>
    %24 = vector.broadcast %23 : vector<1x32xf32> to vector<2x32xf32>
    %25 = arith.addf %20, %24 : vector<2x32xf32>
    %26 = vector.shape_cast %25 : vector<2x32xf32> to vector<2x1x32xf32>
    %c2 = arith.constant 2 : index
    %c0_18 = arith.constant 0 : index
    %c0_19 = arith.constant 0 : index
    %27 = vector.load %arg4[%c2, %c0_18, %c0_19] : memref<4x64x32xbf16, #tpu.memory_space<vmem>>, vector<1x64x32xbf16>
    %28 = vector.shape_cast %27 : vector<1x64x32xbf16> to vector<64x32xbf16>
    %cst_20 = arith.constant dense<0.000000e+00> : vector<2x32xf32>
    %29 = tpu.matmul %8, %28, %cst_20 {dimension_numbers = #tpu.dot_dimension_numbers<[1], [0], [0], [1], [0, 0, 1, 1], [], []>} : vector<2x64xbf16>, vector<64x32xbf16>, vector<2x32xf32> -> vector<2x32xf32>
    %c2_21 = arith.constant 2 : index
    %c0_22 = arith.constant 0 : index
    %c0_23 = arith.constant 0 : index
    %30 = vector.load %arg5[%c2_21, %c0_22, %c0_23] : memref<4x1x32xbf16, #tpu.memory_space<vmem>>, vector<1x1x32xbf16>
    %31 = vector.shape_cast %30 : vector<1x1x32xbf16> to vector<1x32xbf16>
    %32 = arith.extf %31 : vector<1x32xbf16> to vector<1x32xf32>
    %33 = vector.broadcast %32 : vector<1x32xf32> to vector<2x32xf32>
    %34 = arith.addf %29, %33 : vector<2x32xf32>
    %35 = vector.shape_cast %34 : vector<2x32xf32> to vector<2x1x32xf32>
    %c3 = arith.constant 3 : index
    %c0_24 = arith.constant 0 : index
    %c0_25 = arith.constant 0 : index
    %36 = vector.load %arg4[%c3, %c0_24, %c0_25] : memref<4x64x32xbf16, #tpu.memory_space<vmem>>, vector<1x64x32xbf16>
    %37 = vector.shape_cast %36 : vector<1x64x32xbf16> to vector<64x32xbf16>
    %cst_26 = arith.constant dense<0.000000e+00> : vector<2x32xf32>
    %38 = tpu.matmul %8, %37, %cst_26 {dimension_numbers = #tpu.dot_dimension_numbers<[1], [0], [0], [1], [0, 0, 1, 1], [], []>} : vector<2x64xbf16>, vector<64x32xbf16>, vector<2x32xf32> -> vector<2x32xf32>
    %c3_27 = arith.constant 3 : index
    %c0_28 = arith.constant 0 : index
    %c0_29 = arith.constant 0 : index
    %39 = vector.load %arg5[%c3_27, %c0_28, %c0_29] : memref<4x1x32xbf16, #tpu.memory_space<vmem>>, vector<1x1x32xbf16>
    %40 = vector.shape_cast %39 : vector<1x1x32xbf16> to vector<1x32xbf16>
    %41 = arith.extf %40 : vector<1x32xbf16> to vector<1x32xf32>
    %42 = vector.broadcast %41 : vector<1x32xf32> to vector<2x32xf32>
    %43 = arith.addf %38, %42 : vector<2x32xf32>
    %44 = vector.shape_cast %43 : vector<2x32xf32> to vector<2x1x32xf32>
    %45 = tpu.iota {dimensions = array<i32: 1>} : vector<16x128xi32>
    %c0_30 = arith.constant 0 : index
    %c0_31 = arith.constant 0 : index
    %46 = vector.load %arg0[%c0_30, %c0_31] : memref<16x1xi32, #tpu.memory_space<vmem>>, vector<16x1xi32>
    %47 = vector.broadcast %46 : vector<16x1xi32> to vector<16x128xi32>
    %48 = arith.cmpi eq, %47, %45 : vector<16x128xi32>
    %49 = arith.extui %48 : vector<16x128xi1> to vector<16x128xi32>
    %50 = arith.sitofp %49 : vector<16x128xi32> to vector<16x128xf32>
    %51 = arith.truncf %50 : vector<16x128xf32> to vector<16x128xbf16>
    %c0_32 = arith.constant 0 : index
    %c0_33 = arith.constant 0 : index
    %52 = vector.load %arg6[%c0_32, %c0_33] : memref<128x32xbf16, #tpu.memory_space<vmem>>, vector<128x32xbf16>
    %cst_34 = arith.constant dense<0.000000e+00> : vector<16x32xf32>
    %53 = tpu.matmul %51, %52, %cst_34 {dimension_numbers = #tpu.dot_dimension_numbers<[1], [0], [0], [1], [0, 0, 1, 1], [], []>} : vector<16x128xbf16>, vector<128x32xbf16>, vector<16x32xf32> -> vector<16x32xf32>
    %54 = vector.shape_cast %53 : vector<16x32xf32> to vector<2x8x32xf32>
    %55 = tpu.concatenate %17, %26, %35, %44, %54 in 1 : vector<2x1x32xf32>, vector<2x1x32xf32>, vector<2x1x32xf32>, vector<2x1x32xf32>, vector<2x8x32xf32> -> vector<2x12x32xf32>
    %c0_35 = arith.constant 0 : index
    %c0_36 = arith.constant 0 : index
    %56 = vector.load %arg8[%c0_35, %c0_36] : memref<12x32xbf16, #tpu.memory_space<vmem>>, vector<12x32xbf16>
    %57 = arith.extf %56 : vector<12x32xbf16> to vector<12x32xf32>
    %58 = vector.shape_cast %57 : vector<12x32xf32> to vector<1x12x32xf32>
    %59 = vector.broadcast %58 : vector<1x12x32xf32> to vector<2x12x32xf32>
    %60 = arith.addf %55, %59 : vector<2x12x32xf32>
    %61 = tpu.iota {dimensions = array<i32: 0>} : vector<12x12xi32>
    %62 = tpu.iota {dimensions = array<i32: 1>} : vector<12x12xi32>
    %63 = arith.cmpi sle, %62, %61 : vector<12x12xi32>
    %64 = vector.shape_cast %63 : vector<12x12xi1> to vector<1x12x12xi1>
    %c0_37 = arith.constant 0 : index
    %c0_38 = arith.constant 0 : index
    %c0_39 = arith.constant 0 : index
    %65 = vector.load %arg15[%c0_37, %c0_38, %c0_39] : memref<2x6x32xbf16, #tpu.memory_space<vmem>>, vector<1x6x32xbf16>
    %66 = vector.shape_cast %65 : vector<1x6x32xbf16> to vector<6x32xbf16>
    %67 = arith.extf %66 : vector<6x32xbf16> to vector<6x32xf32>
    %68 = vector.extract_strided_slice %67 {offsets = [0, 0], sizes = [1, 32], strides = [1, 1]} : vector<6x32xf32> to vector<1x32xf32>
    %69 = vector.extract_strided_slice %67 {offsets = [1, 0], sizes = [1, 32], strides = [1, 1]} : vector<6x32xf32> to vector<1x32xf32>
    %70 = vector.extract_strided_slice %67 {offsets = [2, 0], sizes = [1, 32], strides = [1, 1]} : vector<6x32xf32> to vector<1x32xf32>
    %71 = vector.extract_strided_slice %67 {offsets = [3, 0], sizes = [1, 32], strides = [1, 1]} : vector<6x32xf32> to vector<1x32xf32>
    %72 = vector.extract_strided_slice %67 {offsets = [4, 0], sizes = [1, 32], strides = [1, 1]} : vector<6x32xf32> to vector<1x32xf32>
    %73 = vector.extract_strided_slice %67 {offsets = [5, 0], sizes = [1, 32], strides = [1, 1]} : vector<6x32xf32> to vector<1x32xf32>
    %c0_40 = arith.constant 0 : index
    %c0_41 = arith.constant 0 : index
    %c0_42 = arith.constant 0 : index
    %c0_43 = arith.constant 0 : index
    %74 = vector.load %arg9[%c0_40, %c0_41, %c0_42, %c0_43] : memref<2x6x32x16xbf16, #tpu.memory_space<vmem>>, vector<1x6x32x16xbf16>
    %75 = vector.shape_cast %74 : vector<1x6x32x16xbf16> to vector<6x32x16xbf16>
    %c0_44 = arith.constant 0 : index
    %c0_45 = arith.constant 0 : index
    %c0_46 = arith.constant 0 : index
    %76 = vector.load %arg10[%c0_44, %c0_45, %c0_46] : memref<2x6x16xbf16, #tpu.memory_space<vmem>>, vector<1x6x16xbf16>
    %77 = vector.shape_cast %76 : vector<1x6x16xbf16> to vector<6x16xbf16>
    %78 = arith.extf %77 : vector<6x16xbf16> to vector<6x16xf32>
    %c0_47 = arith.constant 0 : index
    %c0_48 = arith.constant 0 : index
    %c0_49 = arith.constant 0 : index
    %c0_50 = arith.constant 0 : index
    %79 = vector.load %arg11[%c0_47, %c0_48, %c0_49, %c0_50] : memref<2x2x16x32xbf16, #tpu.memory_space<vmem>>, vector<1x2x16x32xbf16>
    %80 = vector.shape_cast %79 : vector<1x2x16x32xbf16> to vector<2x16x32xbf16>
    %c0_51 = arith.constant 0 : index
    %c0_52 = arith.constant 0 : index
    %c0_53 = arith.constant 0 : index
    %81 = vector.load %arg12[%c0_51, %c0_52, %c0_53] : memref<2x32x128xbf16, #tpu.memory_space<vmem>>, vector<1x32x128xbf16>
    %82 = vector.shape_cast %81 : vector<1x32x128xbf16> to vector<32x128xbf16>
    %c0_54 = arith.constant 0 : index
    %c0_55 = arith.constant 0 : index
    %c0_56 = arith.constant 0 : index
    %83 = vector.load %arg13[%c0_54, %c0_55, %c0_56] : memref<2x1x128xbf16, #tpu.memory_space<vmem>>, vector<1x1x128xbf16>
    %84 = vector.shape_cast %83 : vector<1x1x128xbf16> to vector<1x128xbf16>
    %85 = arith.extf %84 : vector<1x128xbf16> to vector<1x128xf32>
    %c0_57 = arith.constant 0 : index
    %c0_58 = arith.constant 0 : index
    %c0_59 = arith.constant 0 : index
    %86 = vector.load %arg14[%c0_57, %c0_58, %c0_59] : memref<2x128x32xbf16, #tpu.memory_space<vmem>>, vector<1x128x32xbf16>
    %87 = vector.shape_cast %86 : vector<1x128x32xbf16> to vector<128x32xbf16>
    %cst_60 = arith.constant dense<0.000000e+00> : vector<2x12xf32>
    %88 = vector.multi_reduction <add>, %60, %cst_60 [2] : vector<2x12x32xf32> to vector<2x12xf32>
    %89 = vector.shape_cast %88 : vector<2x12xf32> to vector<2x12x1xf32>
    %cst_61 = arith.constant 3.200000e+01 : f32
    %90 = vector.broadcast %cst_61 : f32 to vector<2x12x1xf32>
    %91 = arith.divf %89, %90 : vector<2x12x1xf32>
    %92 = vector.broadcast %91 : vector<2x12x1xf32> to vector<2x12x32xf32>
    %93 = arith.subf %60, %92 : vector<2x12x32xf32>
    %94 = arith.mulf %93, %93 : vector<2x12x32xf32>
    %cst_62 = arith.constant dense<0.000000e+00> : vector<2x12xf32>
    %95 = vector.multi_reduction <add>, %94, %cst_62 [2] : vector<2x12x32xf32> to vector<2x12xf32>
    %96 = vector.shape_cast %95 : vector<2x12xf32> to vector<2x12x1xf32>
    %cst_63 = arith.constant 3.200000e+01 : f32
    %97 = vector.broadcast %cst_63 : f32 to vector<2x12x1xf32>
    %98 = arith.divf %96, %97 : vector<2x12x1xf32>
    %99 = vector.broadcast %91 : vector<2x12x1xf32> to vector<2x12x32xf32>
    %100 = arith.subf %60, %99 : vector<2x12x32xf32>
    %cst_64 = arith.constant 9.99999974E-6 : f32
    %101 = vector.broadcast %cst_64 : f32 to vector<2x12x1xf32>
    %102 = arith.addf %98, %101 : vector<2x12x1xf32>
    %103 = math.rsqrt %102 : vector<2x12x1xf32>
    %104 = vector.broadcast %103 : vector<2x12x1xf32> to vector<2x12x32xf32>
    %105 = arith.mulf %100, %104 : vector<2x12x32xf32>
    %106 = vector.shape_cast %68 : vector<1x32xf32> to vector<1x1x32xf32>
    %107 = vector.broadcast %106 : vector<1x1x32xf32> to vector<2x12x32xf32>
    %108 = arith.mulf %105, %107 : vector<2x12x32xf32>
    %109 = vector.shape_cast %69 : vector<1x32xf32> to vector<1x1x32xf32>
    %110 = vector.broadcast %109 : vector<1x1x32xf32> to vector<2x12x32xf32>
    %111 = arith.addf %108, %110 : vector<2x12x32xf32>
    %112 = vector.shape_cast %111 : vector<2x12x32xf32> to vector<24x32xf32>
    %113 = arith.truncf %112 : vector<24x32xf32> to vector<24x32xbf16>
    %114 = vector.extract_strided_slice %75 {offsets = [0, 0, 0], sizes = [1, 32, 16], strides = [1, 1, 1]} : vector<6x32x16xbf16> to vector<1x32x16xbf16>
    %115 = vector.shape_cast %114 : vector<1x32x16xbf16> to vector<32x16xbf16>
    %cst_65 = arith.constant dense<0.000000e+00> : vector<24x16xf32>
    %116 = tpu.matmul %113, %115, %cst_65 {dimension_numbers = #tpu.dot_dimension_numbers<[1], [0], [0], [1], [0, 0, 1, 1], [], []>} : vector<24x32xbf16>, vector<32x16xbf16>, vector<24x16xf32> -> vector<24x16xf32>
    %117 = vector.extract_strided_slice %78 {offsets = [0, 0], sizes = [1, 16], strides = [1, 1]} : vector<6x16xf32> to vector<1x16xf32>
    %118 = vector.broadcast %117 : vector<1x16xf32> to vector<24x16xf32>
    %119 = arith.addf %116, %118 : vector<24x16xf32>
    %120 = vector.shape_cast %119 : vector<24x16xf32> to vector<2x12x16xf32>
    %121 = vector.extract_strided_slice %75 {offsets = [1, 0, 0], sizes = [1, 32, 16], strides = [1, 1, 1]} : vector<6x32x16xbf16> to vector<1x32x16xbf16>
    %122 = vector.shape_cast %121 : vector<1x32x16xbf16> to vector<32x16xbf16>
    %cst_66 = arith.constant dense<0.000000e+00> : vector<24x16xf32>
    %123 = tpu.matmul %113, %122, %cst_66 {dimension_numbers = #tpu.dot_dimension_numbers<[1], [0], [0], [1], [0, 0, 1, 1], [], []>} : vector<24x32xbf16>, vector<32x16xbf16>, vector<24x16xf32> -> vector<24x16xf32>
    %124 = vector.extract_strided_slice %78 {offsets = [1, 0], sizes = [1, 16], strides = [1, 1]} : vector<6x16xf32> to vector<1x16xf32>
    %125 = vector.broadcast %124 : vector<1x16xf32> to vector<24x16xf32>
    %126 = arith.addf %123, %125 : vector<24x16xf32>
    %127 = vector.shape_cast %126 : vector<24x16xf32> to vector<2x12x16xf32>
    %128 = tpu.concatenate %120, %127 in 0 : vector<2x12x16xf32>, vector<2x12x16xf32> -> vector<4x12x16xf32>
    %129 = vector.extract_strided_slice %75 {offsets = [2, 0, 0], sizes = [1, 32, 16], strides = [1, 1, 1]} : vector<6x32x16xbf16> to vector<1x32x16xbf16>
    %130 = vector.shape_cast %129 : vector<1x32x16xbf16> to vector<32x16xbf16>
    %cst_67 = arith.constant dense<0.000000e+00> : vector<24x16xf32>
    %131 = tpu.matmul %113, %130, %cst_67 {dimension_numbers = #tpu.dot_dimension_numbers<[1], [0], [0], [1], [0, 0, 1, 1], [], []>} : vector<24x32xbf16>, vector<32x16xbf16>, vector<24x16xf32> -> vector<24x16xf32>
    %132 = vector.extract_strided_slice %78 {offsets = [2, 0], sizes = [1, 16], strides = [1, 1]} : vector<6x16xf32> to vector<1x16xf32>
    %133 = vector.broadcast %132 : vector<1x16xf32> to vector<24x16xf32>
    %134 = arith.addf %131, %133 : vector<24x16xf32>
    %135 = vector.shape_cast %134 : vector<24x16xf32> to vector<2x12x16xf32>
    %136 = vector.extract_strided_slice %75 {offsets = [3, 0, 0], sizes = [1, 32, 16], strides = [1, 1, 1]} : vector<6x32x16xbf16> to vector<1x32x16xbf16>
    %137 = vector.shape_cast %136 : vector<1x32x16xbf16> to vector<32x16xbf16>
    %cst_68 = arith.constant dense<0.000000e+00> : vector<24x16xf32>
    %138 = tpu.matmul %113, %137, %cst_68 {dimension_numbers = #tpu.dot_dimension_numbers<[1], [0], [0], [1], [0, 0, 1, 1], [], []>} : vector<24x32xbf16>, vector<32x16xbf16>, vector<24x16xf32> -> vector<24x16xf32>
    %139 = vector.extract_strided_slice %78 {offsets = [3, 0], sizes = [1, 16], strides = [1, 1]} : vector<6x16xf32> to vector<1x16xf32>
    %140 = vector.broadcast %139 : vector<1x16xf32> to vector<24x16xf32>
    %141 = arith.addf %138, %140 : vector<24x16xf32>
    %142 = vector.shape_cast %141 : vector<24x16xf32> to vector<2x12x16xf32>
    %143 = tpu.concatenate %135, %142 in 0 : vector<2x12x16xf32>, vector<2x12x16xf32> -> vector<4x12x16xf32>
    %144 = vector.extract_strided_slice %75 {offsets = [4, 0, 0], sizes = [1, 32, 16], strides = [1, 1, 1]} : vector<6x32x16xbf16> to vector<1x32x16xbf16>
    %145 = vector.shape_cast %144 : vector<1x32x16xbf16> to vector<32x16xbf16>
    %cst_69 = arith.constant dense<0.000000e+00> : vector<24x16xf32>
    %146 = tpu.matmul %113, %145, %cst_69 {dimension_numbers = #tpu.dot_dimension_numbers<[1], [0], [0], [1], [0, 0, 1, 1], [], []>} : vector<24x32xbf16>, vector<32x16xbf16>, vector<24x16xf32> -> vector<24x16xf32>
    %147 = vector.extract_strided_slice %78 {offsets = [4, 0], sizes = [1, 16], strides = [1, 1]} : vector<6x16xf32> to vector<1x16xf32>
    %148 = vector.broadcast %147 : vector<1x16xf32> to vector<24x16xf32>
    %149 = arith.addf %146, %148 : vector<24x16xf32>
    %150 = vector.shape_cast %149 : vector<24x16xf32> to vector<2x12x16xf32>
    %151 = vector.extract_strided_slice %75 {offsets = [5, 0, 0], sizes = [1, 32, 16], strides = [1, 1, 1]} : vector<6x32x16xbf16> to vector<1x32x16xbf16>
    %152 = vector.shape_cast %151 : vector<1x32x16xbf16> to vector<32x16xbf16>
    %cst_70 = arith.constant dense<0.000000e+00> : vector<24x16xf32>
    %153 = tpu.matmul %113, %152, %cst_70 {dimension_numbers = #tpu.dot_dimension_numbers<[1], [0], [0], [1], [0, 0, 1, 1], [], []>} : vector<24x32xbf16>, vector<32x16xbf16>, vector<24x16xf32> -> vector<24x16xf32>
    %154 = vector.extract_strided_slice %78 {offsets = [5, 0], sizes = [1, 16], strides = [1, 1]} : vector<6x16xf32> to vector<1x16xf32>
    %155 = vector.broadcast %154 : vector<1x16xf32> to vector<24x16xf32>
    %156 = arith.addf %153, %155 : vector<24x16xf32>
    %157 = vector.shape_cast %156 : vector<24x16xf32> to vector<2x12x16xf32>
    %158 = tpu.concatenate %150, %157 in 0 : vector<2x12x16xf32>, vector<2x12x16xf32> -> vector<4x12x16xf32>
    %159 = arith.truncf %128 : vector<4x12x16xf32> to vector<4x12x16xbf16>
    %160 = arith.truncf %143 : vector<4x12x16xf32> to vector<4x12x16xbf16>
    "tpu.trace_start"() <{level = 10 : i32, message = "bqd,bkd->bqk"}> : () -> ()
    %cst_71 = arith.constant dense<0.000000e+00> : vector<4x12x12xf32>
    %161 = tpu.matmul %159, %160, %cst_71 {dimension_numbers = #tpu.dot_dimension_numbers<[2], [2], [1], [1], [0, 0, 0, 1, 1, 1], [0], [0]>} : vector<4x12x16xbf16>, vector<4x12x16xbf16>, vector<4x12x12xf32> -> vector<4x12x12xf32>
    "tpu.trace_stop"() : () -> ()
    %cst_72 = arith.constant 2.500000e-01 : f32
    %162 = vector.broadcast %cst_72 : f32 to vector<4x12x12xf32>
    %163 = arith.mulf %161, %162 : vector<4x12x12xf32>
    %cst_73 = arith.constant -1.000000e+09 : f32
    %164 = vector.shape_cast %64 : vector<1x12x12xi1> to vector<1x12x12xi1>
    %165 = vector.broadcast %164 : vector<1x12x12xi1> to vector<4x12x12xi1>
    %166 = vector.broadcast %cst_73 : f32 to vector<4x12x12xf32>
    %167 = arith.select %165, %163, %166 : vector<4x12x12xi1>, vector<4x12x12xf32>
    %cst_74 = arith.constant dense<0xFF800000> : vector<4x12xf32>
    %168 = vector.multi_reduction <maximumf>, %167, %cst_74 [2] : vector<4x12x12xf32> to vector<4x12xf32>
    %169 = vector.shape_cast %168 : vector<4x12xf32> to vector<4x12x1xf32>
    %170 = vector.broadcast %169 : vector<4x12x1xf32> to vector<4x12x12xf32>
    %171 = arith.subf %167, %170 : vector<4x12x12xf32>
    %172 = math.exp %171 : vector<4x12x12xf32>
    %cst_75 = arith.constant dense<0.000000e+00> : vector<4x12xf32>
    %173 = vector.multi_reduction <add>, %172, %cst_75 [2] : vector<4x12x12xf32> to vector<4x12xf32>
    %174 = vector.shape_cast %173 : vector<4x12xf32> to vector<4x12x1xf32>
    %175 = tpu.reciprocal %174 {approx = true} : vector<4x12x1xf32> -> vector<4x12x1xf32>
    %176 = vector.broadcast %175 : vector<4x12x1xf32> to vector<4x12x12xf32>
    %177 = arith.mulf %172, %176 : vector<4x12x12xf32>
    %178 = arith.truncf %177 : vector<4x12x12xf32> to vector<4x12x12xbf16>
    %179 = arith.truncf %158 : vector<4x12x16xf32> to vector<4x12x16xbf16>
    "tpu.trace_start"() <{level = 10 : i32, message = "bqk,bkd->bqd"}> : () -> ()
    %cst_76 = arith.constant dense<0.000000e+00> : vector<4x12x16xf32>
    %180 = tpu.matmul %178, %179, %cst_76 {dimension_numbers = #tpu.dot_dimension_numbers<[2], [1], [1], [2], [0, 0, 0, 1, 1, 2], [0], [0]>} : vector<4x12x12xbf16>, vector<4x12x16xbf16>, vector<4x12x16xf32> -> vector<4x12x16xf32>
    "tpu.trace_stop"() : () -> ()
    %181 = vector.extract_strided_slice %180 {offsets = [0, 0, 0], sizes = [2, 12, 16], strides = [1, 1, 1]} : vector<4x12x16xf32> to vector<2x12x16xf32>
    %182 = vector.shape_cast %181 : vector<2x12x16xf32> to vector<24x16xf32>
    %183 = arith.truncf %182 : vector<24x16xf32> to vector<24x16xbf16>
    %184 = vector.extract_strided_slice %80 {offsets = [0, 0, 0], sizes = [1, 16, 32], strides = [1, 1, 1]} : vector<2x16x32xbf16> to vector<1x16x32xbf16>
    %185 = vector.shape_cast %184 : vector<1x16x32xbf16> to vector<16x32xbf16>
    %cst_77 = arith.constant dense<0.000000e+00> : vector<24x32xf32>
    %186 = tpu.matmul %183, %185, %cst_77 {dimension_numbers = #tpu.dot_dimension_numbers<[1], [0], [0], [1], [0, 0, 1, 1], [], []>} : vector<24x16xbf16>, vector<16x32xbf16>, vector<24x32xf32> -> vector<24x32xf32>
    %187 = vector.broadcast %70 : vector<1x32xf32> to vector<24x32xf32>
    %188 = arith.addf %187, %186 : vector<24x32xf32>
    %189 = vector.extract_strided_slice %180 {offsets = [2, 0, 0], sizes = [2, 12, 16], strides = [1, 1, 1]} : vector<4x12x16xf32> to vector<2x12x16xf32>
    %190 = vector.shape_cast %189 : vector<2x12x16xf32> to vector<24x16xf32>
    %191 = arith.truncf %190 : vector<24x16xf32> to vector<24x16xbf16>
    %192 = vector.extract_strided_slice %80 {offsets = [1, 0, 0], sizes = [1, 16, 32], strides = [1, 1, 1]} : vector<2x16x32xbf16> to vector<1x16x32xbf16>
    %193 = vector.shape_cast %192 : vector<1x16x32xbf16> to vector<16x32xbf16>
    %cst_78 = arith.constant dense<0.000000e+00> : vector<24x32xf32>
    %194 = tpu.matmul %191, %193, %cst_78 {dimension_numbers = #tpu.dot_dimension_numbers<[1], [0], [0], [1], [0, 0, 1, 1], [], []>} : vector<24x16xbf16>, vector<16x32xbf16>, vector<24x32xf32> -> vector<24x32xf32>
    %195 = arith.addf %188, %194 : vector<24x32xf32>
    %196 = vector.shape_cast %195 : vector<24x32xf32> to vector<2x12x32xf32>
    %197 = arith.addf %60, %196 : vector<2x12x32xf32>
    %cst_79 = arith.constant dense<0.000000e+00> : vector<2x12xf32>
    %198 = vector.multi_reduction <add>, %197, %cst_79 [2] : vector<2x12x32xf32> to vector<2x12xf32>
    %199 = vector.shape_cast %198 : vector<2x12xf32> to vector<2x12x1xf32>
    %cst_80 = arith.constant 3.200000e+01 : f32
    %200 = vector.broadcast %cst_80 : f32 to vector<2x12x1xf32>
    %201 = arith.divf %199, %200 : vector<2x12x1xf32>
    %202 = vector.broadcast %201 : vector<2x12x1xf32> to vector<2x12x32xf32>
    %203 = arith.subf %197, %202 : vector<2x12x32xf32>
    %204 = arith.mulf %203, %203 : vector<2x12x32xf32>
    %cst_81 = arith.constant dense<0.000000e+00> : vector<2x12xf32>
    %205 = vector.multi_reduction <add>, %204, %cst_81 [2] : vector<2x12x32xf32> to vector<2x12xf32>
    %206 = vector.shape_cast %205 : vector<2x12xf32> to vector<2x12x1xf32>
    %cst_82 = arith.constant 3.200000e+01 : f32
    %207 = vector.broadcast %cst_82 : f32 to vector<2x12x1xf32>
    %208 = arith.divf %206, %207 : vector<2x12x1xf32>
    %209 = vector.broadcast %201 : vector<2x12x1xf32> to vector<2x12x32xf32>
    %210 = arith.subf %197, %209 : vector<2x12x32xf32>
    %cst_83 = arith.constant 9.99999974E-6 : f32
    %211 = vector.broadcast %cst_83 : f32 to vector<2x12x1xf32>
    %212 = arith.addf %208, %211 : vector<2x12x1xf32>
    %213 = math.rsqrt %212 : vector<2x12x1xf32>
    %214 = vector.broadcast %213 : vector<2x12x1xf32> to vector<2x12x32xf32>
    %215 = arith.mulf %210, %214 : vector<2x12x32xf32>
    %216 = vector.shape_cast %71 : vector<1x32xf32> to vector<1x1x32xf32>
    %217 = vector.broadcast %216 : vector<1x1x32xf32> to vector<2x12x32xf32>
    %218 = arith.mulf %215, %217 : vector<2x12x32xf32>
    %219 = vector.shape_cast %72 : vector<1x32xf32> to vector<1x1x32xf32>
    %220 = vector.broadcast %219 : vector<1x1x32xf32> to vector<2x12x32xf32>
    %221 = arith.addf %218, %220 : vector<2x12x32xf32>
    %222 = vector.shape_cast %221 : vector<2x12x32xf32> to vector<24x32xf32>
    %223 = arith.truncf %222 : vector<24x32xf32> to vector<24x32xbf16>
    %cst_84 = arith.constant dense<0.000000e+00> : vector<24x128xf32>
    %224 = tpu.matmul %223, %82, %cst_84 {dimension_numbers = #tpu.dot_dimension_numbers<[1], [0], [0], [1], [0, 0, 1, 1], [], []>} : vector<24x32xbf16>, vector<32x128xbf16>, vector<24x128xf32> -> vector<24x128xf32>
    %225 = vector.broadcast %85 : vector<1x128xf32> to vector<24x128xf32>
    %226 = arith.addf %224, %225 : vector<24x128xf32>
    %cst_85 = arith.constant 5.000000e-01 : f32
    %227 = vector.broadcast %cst_85 : f32 to vector<24x128xf32>
    %228 = arith.mulf %227, %226 : vector<24x128xf32>
    %cst_86 = arith.constant 0.636619746 : f32
    %229 = math.sqrt %cst_86 : f32
    %230 = arith.mulf %226, %226 : vector<24x128xf32>
    %231 = arith.mulf %226, %230 : vector<24x128xf32>
    %cst_87 = arith.constant 4.471500e-02 : f32
    %232 = vector.broadcast %cst_87 : f32 to vector<24x128xf32>
    %233 = arith.mulf %232, %231 : vector<24x128xf32>
    %234 = arith.addf %226, %233 : vector<24x128xf32>
    %235 = vector.broadcast %229 : f32 to vector<24x128xf32>
    %236 = arith.mulf %235, %234 : vector<24x128xf32>
    %237 = math.tanh %236 : vector<24x128xf32>
    %cst_88 = arith.constant 1.000000e+00 : f32
    %238 = vector.broadcast %cst_88 : f32 to vector<24x128xf32>
    %239 = arith.addf %238, %237 : vector<24x128xf32>
    %240 = arith.mulf %228, %239 : vector<24x128xf32>
    %241 = arith.truncf %240 : vector<24x128xf32> to vector<24x128xbf16>
    %cst_89 = arith.constant dense<0.000000e+00> : vector<24x32xf32>
    %242 = tpu.matmul %241, %87, %cst_89 {dimension_numbers = #tpu.dot_dimension_numbers<[1], [0], [0], [1], [0, 0, 1, 1], [], []>} : vector<24x128xbf16>, vector<128x32xbf16>, vector<24x32xf32> -> vector<24x32xf32>
    %243 = vector.broadcast %73 : vector<1x32xf32> to vector<24x32xf32>
    %244 = arith.addf %242, %243 : vector<24x32xf32>
    %245 = vector.shape_cast %244 : vector<24x32xf32> to vector<2x12x32xf32>
    %246 = arith.addf %197, %245 : vector<2x12x32xf32>
    %c1_90 = arith.constant 1 : index
    %c0_91 = arith.constant 0 : index
    %c0_92 = arith.constant 0 : index
    %247 = vector.load %arg15[%c1_90, %c0_91, %c0_92] : memref<2x6x32xbf16, #tpu.memory_space<vmem>>, vector<1x6x32xbf16>
    %248 = vector.shape_cast %247 : vector<1x6x32xbf16> to vector<6x32xbf16>
    %249 = arith.extf %248 : vector<6x32xbf16> to vector<6x32xf32>
    %250 = vector.extract_strided_slice %249 {offsets = [0, 0], sizes = [1, 32], strides = [1, 1]} : vector<6x32xf32> to vector<1x32xf32>
    %251 = vector.extract_strided_slice %249 {offsets = [1, 0], sizes = [1, 32], strides = [1, 1]} : vector<6x32xf32> to vector<1x32xf32>
    %252 = vector.extract_strided_slice %249 {offsets = [2, 0], sizes = [1, 32], strides = [1, 1]} : vector<6x32xf32> to vector<1x32xf32>
    %253 = vector.extract_strided_slice %249 {offsets = [3, 0], sizes = [1, 32], strides = [1, 1]} : vector<6x32xf32> to vector<1x32xf32>
    %254 = vector.extract_strided_slice %249 {offsets = [4, 0], sizes = [1, 32], strides = [1, 1]} : vector<6x32xf32> to vector<1x32xf32>
    %255 = vector.extract_strided_slice %249 {offsets = [5, 0], sizes = [1, 32], strides = [1, 1]} : vector<6x32xf32> to vector<1x32xf32>
    %c1_93 = arith.constant 1 : index
    %c0_94 = arith.constant 0 : index
    %c0_95 = arith.constant 0 : index
    %c0_96 = arith.constant 0 : index
    %256 = vector.load %arg9[%c1_93, %c0_94, %c0_95, %c0_96] : memref<2x6x32x16xbf16, #tpu.memory_space<vmem>>, vector<1x6x32x16xbf16>
    %257 = vector.shape_cast %256 : vector<1x6x32x16xbf16> to vector<6x32x16xbf16>
    %c1_97 = arith.constant 1 : index
    %c0_98 = arith.constant 0 : index
    %c0_99 = arith.constant 0 : index
    %258 = vector.load %arg10[%c1_97, %c0_98, %c0_99] : memref<2x6x16xbf16, #tpu.memory_space<vmem>>, vector<1x6x16xbf16>
    %259 = vector.shape_cast %258 : vector<1x6x16xbf16> to vector<6x16xbf16>
    %260 = arith.extf %259 : vector<6x16xbf16> to vector<6x16xf32>
    %c1_100 = arith.constant 1 : index
    %c0_101 = arith.constant 0 : index
    %c0_102 = arith.constant 0 : index
    %c0_103 = arith.constant 0 : index
    %261 = vector.load %arg11[%c1_100, %c0_101, %c0_102, %c0_103] : memref<2x2x16x32xbf16, #tpu.memory_space<vmem>>, vector<1x2x16x32xbf16>
    %262 = vector.shape_cast %261 : vector<1x2x16x32xbf16> to vector<2x16x32xbf16>
    %c1_104 = arith.constant 1 : index
    %c0_105 = arith.constant 0 : index
    %c0_106 = arith.constant 0 : index
    %263 = vector.load %arg12[%c1_104, %c0_105, %c0_106] : memref<2x32x128xbf16, #tpu.memory_space<vmem>>, vector<1x32x128xbf16>
    %264 = vector.shape_cast %263 : vector<1x32x128xbf16> to vector<32x128xbf16>
    %c1_107 = arith.constant 1 : index
    %c0_108 = arith.constant 0 : index
    %c0_109 = arith.constant 0 : index
    %265 = vector.load %arg13[%c1_107, %c0_108, %c0_109] : memref<2x1x128xbf16, #tpu.memory_space<vmem>>, vector<1x1x128xbf16>
    %266 = vector.shape_cast %265 : vector<1x1x128xbf16> to vector<1x128xbf16>
    %267 = arith.extf %266 : vector<1x128xbf16> to vector<1x128xf32>
    %c1_110 = arith.constant 1 : index
    %c0_111 = arith.constant 0 : index
    %c0_112 = arith.constant 0 : index
    %268 = vector.load %arg14[%c1_110, %c0_111, %c0_112] : memref<2x128x32xbf16, #tpu.memory_space<vmem>>, vector<1x128x32xbf16>
    %269 = vector.shape_cast %268 : vector<1x128x32xbf16> to vector<128x32xbf16>
    %cst_113 = arith.constant dense<0.000000e+00> : vector<2x12xf32>
    %270 = vector.multi_reduction <add>, %246, %cst_113 [2] : vector<2x12x32xf32> to vector<2x12xf32>
    %271 = vector.shape_cast %270 : vector<2x12xf32> to vector<2x12x1xf32>
    %cst_114 = arith.constant 3.200000e+01 : f32
    %272 = vector.broadcast %cst_114 : f32 to vector<2x12x1xf32>
    %273 = arith.divf %271, %272 : vector<2x12x1xf32>
    %274 = vector.broadcast %273 : vector<2x12x1xf32> to vector<2x12x32xf32>
    %275 = arith.subf %246, %274 : vector<2x12x32xf32>
    %276 = arith.mulf %275, %275 : vector<2x12x32xf32>
    %cst_115 = arith.constant dense<0.000000e+00> : vector<2x12xf32>
    %277 = vector.multi_reduction <add>, %276, %cst_115 [2] : vector<2x12x32xf32> to vector<2x12xf32>
    %278 = vector.shape_cast %277 : vector<2x12xf32> to vector<2x12x1xf32>
    %cst_116 = arith.constant 3.200000e+01 : f32
    %279 = vector.broadcast %cst_116 : f32 to vector<2x12x1xf32>
    %280 = arith.divf %278, %279 : vector<2x12x1xf32>
    %281 = vector.broadcast %273 : vector<2x12x1xf32> to vector<2x12x32xf32>
    %282 = arith.subf %246, %281 : vector<2x12x32xf32>
    %cst_117 = arith.constant 9.99999974E-6 : f32
    %283 = vector.broadcast %cst_117 : f32 to vector<2x12x1xf32>
    %284 = arith.addf %280, %283 : vector<2x12x1xf32>
    %285 = math.rsqrt %284 : vector<2x12x1xf32>
    %286 = vector.broadcast %285 : vector<2x12x1xf32> to vector<2x12x32xf32>
    %287 = arith.mulf %282, %286 : vector<2x12x32xf32>
    %288 = vector.shape_cast %250 : vector<1x32xf32> to vector<1x1x32xf32>
    %289 = vector.broadcast %288 : vector<1x1x32xf32> to vector<2x12x32xf32>
    %290 = arith.mulf %287, %289 : vector<2x12x32xf32>
    %291 = vector.shape_cast %251 : vector<1x32xf32> to vector<1x1x32xf32>
    %292 = vector.broadcast %291 : vector<1x1x32xf32> to vector<2x12x32xf32>
    %293 = arith.addf %290, %292 : vector<2x12x32xf32>
    %294 = vector.shape_cast %293 : vector<2x12x32xf32> to vector<24x32xf32>
    %295 = arith.truncf %294 : vector<24x32xf32> to vector<24x32xbf16>
    %296 = vector.extract_strided_slice %257 {offsets = [0, 0, 0], sizes = [1, 32, 16], strides = [1, 1, 1]} : vector<6x32x16xbf16> to vector<1x32x16xbf16>
    %297 = vector.shape_cast %296 : vector<1x32x16xbf16> to vector<32x16xbf16>
    %cst_118 = arith.constant dense<0.000000e+00> : vector<24x16xf32>
    %298 = tpu.matmul %295, %297, %cst_118 {dimension_numbers = #tpu.dot_dimension_numbers<[1], [0], [0], [1], [0, 0, 1, 1], [], []>} : vector<24x32xbf16>, vector<32x16xbf16>, vector<24x16xf32> -> vector<24x16xf32>
    %299 = vector.extract_strided_slice %260 {offsets = [0, 0], sizes = [1, 16], strides = [1, 1]} : vector<6x16xf32> to vector<1x16xf32>
    %300 = vector.broadcast %299 : vector<1x16xf32> to vector<24x16xf32>
    %301 = arith.addf %298, %300 : vector<24x16xf32>
    %302 = vector.shape_cast %301 : vector<24x16xf32> to vector<2x12x16xf32>
    %303 = vector.extract_strided_slice %257 {offsets = [1, 0, 0], sizes = [1, 32, 16], strides = [1, 1, 1]} : vector<6x32x16xbf16> to vector<1x32x16xbf16>
    %304 = vector.shape_cast %303 : vector<1x32x16xbf16> to vector<32x16xbf16>
    %cst_119 = arith.constant dense<0.000000e+00> : vector<24x16xf32>
    %305 = tpu.matmul %295, %304, %cst_119 {dimension_numbers = #tpu.dot_dimension_numbers<[1], [0], [0], [1], [0, 0, 1, 1], [], []>} : vector<24x32xbf16>, vector<32x16xbf16>, vector<24x16xf32> -> vector<24x16xf32>
    %306 = vector.extract_strided_slice %260 {offsets = [1, 0], sizes = [1, 16], strides = [1, 1]} : vector<6x16xf32> to vector<1x16xf32>
    %307 = vector.broadcast %306 : vector<1x16xf32> to vector<24x16xf32>
    %308 = arith.addf %305, %307 : vector<24x16xf32>
    %309 = vector.shape_cast %308 : vector<24x16xf32> to vector<2x12x16xf32>
    %310 = tpu.concatenate %302, %309 in 0 : vector<2x12x16xf32>, vector<2x12x16xf32> -> vector<4x12x16xf32>
    %311 = vector.extract_strided_slice %257 {offsets = [2, 0, 0], sizes = [1, 32, 16], strides = [1, 1, 1]} : vector<6x32x16xbf16> to vector<1x32x16xbf16>
    %312 = vector.shape_cast %311 : vector<1x32x16xbf16> to vector<32x16xbf16>
    %cst_120 = arith.constant dense<0.000000e+00> : vector<24x16xf32>
    %313 = tpu.matmul %295, %312, %cst_120 {dimension_numbers = #tpu.dot_dimension_numbers<[1], [0], [0], [1], [0, 0, 1, 1], [], []>} : vector<24x32xbf16>, vector<32x16xbf16>, vector<24x16xf32> -> vector<24x16xf32>
    %314 = vector.extract_strided_slice %260 {offsets = [2, 0], sizes = [1, 16], strides = [1, 1]} : vector<6x16xf32> to vector<1x16xf32>
    %315 = vector.broadcast %314 : vector<1x16xf32> to vector<24x16xf32>
    %316 = arith.addf %313, %315 : vector<24x16xf32>
    %317 = vector.shape_cast %316 : vector<24x16xf32> to vector<2x12x16xf32>
    %318 = vector.extract_strided_slice %257 {offsets = [3, 0, 0], sizes = [1, 32, 16], strides = [1, 1, 1]} : vector<6x32x16xbf16> to vector<1x32x16xbf16>
    %319 = vector.shape_cast %318 : vector<1x32x16xbf16> to vector<32x16xbf16>
    %cst_121 = arith.constant dense<0.000000e+00> : vector<24x16xf32>
    %320 = tpu.matmul %295, %319, %cst_121 {dimension_numbers = #tpu.dot_dimension_numbers<[1], [0], [0], [1], [0, 0, 1, 1], [], []>} : vector<24x32xbf16>, vector<32x16xbf16>, vector<24x16xf32> -> vector<24x16xf32>
    %321 = vector.extract_strided_slice %260 {offsets = [3, 0], sizes = [1, 16], strides = [1, 1]} : vector<6x16xf32> to vector<1x16xf32>
    %322 = vector.broadcast %321 : vector<1x16xf32> to vector<24x16xf32>
    %323 = arith.addf %320, %322 : vector<24x16xf32>
    %324 = vector.shape_cast %323 : vector<24x16xf32> to vector<2x12x16xf32>
    %325 = tpu.concatenate %317, %324 in 0 : vector<2x12x16xf32>, vector<2x12x16xf32> -> vector<4x12x16xf32>
    %326 = vector.extract_strided_slice %257 {offsets = [4, 0, 0], sizes = [1, 32, 16], strides = [1, 1, 1]} : vector<6x32x16xbf16> to vector<1x32x16xbf16>
    %327 = vector.shape_cast %326 : vector<1x32x16xbf16> to vector<32x16xbf16>
    %cst_122 = arith.constant dense<0.000000e+00> : vector<24x16xf32>
    %328 = tpu.matmul %295, %327, %cst_122 {dimension_numbers = #tpu.dot_dimension_numbers<[1], [0], [0], [1], [0, 0, 1, 1], [], []>} : vector<24x32xbf16>, vector<32x16xbf16>, vector<24x16xf32> -> vector<24x16xf32>
    %329 = vector.extract_strided_slice %260 {offsets = [4, 0], sizes = [1, 16], strides = [1, 1]} : vector<6x16xf32> to vector<1x16xf32>
    %330 = vector.broadcast %329 : vector<1x16xf32> to vector<24x16xf32>
    %331 = arith.addf %328, %330 : vector<24x16xf32>
    %332 = vector.shape_cast %331 : vector<24x16xf32> to vector<2x12x16xf32>
    %333 = vector.extract_strided_slice %257 {offsets = [5, 0, 0], sizes = [1, 32, 16], strides = [1, 1, 1]} : vector<6x32x16xbf16> to vector<1x32x16xbf16>
    %334 = vector.shape_cast %333 : vector<1x32x16xbf16> to vector<32x16xbf16>
    %cst_123 = arith.constant dense<0.000000e+00> : vector<24x16xf32>
    %335 = tpu.matmul %295, %334, %cst_123 {dimension_numbers = #tpu.dot_dimension_numbers<[1], [0], [0], [1], [0, 0, 1, 1], [], []>} : vector<24x32xbf16>, vector<32x16xbf16>, vector<24x16xf32> -> vector<24x16xf32>
    %336 = vector.extract_strided_slice %260 {offsets = [5, 0], sizes = [1, 16], strides = [1, 1]} : vector<6x16xf32> to vector<1x16xf32>
    %337 = vector.broadcast %336 : vector<1x16xf32> to vector<24x16xf32>
    %338 = arith.addf %335, %337 : vector<24x16xf32>
    %339 = vector.shape_cast %338 : vector<24x16xf32> to vector<2x12x16xf32>
    %340 = tpu.concatenate %332, %339 in 0 : vector<2x12x16xf32>, vector<2x12x16xf32> -> vector<4x12x16xf32>
    %341 = arith.truncf %310 : vector<4x12x16xf32> to vector<4x12x16xbf16>
    %342 = arith.truncf %325 : vector<4x12x16xf32> to vector<4x12x16xbf16>
    "tpu.trace_start"() <{level = 10 : i32, message = "bqd,bkd->bqk"}> : () -> ()
    %cst_124 = arith.constant dense<0.000000e+00> : vector<4x12x12xf32>
    %343 = tpu.matmul %341, %342, %cst_124 {dimension_numbers = #tpu.dot_dimension_numbers<[2], [2], [1], [1], [0, 0, 0, 1, 1, 1], [0], [0]>} : vector<4x12x16xbf16>, vector<4x12x16xbf16>, vector<4x12x12xf32> -> vector<4x12x12xf32>
    "tpu.trace_stop"() : () -> ()
    %cst_125 = arith.constant 2.500000e-01 : f32
    %344 = vector.broadcast %cst_125 : f32 to vector<4x12x12xf32>
    %345 = arith.mulf %343, %344 : vector<4x12x12xf32>
    %cst_126 = arith.constant -1.000000e+09 : f32
    %346 = vector.shape_cast %64 : vector<1x12x12xi1> to vector<1x12x12xi1>
    %347 = vector.broadcast %346 : vector<1x12x12xi1> to vector<4x12x12xi1>
    %348 = vector.broadcast %cst_126 : f32 to vector<4x12x12xf32>
    %349 = arith.select %347, %345, %348 : vector<4x12x12xi1>, vector<4x12x12xf32>
    %cst_127 = arith.constant dense<0xFF800000> : vector<4x12xf32>
    %350 = vector.multi_reduction <maximumf>, %349, %cst_127 [2] : vector<4x12x12xf32> to vector<4x12xf32>
    %351 = vector.shape_cast %350 : vector<4x12xf32> to vector<4x12x1xf32>
    %352 = vector.broadcast %351 : vector<4x12x1xf32> to vector<4x12x12xf32>
    %353 = arith.subf %349, %352 : vector<4x12x12xf32>
    %354 = math.exp %353 : vector<4x12x12xf32>
    %cst_128 = arith.constant dense<0.000000e+00> : vector<4x12xf32>
    %355 = vector.multi_reduction <add>, %354, %cst_128 [2] : vector<4x12x12xf32> to vector<4x12xf32>
    %356 = vector.shape_cast %355 : vector<4x12xf32> to vector<4x12x1xf32>
    %357 = tpu.reciprocal %356 {approx = true} : vector<4x12x1xf32> -> vector<4x12x1xf32>
    %358 = vector.broadcast %357 : vector<4x12x1xf32> to vector<4x12x12xf32>
    %359 = arith.mulf %354, %358 : vector<4x12x12xf32>
    %360 = arith.truncf %359 : vector<4x12x12xf32> to vector<4x12x12xbf16>
    %361 = arith.truncf %340 : vector<4x12x16xf32> to vector<4x12x16xbf16>
    "tpu.trace_start"() <{level = 10 : i32, message = "bqk,bkd->bqd"}> : () -> ()
    %cst_129 = arith.constant dense<0.000000e+00> : vector<4x12x16xf32>
    %362 = tpu.matmul %360, %361, %cst_129 {dimension_numbers = #tpu.dot_dimension_numbers<[2], [1], [1], [2], [0, 0, 0, 1, 1, 2], [0], [0]>} : vector<4x12x12xbf16>, vector<4x12x16xbf16>, vector<4x12x16xf32> -> vector<4x12x16xf32>
    "tpu.trace_stop"() : () -> ()
    %363 = vector.extract_strided_slice %362 {offsets = [0, 0, 0], sizes = [2, 12, 16], strides = [1, 1, 1]} : vector<4x12x16xf32> to vector<2x12x16xf32>
    %364 = vector.shape_cast %363 : vector<2x12x16xf32> to vector<24x16xf32>
    %365 = arith.truncf %364 : vector<24x16xf32> to vector<24x16xbf16>
    %366 = vector.extract_strided_slice %262 {offsets = [0, 0, 0], sizes = [1, 16, 32], strides = [1, 1, 1]} : vector<2x16x32xbf16> to vector<1x16x32xbf16>
    %367 = vector.shape_cast %366 : vector<1x16x32xbf16> to vector<16x32xbf16>
    %cst_130 = arith.constant dense<0.000000e+00> : vector<24x32xf32>
    %368 = tpu.matmul %365, %367, %cst_130 {dimension_numbers = #tpu.dot_dimension_numbers<[1], [0], [0], [1], [0, 0, 1, 1], [], []>} : vector<24x16xbf16>, vector<16x32xbf16>, vector<24x32xf32> -> vector<24x32xf32>
    %369 = vector.broadcast %252 : vector<1x32xf32> to vector<24x32xf32>
    %370 = arith.addf %369, %368 : vector<24x32xf32>
    %371 = vector.extract_strided_slice %362 {offsets = [2, 0, 0], sizes = [2, 12, 16], strides = [1, 1, 1]} : vector<4x12x16xf32> to vector<2x12x16xf32>
    %372 = vector.shape_cast %371 : vector<2x12x16xf32> to vector<24x16xf32>
    %373 = arith.truncf %372 : vector<24x16xf32> to vector<24x16xbf16>
    %374 = vector.extract_strided_slice %262 {offsets = [1, 0, 0], sizes = [1, 16, 32], strides = [1, 1, 1]} : vector<2x16x32xbf16> to vector<1x16x32xbf16>
    %375 = vector.shape_cast %374 : vector<1x16x32xbf16> to vector<16x32xbf16>
    %cst_131 = arith.constant dense<0.000000e+00> : vector<24x32xf32>
    %376 = tpu.matmul %373, %375, %cst_131 {dimension_numbers = #tpu.dot_dimension_numbers<[1], [0], [0], [1], [0, 0, 1, 1], [], []>} : vector<24x16xbf16>, vector<16x32xbf16>, vector<24x32xf32> -> vector<24x32xf32>
    %377 = arith.addf %370, %376 : vector<24x32xf32>
    %378 = vector.shape_cast %377 : vector<24x32xf32> to vector<2x12x32xf32>
    %379 = arith.addf %246, %378 : vector<2x12x32xf32>
    %cst_132 = arith.constant dense<0.000000e+00> : vector<2x12xf32>
    %380 = vector.multi_reduction <add>, %379, %cst_132 [2] : vector<2x12x32xf32> to vector<2x12xf32>
    %381 = vector.shape_cast %380 : vector<2x12xf32> to vector<2x12x1xf32>
    %cst_133 = arith.constant 3.200000e+01 : f32
    %382 = vector.broadcast %cst_133 : f32 to vector<2x12x1xf32>
    %383 = arith.divf %381, %382 : vector<2x12x1xf32>
    %384 = vector.broadcast %383 : vector<2x12x1xf32> to vector<2x12x32xf32>
    %385 = arith.subf %379, %384 : vector<2x12x32xf32>
    %386 = arith.mulf %385, %385 : vector<2x12x32xf32>
    %cst_134 = arith.constant dense<0.000000e+00> : vector<2x12xf32>
    %387 = vector.multi_reduction <add>, %386, %cst_134 [2] : vector<2x12x32xf32> to vector<2x12xf32>
    %388 = vector.shape_cast %387 : vector<2x12xf32> to vector<2x12x1xf32>
    %cst_135 = arith.constant 3.200000e+01 : f32
    %389 = vector.broadcast %cst_135 : f32 to vector<2x12x1xf32>
    %390 = arith.divf %388, %389 : vector<2x12x1xf32>
    %391 = vector.broadcast %383 : vector<2x12x1xf32> to vector<2x12x32xf32>
    %392 = arith.subf %379, %391 : vector<2x12x32xf32>
    %cst_136 = arith.constant 9.99999974E-6 : f32
    %393 = vector.broadcast %cst_136 : f32 to vector<2x12x1xf32>
    %394 = arith.addf %390, %393 : vector<2x12x1xf32>
    %395 = math.rsqrt %394 : vector<2x12x1xf32>
    %396 = vector.broadcast %395 : vector<2x12x1xf32> to vector<2x12x32xf32>
    %397 = arith.mulf %392, %396 : vector<2x12x32xf32>
    %398 = vector.shape_cast %253 : vector<1x32xf32> to vector<1x1x32xf32>
    %399 = vector.broadcast %398 : vector<1x1x32xf32> to vector<2x12x32xf32>
    %400 = arith.mulf %397, %399 : vector<2x12x32xf32>
    %401 = vector.shape_cast %254 : vector<1x32xf32> to vector<1x1x32xf32>
    %402 = vector.broadcast %401 : vector<1x1x32xf32> to vector<2x12x32xf32>
    %403 = arith.addf %400, %402 : vector<2x12x32xf32>
    %404 = vector.shape_cast %403 : vector<2x12x32xf32> to vector<24x32xf32>
    %405 = arith.truncf %404 : vector<24x32xf32> to vector<24x32xbf16>
    %cst_137 = arith.constant dense<0.000000e+00> : vector<24x128xf32>
    %406 = tpu.matmul %405, %264, %cst_137 {dimension_numbers = #tpu.dot_dimension_numbers<[1], [0], [0], [1], [0, 0, 1, 1], [], []>} : vector<24x32xbf16>, vector<32x128xbf16>, vector<24x128xf32> -> vector<24x128xf32>
    %407 = vector.broadcast %267 : vector<1x128xf32> to vector<24x128xf32>
    %408 = arith.addf %406, %407 : vector<24x128xf32>
    %cst_138 = arith.constant 5.000000e-01 : f32
    %409 = vector.broadcast %cst_138 : f32 to vector<24x128xf32>
    %410 = arith.mulf %409, %408 : vector<24x128xf32>
    %cst_139 = arith.constant 0.636619746 : f32
    %411 = math.sqrt %cst_139 : f32
    %412 = arith.mulf %408, %408 : vector<24x128xf32>
    %413 = arith.mulf %408, %412 : vector<24x128xf32>
    %cst_140 = arith.constant 4.471500e-02 : f32
    %414 = vector.broadcast %cst_140 : f32 to vector<24x128xf32>
    %415 = arith.mulf %414, %413 : vector<24x128xf32>
    %416 = arith.addf %408, %415 : vector<24x128xf32>
    %417 = vector.broadcast %411 : f32 to vector<24x128xf32>
    %418 = arith.mulf %417, %416 : vector<24x128xf32>
    %419 = math.tanh %418 : vector<24x128xf32>
    %cst_141 = arith.constant 1.000000e+00 : f32
    %420 = vector.broadcast %cst_141 : f32 to vector<24x128xf32>
    %421 = arith.addf %420, %419 : vector<24x128xf32>
    %422 = arith.mulf %410, %421 : vector<24x128xf32>
    %423 = arith.truncf %422 : vector<24x128xf32> to vector<24x128xbf16>
    %cst_142 = arith.constant dense<0.000000e+00> : vector<24x32xf32>
    %424 = tpu.matmul %423, %269, %cst_142 {dimension_numbers = #tpu.dot_dimension_numbers<[1], [0], [0], [1], [0, 0, 1, 1], [], []>} : vector<24x128xbf16>, vector<128x32xbf16>, vector<24x32xf32> -> vector<24x32xf32>
    %425 = vector.broadcast %255 : vector<1x32xf32> to vector<24x32xf32>
    %426 = arith.addf %424, %425 : vector<24x32xf32>
    %427 = vector.shape_cast %426 : vector<24x32xf32> to vector<2x12x32xf32>
    %428 = arith.addf %379, %427 : vector<2x12x32xf32>
    %c0_143 = arith.constant 0 : index
    %c0_144 = arith.constant 0 : index
    %429 = vector.load %arg16[%c0_143, %c0_144] : memref<2x32xbf16, #tpu.memory_space<vmem>>, vector<2x32xbf16>
    %430 = arith.extf %429 : vector<2x32xbf16> to vector<2x32xf32>
    %431 = vector.extract_strided_slice %430 {offsets = [0, 0], sizes = [1, 32], strides = [1, 1]} : vector<2x32xf32> to vector<1x32xf32>
    %432 = vector.extract_strided_slice %430 {offsets = [1, 0], sizes = [1, 32], strides = [1, 1]} : vector<2x32xf32> to vector<1x32xf32>
    %cst_145 = arith.constant dense<0.000000e+00> : vector<2x12xf32>
    %433 = vector.multi_reduction <add>, %428, %cst_145 [2] : vector<2x12x32xf32> to vector<2x12xf32>
    %434 = vector.shape_cast %433 : vector<2x12xf32> to vector<2x12x1xf32>
    %cst_146 = arith.constant 3.200000e+01 : f32
    %435 = vector.broadcast %cst_146 : f32 to vector<2x12x1xf32>
    %436 = arith.divf %434, %435 : vector<2x12x1xf32>
    %437 = vector.broadcast %436 : vector<2x12x1xf32> to vector<2x12x32xf32>
    %438 = arith.subf %428, %437 : vector<2x12x32xf32>
    %439 = arith.mulf %438, %438 : vector<2x12x32xf32>
    %cst_147 = arith.constant dense<0.000000e+00> : vector<2x12xf32>
    %440 = vector.multi_reduction <add>, %439, %cst_147 [2] : vector<2x12x32xf32> to vector<2x12xf32>
    %441 = vector.shape_cast %440 : vector<2x12xf32> to vector<2x12x1xf32>
    %cst_148 = arith.constant 3.200000e+01 : f32
    %442 = vector.broadcast %cst_148 : f32 to vector<2x12x1xf32>
    %443 = arith.divf %441, %442 : vector<2x12x1xf32>
    %444 = vector.broadcast %436 : vector<2x12x1xf32> to vector<2x12x32xf32>
    %445 = arith.subf %428, %444 : vector<2x12x32xf32>
    %cst_149 = arith.constant 9.99999974E-6 : f32
    %446 = vector.broadcast %cst_149 : f32 to vector<2x12x1xf32>
    %447 = arith.addf %443, %446 : vector<2x12x1xf32>
    %448 = math.rsqrt %447 : vector<2x12x1xf32>
    %449 = vector.broadcast %448 : vector<2x12x1xf32> to vector<2x12x32xf32>
    %450 = arith.mulf %445, %449 : vector<2x12x32xf32>
    %451 = vector.shape_cast %431 : vector<1x32xf32> to vector<1x1x32xf32>
    %452 = vector.broadcast %451 : vector<1x1x32xf32> to vector<2x12x32xf32>
    %453 = arith.mulf %450, %452 : vector<2x12x32xf32>
    %454 = vector.shape_cast %432 : vector<1x32xf32> to vector<1x1x32xf32>
    %455 = vector.broadcast %454 : vector<1x1x32xf32> to vector<2x12x32xf32>
    %456 = arith.addf %453, %455 : vector<2x12x32xf32>
    %457 = vector.shape_cast %456 : vector<2x12x32xf32> to vector<24x32xf32>
    %458 = arith.truncf %457 : vector<24x32xf32> to vector<24x32xbf16>
    %c0_150 = arith.constant 0 : index
    %c0_151 = arith.constant 0 : index
    %459 = vector.load %arg7[%c0_150, %c0_151] : memref<32x128xbf16, #tpu.memory_space<vmem>>, vector<32x128xbf16>
    %cst_152 = arith.constant dense<0.000000e+00> : vector<24x128xf32>
    %460 = tpu.matmul %458, %459, %cst_152 {dimension_numbers = #tpu.dot_dimension_numbers<[1], [0], [0], [1], [0, 0, 1, 1], [], []>} : vector<24x32xbf16>, vector<32x128xbf16>, vector<24x128xf32> -> vector<24x128xf32>
    %461 = vector.shape_cast %460 : vector<24x128xf32> to vector<2x12x128xf32>
    %c0_153 = arith.constant 0 : index
    %c0_154 = arith.constant 0 : index
    %c0_155 = arith.constant 0 : index
    %462 = vector.load %arg17[%c0_153, %c0_154, %c0_155] : memref<2x12x128xf32, #tpu.memory_space<vmem>>, vector<2x12x128xf32>
    tpu.vector_store %arg17[%c0_153, %c0_154, %c0_155], %461 {strides = array<i32>} : memref<2x12x128xf32, #tpu.memory_space<vmem>>, vector<2x12x128xf32>,
    return
  }
}

</mosaic_0001>

<llo_original>
// kernel: clip_caption_forward.1
$region0: #{clip_caption_forward.1}
  #allocation0 [shape = 'u32[]', space=smem, size = 0x4, offset = 0x4, fixed_abs, tag = 'smem constant byte address 0x4 - core index']
  #allocation1 [shape = 'u32[144,128]{1,0:T(1,128)}', space=vmem, size = 0x12000, scoped, tag = 'internal scratch']
  %s0 = inlined_call_operand.vmem [shape: s32[16,1], index: 0, kind: input, shape index: {}]
  %s1 = inlined_call_operand.vmem [shape: bf16[2,32], index: 1, kind: input, shape index: {}]
  %s2 = inlined_call_operand.vmem [shape: bf16[32,64], index: 2, kind: input, shape index: {}]
  %s3 = inlined_call_operand.vmem [shape: bf16[1,64], index: 3, kind: input, shape index: {}]
  %s4 = inlined_call_operand.vmem [shape: bf16[4,64,32], index: 4, kind: input, shape index: {}]
  %s5 = inlined_call_operand.vmem [shape: bf16[4,1,32], index: 5, kind: input, shape index: {}]
  %s6 = inlined_call_operand.vmem [shape: bf16[128,32], index: 6, kind: input, shape index: {}]
  %s7 = inlined_call_operand.vmem [shape: bf16[32,128], index: 7, kind: input, shape index: {}]
  %s8 = inlined_call_operand.vmem [shape: bf16[12,32], index: 8, kind: input, shape index: {}]
  %s9 = inlined_call_operand.vmem [shape: bf16[2,6,32,16], index: 9, kind: input, shape index: {}]
  %s10 = inlined_call_operand.vmem [shape: bf16[2,6,16], index: 10, kind: input, shape index: {}]
  %s11 = inlined_call_operand.vmem [shape: bf16[2,2,16,32], index: 11, kind: input, shape index: {}]
  %s12 = inlined_call_operand.vmem [shape: bf16[2,32,128], index: 12, kind: input, shape index: {}]
  %s13 = inlined_call_operand.vmem [shape: bf16[2,1,128], index: 13, kind: input, shape index: {}]
  %s14 = inlined_call_operand.vmem [shape: bf16[2,128,32], index: 14, kind: input, shape index: {}]
  %s15 = inlined_call_operand.vmem [shape: bf16[2,6,32], index: 15, kind: input, shape index: {}]
  %s16 = inlined_call_operand.vmem [shape: bf16[2,32], index: 16, kind: input, shape index: {}]
  %s17 = inlined_call_operand.vmem [shape: f32[2,12,128], index: 17, kind: output, shape index: {}]
  %s18 = sld [smem:[#allocation0]]
  $region78: #{clip_caption_forward.1} parent=0
    _
  %s20 = ssub.s32 1, %s18
  %s21 = scalar_select 0, %s20, %s18
  // Predicated region
  $region2: #{clip_caption_forward.1} parent=0 // pred_check
    _
  $region3: #{clip_caption_forward.1} parent=0 // pred_check_branch
    %23 = sbr.rel (0) target = $region5
  $region4: #{clip_caption_forward.1} parent=0 // pred_region
    _
  $region5: #{clip_caption_forward.1} parent=0 // pred_fallthru
    _
  // Predicated region
  $region6: #{clip_caption_forward.1} parent=0 // pred_check
    _
  $region7: #{clip_caption_forward.1} parent=0 // pred_check_branch
    %25 = sbr.rel (0) target = $region9
  $region8: #{clip_caption_forward.1} parent=0 // pred_region
    _
  $region9: #{clip_caption_forward.1} parent=0 // pred_fallthru
    _
  // Predicated region
  $region10: #{clip_caption_forward.1} parent=0 // pred_check
    _
  $region11: #{clip_caption_forward.1} parent=0 // pred_check_branch
    %27 = sbr.rel (0) target = $region13
  $region12: #{clip_caption_forward.1} parent=0 // pred_region
    _
  $region13: #{clip_caption_forward.1} parent=0 // pred_fallthru
    _
  // Predicated region
  $region14: #{clip_caption_forward.1} parent=0 // pred_check
    _
  $region15: #{clip_caption_forward.1} parent=0 // pred_check_branch
    %29 = sbr.rel (0) target = $region17
  $region16: #{clip_caption_forward.1} parent=0 // pred_region
    _
  $region17: #{clip_caption_forward.1} parent=0 // pred_fallthru
    _
  // Predicated region
  $region18: #{clip_caption_forward.1} parent=0 // pred_check
    _
  $region19: #{clip_caption_forward.1} parent=0 // pred_check_branch
    %31 = sbr.rel (0) target = $region21
  $region20: #{clip_caption_forward.1} parent=0 // pred_region
    _
  $region21: #{clip_caption_forward.1} parent=0 // pred_fallthru
    _
  // Predicated region
  $region22: #{clip_caption_forward.1} parent=0 // pred_check
    _
  $region23: #{clip_caption_forward.1} parent=0 // pred_check_branch
    %33 = sbr.rel (0) target = $region25
  $region24: #{clip_caption_forward.1} parent=0 // pred_region
    _
  $region25: #{clip_caption_forward.1} parent=0 // pred_fallthru
    _
  // Predicated region
  $region26: #{clip_caption_forward.1} parent=0 // pred_check
    _
  $region27: #{clip_caption_forward.1} parent=0 // pred_check_branch
    %35 = sbr.rel (0) target = $region29
  $region28: #{clip_caption_forward.1} parent=0 // pred_region
    _
  $region29: #{clip_caption_forward.1} parent=0 // pred_fallthru
    _
  // Predicated region
  $region30: #{clip_caption_forward.1} parent=0 // pred_check
    _
  $region31: #{clip_caption_forward.1} parent=0 // pred_check_branch
    %37 = sbr.rel (0) target = $region33
  $region32: #{clip_caption_forward.1} parent=0 // pred_region
    _
  $region33: #{clip_caption_forward.1} parent=0 // pred_fallthru
    _
  // Predicated region
  $region34: #{clip_caption_forward.1} parent=0 // pred_check
    _
  $region35: #{clip_caption_forward.1} parent=0 // pred_check_branch
    %39 = sbr.rel (0) target = $region37
  $region36: #{clip_caption_forward.1} parent=0 // pred_region
    _
  $region37: #{clip_caption_forward.1} parent=0 // pred_fallthru
    _
  // Predicated region
  $region38: #{clip_caption_forward.1} parent=0 // pred_check
    _
  $region39: #{clip_caption_forward.1} parent=0 // pred_check_branch
    %41 = sbr.rel (0) target = $region41
  $region40: #{clip_caption_forward.1} parent=0 // pred_region
    _
  $region41: #{clip_caption_forward.1} parent=0 // pred_fallthru
    _
  // Predicated region
  $region42: #{clip_caption_forward.1} parent=0 // pred_check
    _
  $region43: #{clip_caption_forward.1} parent=0 // pred_check_branch
    %43 = sbr.rel (0) target = $region45
  $region44: #{clip_caption_forward.1} parent=0 // pred_region
    _
  $region45: #{clip_caption_forward.1} parent=0 // pred_fallthru
    _
  // Predicated region
  $region46: #{clip_caption_forward.1} parent=0 // pred_check
    _
  $region47: #{clip_caption_forward.1} parent=0 // pred_check_branch
    %45 = sbr.rel (0) target = $region49
  $region48: #{clip_caption_forward.1} parent=0 // pred_region
    _
  $region49: #{clip_caption_forward.1} parent=0 // pred_fallthru
    _
  // Predicated region
  $region50: #{clip_caption_forward.1} parent=0 // pred_check
    _
  $region51: #{clip_caption_forward.1} parent=0 // pred_check_branch
    %47 = sbr.rel (0) target = $region53
  $region52: #{clip_caption_forward.1} parent=0 // pred_region
    _
  $region53: #{clip_caption_forward.1} parent=0 // pred_fallthru
    _
  // Predicated region
  $region54: #{clip_caption_forward.1} parent=0 // pred_check
    _
  $region55: #{clip_caption_forward.1} parent=0 // pred_check_branch
    %49 = sbr.rel (0) target = $region57
  $region56: #{clip_caption_forward.1} parent=0 // pred_region
    _
  $region57: #{clip_caption_forward.1} parent=0 // pred_fallthru
    _
  // Predicated region
  $region58: #{clip_caption_forward.1} parent=0 // pred_check
    _
  $region59: #{clip_caption_forward.1} parent=0 // pred_check_branch
    %51 = sbr.rel (0) target = $region61
  $region60: #{clip_caption_forward.1} parent=0 // pred_region
    _
  $region61: #{clip_caption_forward.1} parent=0 // pred_fallthru
    _
  // Predicated region
  $region62: #{clip_caption_forward.1} parent=0 // pred_check
    _
  $region63: #{clip_caption_forward.1} parent=0 // pred_check_branch
    %53 = sbr.rel (0) target = $region65
  $region64: #{clip_caption_forward.1} parent=0 // pred_region
    _
  $region65: #{clip_caption_forward.1} parent=0 // pred_fallthru
    _
  // Predicated region
  $region66: #{clip_caption_forward.1} parent=0 // pred_check
    _
  $region67: #{clip_caption_forward.1} parent=0 // pred_check_branch
    %55 = sbr.rel (0) target = $region69
  $region68: #{clip_caption_forward.1} parent=0 // pred_region
    _
  $region69: #{clip_caption_forward.1} parent=0 // pred_fallthru
    _
  %v57 = vld [vmem:[%s1] sm:$0x1]
  %v58 = vld [vmem:[%s2] sm:$0xf]
  %v59 = vld [vmem:[%s2 + $0x4] sm:$0xf]
  %v60 = vld [vmem:[%s2 + $0x8] sm:$0xf]
  %v61 = vld [vmem:[%s2 + $0xc] sm:$0xf]
  %v62 = vld [vmem:[%s3] sm:$0x1]
  %v63 = vunpack.c.l.bf16 %v62
  %v64 = vlaneseq
  %v65 = vshrl.u32 %v64, 7
  %v66 = vsub.s32 0, %v65
  %v67 = vrot.slane %v63, %v66
  %v72 = vunpack.c.l.b16 %v58
  %v73 = vunpack.c.l.b16 %v59
  %v74 = vunpack.c.l.b16 %v60
  %v75 = vunpack.c.l.b16 %v61
  %v76 = vpack.c.b16 %v73, %v72
  %v77 = vpack.c.b16 %v75, %v74
  %vm80 = vcmask 261120
  %v82 = vsel %vm80, %v57, 0
  %84 = vmatprep.subr.bf16.mxu0 0
  %85 = vmatpush1.bf16.msra.mxu0 %v76
  %86 = vmatprep.subr.bf16.mxu0 0
  %87 = vmatpush1.bf16.msra.mxu0 %v77
  %88 = vmatprep.subr.bf16.mxu0 0
  %89 = vmatpush1.bf16.msra.mxu0 0
  %90 = vmatprep.subr.bf16.mxu0 0
  %91 = vmatpush1.bf16.msra.mxu0 0
  %92 = vmatprep.subr.bf16.mxu0 0
  %93 = vmatpush1.bf16.msra.mxu0 0
  %94 = vmatprep.subr.bf16.mxu0 0
  %95 = vmatpush1.bf16.msra.mxu0 0
  %96 = vmatprep.subr.bf16.mxu0 0
  %97 = vmatpush1.bf16.msra.mxu0 0
  %98 = vmatprep.subr.bf16.mxu0 0
  %99 = vmatpush1.bf16.msra.mxu0 0
  %100 = vmatprep.subr.bf16.mxu0 0
  %101 = vmatpush1.bf16.msra.mxu0 0
  %102 = vmatprep.subr.bf16.mxu0 0
  %103 = vmatpush1.bf16.msra.mxu0 0
  %104 = vmatprep.subr.bf16.mxu0 0
  %105 = vmatpush1.bf16.msra.mxu0 0
  %106 = vmatprep.subr.bf16.mxu0 0
  %107 = vmatpush1.bf16.msra.mxu0 0
  %108 = vmatprep.subr.bf16.mxu0 0
  %109 = vmatpush1.bf16.msra.mxu0 0
  %110 = vmatprep.subr.bf16.mxu0 0
  %111 = vmatpush1.bf16.msra.mxu0 0
  %112 = vmatprep.subr.bf16.mxu0 0
  %113 = vmatpush1.bf16.msra.mxu0 0
  %114 = vmatprep.subr.bf16.mxu0 0
  %115 = vmatpush1.bf16.msra.mxu0 0
  %116 = vmatprep.mubr.bf16.mxu0 0
  %117 = vmatmul.mubr.bf16.gmra.mrb[0].mxu0 %v82
  %v118 = vpop.f32.mrb[0].mxu0
  %v119 = vadd.f32 %v67, %v118
  %v120 = vpop.f32.mrb[0].mxu0
  %v121 = vpop.f32.mrb[0].mxu0
  %v122 = vpop.f32.mrb[0].mxu0
  %123 = vdwg.mxu0
  %v124 = vtanh.pop %v119
  %v125 = vpack.c.bf16 %v124, %v124
  %v126 = vld [vmem:[%s4] sm:$0xf]
  %v127 = vld [vmem:[%s4 + $0x4] sm:$0xf]
  %v128 = vld [vmem:[%s4 + $0x8] sm:$0xf]
  %v129 = vld [vmem:[%s4 + $0xc] sm:$0xf]
  %v130 = vld [vmem:[%s4 + $0x10] sm:$0xf]
  %v131 = vld [vmem:[%s4 + $0x14] sm:$0xf]
  %v132 = vld [vmem:[%s4 + $0x18] sm:$0xf]
  %v133 = vld [vmem:[%s4 + $0x1c] sm:$0xf]
  %v134 = vld [vmem:[%s5] sm:$0x1]
  %v135 = vunpack.c.l.bf16 %v134
  %v136 = vlaneseq
  %v137 = vshrl.u32 %v136, 7
  %v138 = vsub.s32 0, %v137
  %v139 = vrot.slane %v135, %v138
  %v148 = vunpack.c.l.b16 %v126
  %v149 = vunpack.c.l.b16 %v127
  %v150 = vunpack.c.l.b16 %v128
  %v151 = vunpack.c.l.b16 %v129
  %v152 = vunpack.c.l.b16 %v130
  %v153 = vunpack.c.l.b16 %v131
  %v154 = vunpack.c.l.b16 %v132
  %v155 = vunpack.c.l.b16 %v133
  %v156 = vpack.c.b16 %v149, %v148
  %v157 = vpack.c.b16 %v151, %v150
  %v158 = vpack.c.b16 %v153, %v152
  %v159 = vpack.c.b16 %v155, %v154
  %vm164 = vcmask 523264
  %v166 = vsel %vm164, %v125, 0
  %168 = vmatprep.subr.bf16.mxu0 0
  %169 = vmatpush1.bf16.msra.mxu0 %v156
  %170 = vmatprep.subr.bf16.mxu0 0
  %171 = vmatpush1.bf16.msra.mxu0 %v157
  %172 = vmatprep.subr.bf16.mxu0 0
  %173 = vmatpush1.bf16.msra.mxu0 %v158
  %174 = vmatprep.subr.bf16.mxu0 0
  %175 = vmatpush1.bf16.msra.mxu0 %v159
  %176 = vmatprep.subr.bf16.mxu0 0
  %177 = vmatpush1.bf16.msra.mxu0 0
  %178 = vmatprep.subr.bf16.mxu0 0
  %179 = vmatpush1.bf16.msra.mxu0 0
  %180 = vmatprep.subr.bf16.mxu0 0
  %181 = vmatpush1.bf16.msra.mxu0 0
  %182 = vmatprep.subr.bf16.mxu0 0
  %183 = vmatpush1.bf16.msra.mxu0 0
  %184 = vmatprep.subr.bf16.mxu0 0
  %185 = vmatpush1.bf16.msra.mxu0 0
  %186 = vmatprep.subr.bf16.mxu0 0
  %187 = vmatpush1.bf16.msra.mxu0 0
  %188 = vmatprep.subr.bf16.mxu0 0
  %189 = vmatpush1.bf16.msra.mxu0 0
  %190 = vmatprep.subr.bf16.mxu0 0
  %191 = vmatpush1.bf16.msra.mxu0 0
  %192 = vmatprep.subr.bf16.mxu0 0
  %193 = vmatpush1.bf16.msra.mxu0 0
  %194 = vmatprep.subr.bf16.mxu0 0
  %195 = vmatpush1.bf16.msra.mxu0 0
  %196 = vmatprep.subr.bf16.mxu0 0
  %197 = vmatpush1.bf16.msra.mxu0 0
  %198 = vmatprep.subr.bf16.mxu0 0
  %199 = vmatpush1.bf16.msra.mxu0 0
  %200 = vmatprep.mubr.bf16.mxu0 0
  %201 = vmatmul.mubr.bf16.gmra.mrb[0].mxu0 %v166
  %v202 = vpop.f32.mrb[0].mxu0
  %v203 = vadd.f32 %v139, %v202
  %v204 = vpop.f32.mrb[0].mxu0
  %v205 = vpop.f32.mrb[0].mxu0
  %v206 = vpop.f32.mrb[0].mxu0
  %207 = vdwg.mxu0
  %v210 = vunpack.c.l.s4 1966171168
  %v211 = vunpack.c.0.s8 %v210
  %v212 = vlaneseq
  %v213 = vshrl.u32 %v212, 7
  %v214 = vsub.s32 %v211, %v213
  %v215 = vrot.slane %v203, %v214
  %v216 = vcombine.high %v215, %v215
  %v218 = vunpack.c.l.s4 1966171168
  %v219 = vunpack.c.0.s8 %v218
  %v220 = vlaneseq
  %v221 = vshrl.u32 %v220, 7
  %v222 = vsub.s32 %v219, %v221
  %v223 = vrot.slane %v215, %v222
  %v225 = vunpack.c.l.s4 1966171168
  %v226 = vunpack.c.0.s8 %v225
  %v227 = vlaneseq
  %v228 = vshrl.u32 %v227, 7
  %v229 = vsub.s32 %v226, %v228
  %v230 = vrot.slane %v216, %v229
  %s233 = scalar_lea.vmem %s4, 32
  %v234 = vld [vmem:[%s233] sm:$0xf]
  %v235 = vld [vmem:[%s233 + $0x4] sm:$0xf]
  %v236 = vld [vmem:[%s233 + $0x8] sm:$0xf]
  %v237 = vld [vmem:[%s233 + $0xc] sm:$0xf]
  %v238 = vld [vmem:[%s233 + $0x10] sm:$0xf]
  %v239 = vld [vmem:[%s233 + $0x14] sm:$0xf]
  %v240 = vld [vmem:[%s233 + $0x18] sm:$0xf]
  %v241 = vld [vmem:[%s233 + $0x1c] sm:$0xf]
  %s242 = scalar_lea.vmem %s5, 1
  %v243 = vld [vmem:[%s242] sm:$0x1]
  %v244 = vunpack.c.l.bf16 %v243
  %v245 = vlaneseq
  %v246 = vshrl.u32 %v245, 7
  %v247 = vsub.s32 0, %v246
  %v248 = vrot.slane %v244, %v247
  %v257 = vunpack.c.l.b16 %v234
  %v258 = vunpack.c.l.b16 %v235
  %v259 = vunpack.c.l.b16 %v236
  %v260 = vunpack.c.l.b16 %v237
  %v261 = vunpack.c.l.b16 %v238
  %v262 = vunpack.c.l.b16 %v239
  %v263 = vunpack.c.l.b16 %v240
  %v264 = vunpack.c.l.b16 %v241
  %v265 = vpack.c.b16 %v258, %v257
  %v266 = vpack.c.b16 %v260, %v259
  %v267 = vpack.c.b16 %v262, %v261
  %v268 = vpack.c.b16 %v264, %v263
  %273 = vmatprep.subr.bf16.mxu0 0
  %274 = vmatpush1.bf16.msra.mxu0 %v265
  %275 = vmatprep.subr.bf16.mxu0 0
  %276 = vmatpush1.bf16.msra.mxu0 %v266
  %277 = vmatprep.subr.bf16.mxu0 0
  %278 = vmatpush1.bf16.msra.mxu0 %v267
  %279 = vmatprep.subr.bf16.mxu0 0
  %280 = vmatpush1.bf16.msra.mxu0 %v268
  %281 = vmatprep.subr.bf16.mxu0 0
  %282 = vmatpush1.bf16.msra.mxu0 0
  %283 = vmatprep.subr.bf16.mxu0 0
  %284 = vmatpush1.bf16.msra.mxu0 0
  %285 = vmatprep.subr.bf16.mxu0 0
  %286 = vmatpush1.bf16.msra.mxu0 0
  %287 = vmatprep.subr.bf16.mxu0 0
  %288 = vmatpush1.bf16.msra.mxu0 0
  %289 = vmatprep.subr.bf16.mxu0 0
  %290 = vmatpush1.bf16.msra.mxu0 0
  %291 = vmatprep.subr.bf16.mxu0 0
  %292 = vmatpush1.bf16.msra.mxu0 0
  %293 = vmatprep.subr.bf16.mxu0 0
  %294 = vmatpush1.bf16.msra.mxu0 0
  %295 = vmatprep.subr.bf16.mxu0 0
  %296 = vmatpush1.bf16.msra.mxu0 0
  %297 = vmatprep.subr.bf16.mxu0 0
  %298 = vmatpush1.bf16.msra.mxu0 0
  %299 = vmatprep.subr.bf16.mxu0 0
  %300 = vmatpush1.bf16.msra.mxu0 0
  %301 = vmatprep.subr.bf16.mxu0 0
  %302 = vmatpush1.bf16.msra.mxu0 0
  %303 = vmatprep.subr.bf16.mxu0 0
  %304 = vmatpush1.bf16.msra.mxu0 0
  %305 = vmatprep.mubr.bf16.mxu0 0
  %306 = vmatmul.mubr.bf16.gmra.mrb[0].mxu0 %v166
  %v307 = vpop.f32.mrb[0].mxu0
  %v308 = vadd.f32 %v248, %v307
  %v309 = vpop.f32.mrb[0].mxu0
  %v310 = vpop.f32.mrb[0].mxu0
  %v311 = vpop.f32.mrb[0].mxu0
  %312 = vdwg.mxu0
  %v315 = vunpack.c.l.s4 1966171168
  %v316 = vunpack.c.0.s8 %v315
  %v317 = vlaneseq
  %v318 = vshrl.u32 %v317, 7
  %v319 = vsub.s32 %v316, %v318
  %v320 = vrot.slane %v308, %v319
  %v321 = vcombine.high %v320, %v320
  %v323 = vunpack.c.l.s4 1966171168
  %v324 = vunpack.c.0.s8 %v323
  %v325 = vlaneseq
  %v326 = vshrl.u32 %v325, 7
  %v327 = vsub.s32 %v324, %v326
  %v328 = vrot.slane %v320, %v327
  %v330 = vunpack.c.l.s4 1966171168
  %v331 = vunpack.c.0.s8 %v330
  %v332 = vlaneseq
  %v333 = vshrl.u32 %v332, 7
  %v334 = vsub.s32 %v331, %v333
  %v335 = vrot.slane %v321, %v334
  %s336 = scalar_lea.vmem %s4, 64
  %v337 = vld [vmem:[%s336] sm:$0xf]
  %v338 = vld [vmem:[%s336 + $0x4] sm:$0xf]
  %v339 = vld [vmem:[%s336 + $0x8] sm:$0xf]
  %v340 = vld [vmem:[%s336 + $0xc] sm:$0xf]
  %v341 = vld [vmem:[%s336 + $0x10] sm:$0xf]
  %v342 = vld [vmem:[%s336 + $0x14] sm:$0xf]
  %v343 = vld [vmem:[%s336 + $0x18] sm:$0xf]
  %v344 = vld [vmem:[%s336 + $0x1c] sm:$0xf]
  %s345 = scalar_lea.vmem %s5, 2
  %v346 = vld [vmem:[%s345] sm:$0x1]
  %v347 = vunpack.c.l.bf16 %v346
  %v348 = vlaneseq
  %v349 = vshrl.u32 %v348, 7
  %v350 = vsub.s32 0, %v349
  %v351 = vrot.slane %v347, %v350
  %v360 = vunpack.c.l.b16 %v337
  %v361 = vunpack.c.l.b16 %v338
  %v362 = vunpack.c.l.b16 %v339
  %v363 = vunpack.c.l.b16 %v340
  %v364 = vunpack.c.l.b16 %v341
  %v365 = vunpack.c.l.b16 %v342
  %v366 = vunpack.c.l.b16 %v343
  %v367 = vunpack.c.l.b16 %v344
  %v368 = vpack.c.b16 %v361, %v360
  %v369 = vpack.c.b16 %v363, %v362
  %v370 = vpack.c.b16 %v365, %v364
  %v371 = vpack.c.b16 %v367, %v366
  %376 = vmatprep.subr.bf16.mxu0 0
  %377 = vmatpush1.bf16.msra.mxu0 %v368
  %378 = vmatprep.subr.bf16.mxu0 0
  %379 = vmatpush1.bf16.msra.mxu0 %v369
  %380 = vmatprep.subr.bf16.mxu0 0
  %381 = vmatpush1.bf16.msra.mxu0 %v370
  %382 = vmatprep.subr.bf16.mxu0 0
  %383 = vmatpush1.bf16.msra.mxu0 %v371
  %384 = vmatprep.subr.bf16.mxu0 0
  %385 = vmatpush1.bf16.msra.mxu0 0
  %386 = vmatprep.subr.bf16.mxu0 0
  %387 = vmatpush1.bf16.msra.mxu0 0
  %388 = vmatprep.subr.bf16.mxu0 0
  %389 = vmatpush1.bf16.msra.mxu0 0
  %390 = vmatprep.subr.bf16.mxu0 0
  %391 = vmatpush1.bf16.msra.mxu0 0
  %392 = vmatprep.subr.bf16.mxu0 0
  %393 = vmatpush1.bf16.msra.mxu0 0
  %394 = vmatprep.subr.bf16.mxu0 0
  %395 = vmatpush1.bf16.msra.mxu0 0
  %396 = vmatprep.subr.bf16.mxu0 0
  %397 = vmatpush1.bf16.msra.mxu0 0
  %398 = vmatprep.subr.bf16.mxu0 0
  %399 = vmatpush1.bf16.msra.mxu0 0
  %400 = vmatprep.subr.bf16.mxu0 0
  %401 = vmatpush1.bf16.msra.mxu0 0
  %402 = vmatprep.subr.bf16.mxu0 0
  %403 = vmatpush1.bf16.msra.mxu0 0
  %404 = vmatprep.subr.bf16.mxu0 0
  %405 = vmatpush1.bf16.msra.mxu0 0
  %406 = vmatprep.subr.bf16.mxu0 0
  %407 = vmatpush1.bf16.msra.mxu0 0
  %408 = vmatprep.mubr.bf16.mxu0 0
  %409 = vmatmul.mubr.bf16.gmra.mrb[0].mxu0 %v166
  %v410 = vpop.f32.mrb[0].mxu0
  %v411 = vadd.f32 %v351, %v410
  %v412 = vpop.f32.mrb[0].mxu0
  %v413 = vpop.f32.mrb[0].mxu0
  %v414 = vpop.f32.mrb[0].mxu0
  %415 = vdwg.mxu0
  %v418 = vunpack.c.l.s4 1966171168
  %v419 = vunpack.c.0.s8 %v418
  %v420 = vlaneseq
  %v421 = vshrl.u32 %v420, 7
  %v422 = vsub.s32 %v419, %v421
  %v423 = vrot.slane %v411, %v422
  %v424 = vcombine.high %v423, %v423
  %v426 = vunpack.c.l.s4 1966171168
  %v427 = vunpack.c.0.s8 %v426
  %v428 = vlaneseq
  %v429 = vshrl.u32 %v428, 7
  %v430 = vsub.s32 %v427, %v429
  %v431 = vrot.slane %v423, %v430
  %v433 = vunpack.c.l.s4 1966171168
  %v434 = vunpack.c.0.s8 %v433
  %v435 = vlaneseq
  %v436 = vshrl.u32 %v435, 7
  %v437 = vsub.s32 %v434, %v436
  %v438 = vrot.slane %v424, %v437
  %s439 = scalar_lea.vmem %s4, 96
  %v440 = vld [vmem:[%s439] sm:$0xf]
  %v441 = vld [vmem:[%s439 + $0x4] sm:$0xf]
  %v442 = vld [vmem:[%s439 + $0x8] sm:$0xf]
  %v443 = vld [vmem:[%s439 + $0xc] sm:$0xf]
  %v444 = vld [vmem:[%s439 + $0x10] sm:$0xf]
  %v445 = vld [vmem:[%s439 + $0x14] sm:$0xf]
  %v446 = vld [vmem:[%s439 + $0x18] sm:$0xf]
  %v447 = vld [vmem:[%s439 + $0x1c] sm:$0xf]
  %s448 = scalar_lea.vmem %s5, 3
  %v449 = vld [vmem:[%s448] sm:$0x1]
  %v450 = vunpack.c.l.bf16 %v449
  %v451 = vlaneseq
  %v452 = vshrl.u32 %v451, 7
  %v453 = vsub.s32 0, %v452
  %v454 = vrot.slane %v450, %v453
  %v463 = vunpack.c.l.b16 %v440
  %v464 = vunpack.c.l.b16 %v441
  %v465 = vunpack.c.l.b16 %v442
  %v466 = vunpack.c.l.b16 %v443
  %v467 = vunpack.c.l.b16 %v444
  %v468 = vunpack.c.l.b16 %v445
  %v469 = vunpack.c.l.b16 %v446
  %v470 = vunpack.c.l.b16 %v447
  %v471 = vpack.c.b16 %v464, %v463
  %v472 = vpack.c.b16 %v466, %v465
  %v473 = vpack.c.b16 %v468, %v467
  %v474 = vpack.c.b16 %v470, %v469
  %479 = vmatprep.subr.bf16.mxu0 0
  %480 = vmatpush1.bf16.msra.mxu0 %v471
  %481 = vmatprep.subr.bf16.mxu0 0
  %482 = vmatpush1.bf16.msra.mxu0 %v472
  %483 = vmatprep.subr.bf16.mxu0 0
  %484 = vmatpush1.bf16.msra.mxu0 %v473
  %485 = vmatprep.subr.bf16.mxu0 0
  %486 = vmatpush1.bf16.msra.mxu0 %v474
  %487 = vmatprep.subr.bf16.mxu0 0
  %488 = vmatpush1.bf16.msra.mxu0 0
  %489 = vmatprep.subr.bf16.mxu0 0
  %490 = vmatpush1.bf16.msra.mxu0 0
  %491 = vmatprep.subr.bf16.mxu0 0
  %492 = vmatpush1.bf16.msra.mxu0 0
  %493 = vmatprep.subr.bf16.mxu0 0
  %494 = vmatpush1.bf16.msra.mxu0 0
  %495 = vmatprep.subr.bf16.mxu0 0
  %496 = vmatpush1.bf16.msra.mxu0 0
  %497 = vmatprep.subr.bf16.mxu0 0
  %498 = vmatpush1.bf16.msra.mxu0 0
  %499 = vmatprep.subr.bf16.mxu0 0
  %500 = vmatpush1.bf16.msra.mxu0 0
  %501 = vmatprep.subr.bf16.mxu0 0
  %502 = vmatpush1.bf16.msra.mxu0 0
  %503 = vmatprep.subr.bf16.mxu0 0
  %504 = vmatpush1.bf16.msra.mxu0 0
  %505 = vmatprep.subr.bf16.mxu0 0
  %506 = vmatpush1.bf16.msra.mxu0 0
  %507 = vmatprep.subr.bf16.mxu0 0
  %508 = vmatpush1.bf16.msra.mxu0 0
  %509 = vmatprep.subr.bf16.mxu0 0
  %510 = vmatpush1.bf16.msra.mxu0 0
  %511 = vmatprep.mubr.bf16.mxu0 0
  %512 = vmatmul.mubr.bf16.gmra.mrb[0].mxu0 %v166
  %v513 = vpop.f32.mrb[0].mxu0
  %v514 = vadd.f32 %v454, %v513
  %v515 = vpop.f32.mrb[0].mxu0
  %v516 = vpop.f32.mrb[0].mxu0
  %v517 = vpop.f32.mrb[0].mxu0
  %518 = vdwg.mxu0
  %v521 = vunpack.c.l.s4 1966171168
  %v522 = vunpack.c.0.s8 %v521
  %v523 = vlaneseq
  %v524 = vshrl.u32 %v523, 7
  %v525 = vsub.s32 %v522, %v524
  %v526 = vrot.slane %v514, %v525
  %v527 = vcombine.high %v526, %v526
  %v529 = vunpack.c.l.s4 1966171168
  %v530 = vunpack.c.0.s8 %v529
  %v531 = vlaneseq
  %v532 = vshrl.u32 %v531, 7
  %v533 = vsub.s32 %v530, %v532
  %v534 = vrot.slane %v526, %v533
  %v536 = vunpack.c.l.s4 1966171168
  %v537 = vunpack.c.0.s8 %v536
  %v538 = vlaneseq
  %v539 = vshrl.u32 %v538, 7
  %v540 = vsub.s32 %v537, %v539
  %v541 = vrot.slane %v527, %v540
  %v542 = vlaneseq
  %v543 = vand.u32 %v542, 127
  %v544 = vld [vmem:[%s0] sm:$0xff]
  %v545 = vld [vmem:[%s0 + $0x8] sm:$0xff]
  %546 = vset.pattern.permute.xlu0 0
  %547 = vperm.xlu0 %546, %v544
  %v548 = vpop.permute.xlu0 %547
  %549 = vset.pattern.permute.xlu0 0
  %550 = vperm.xlu0 %549, %v545
  %v551 = vpop.permute.xlu0 %550
  %vm552 = vcmp.eq.s32.totalorder %v548, %v543
  %vm553 = vcmp.eq.s32.totalorder %v551, %v543
  %v554 = vsel %vm552, 1, 0
  %v555 = vsel %vm553, 1, 0
  %v556 = vcvt.s32.f32 %v554
  %v557 = vcvt.s32.f32 %v555
  %v558 = vpack.c.bf16 %v557, %v556
  %v559 = vld [vmem:[%s6] sm:$0xf]
  %v560 = vld [vmem:[%s6 + $0x4] sm:$0xf]
  %v561 = vld [vmem:[%s6 + $0x8] sm:$0xf]
  %v562 = vld [vmem:[%s6 + $0xc] sm:$0xf]
  %v563 = vld [vmem:[%s6 + $0x10] sm:$0xf]
  %v564 = vld [vmem:[%s6 + $0x14] sm:$0xf]
  %v565 = vld [vmem:[%s6 + $0x18] sm:$0xf]
  %v566 = vld [vmem:[%s6 + $0x1c] sm:$0xf]
  %v567 = vld [vmem:[%s6 + $0x20] sm:$0xf]
  %v568 = vld [vmem:[%s6 + $0x24] sm:$0xf]
  %v569 = vld [vmem:[%s6 + $0x28] sm:$0xf]
  %v570 = vld [vmem:[%s6 + $0x2c] sm:$0xf]
  %v571 = vld [vmem:[%s6 + $0x30] sm:$0xf]
  %v572 = vld [vmem:[%s6 + $0x34] sm:$0xf]
  %v573 = vld [vmem:[%s6 + $0x38] sm:$0xf]
  %v574 = vld [vmem:[%s6 + $0x3c] sm:$0xf]
  %v591 = vunpack.c.l.b16 %v559
  %v592 = vunpack.c.l.b16 %v560
  %v593 = vunpack.c.l.b16 %v561
  %v594 = vunpack.c.l.b16 %v562
  %v595 = vunpack.c.l.b16 %v563
  %v596 = vunpack.c.l.b16 %v564
  %v597 = vunpack.c.l.b16 %v565
  %v598 = vunpack.c.l.b16 %v566
  %v599 = vunpack.c.l.b16 %v567
  %v600 = vunpack.c.l.b16 %v568
  %v601 = vunpack.c.l.b16 %v569
  %v602 = vunpack.c.l.b16 %v570
  %v603 = vunpack.c.l.b16 %v571
  %v604 = vunpack.c.l.b16 %v572
  %v605 = vunpack.c.l.b16 %v573
  %v606 = vunpack.c.l.b16 %v574
  %v607 = vpack.c.b16 %v592, %v591
  %v608 = vpack.c.b16 %v594, %v593
  %v609 = vpack.c.b16 %v596, %v595
  %v610 = vpack.c.b16 %v598, %v597
  %v611 = vpack.c.b16 %v600, %v599
  %v612 = vpack.c.b16 %v602, %v601
  %v613 = vpack.c.b16 %v604, %v603
  %v614 = vpack.c.b16 %v606, %v605
  %623 = vmatprep.subr.bf16.mxu0 0
  %624 = vmatpush1.bf16.msra.mxu0 %v607
  %625 = vmatprep.subr.bf16.mxu0 0
  %626 = vmatpush1.bf16.msra.mxu0 %v608
  %627 = vmatprep.subr.bf16.mxu0 0
  %628 = vmatpush1.bf16.msra.mxu0 %v609
  %629 = vmatprep.subr.bf16.mxu0 0
  %630 = vmatpush1.bf16.msra.mxu0 %v610
  %631 = vmatprep.subr.bf16.mxu0 0
  %632 = vmatpush1.bf16.msra.mxu0 %v611
  %633 = vmatprep.subr.bf16.mxu0 0
  %634 = vmatpush1.bf16.msra.mxu0 %v612
  %635 = vmatprep.subr.bf16.mxu0 0
  %636 = vmatpush1.bf16.msra.mxu0 %v613
  %637 = vmatprep.subr.bf16.mxu0 0
  %638 = vmatpush1.bf16.msra.mxu0 %v614
  %639 = vmatprep.subr.bf16.mxu0 0
  %640 = vmatpush1.bf16.msra.mxu0 0
  %641 = vmatprep.subr.bf16.mxu0 0
  %642 = vmatpush1.bf16.msra.mxu0 0
  %643 = vmatprep.subr.bf16.mxu0 0
  %644 = vmatpush1.bf16.msra.mxu0 0
  %645 = vmatprep.subr.bf16.mxu0 0
  %646 = vmatpush1.bf16.msra.mxu0 0
  %647 = vmatprep.subr.bf16.mxu0 0
  %648 = vmatpush1.bf16.msra.mxu0 0
  %649 = vmatprep.subr.bf16.mxu0 0
  %650 = vmatpush1.bf16.msra.mxu0 0
  %651 = vmatprep.subr.bf16.mxu0 0
  %652 = vmatpush1.bf16.msra.mxu0 0
  %653 = vmatprep.subr.bf16.mxu0 0
  %654 = vmatpush1.bf16.msra.mxu0 0
  %655 = vmatprep.mubr.bf16.mxu0 0
  %656 = vmatmul.mubr.bf16.gmra.mrb[0].mxu0 %v558
  %v657 = vpop.f32.mrb[0].mxu0
  %v658 = vadd.f32 0.0, %v657
  %v659 = vpop.f32.mrb[0].mxu0
  %v660 = vpop.f32.mrb[0].mxu0
  %v661 = vadd.f32 0.0, %v660
  %v662 = vpop.f32.mrb[0].mxu0
  %663 = vdwg.mxu0
  %v664 = vlaneseq
  %v665 = vshrl.u32 %v664, 7
  %v666 = vsub.s32 0, %v665
  %v667 = vrot.slane %v328, %v666
  %v668 = vlaneseq
  %v669 = vshrl.u32 %v668, 7
  %v670 = vsub.s32 0, %v669
  %v671 = vrot.slane %v335, %v670
  %v674 = vlaneseq
  %v675 = vshrl.u32 %v674, 7
  %v676 = vsub.s32 0, %v675
  %v677 = vrot.slane %v431, %v676
  %v678 = vlaneseq
  %v679 = vshrl.u32 %v678, 7
  %v680 = vsub.s32 0, %v679
  %v681 = vrot.slane %v438, %v680
  %v684 = vlaneseq
  %v685 = vshrl.u32 %v684, 7
  %v686 = vsub.s32 0, %v685
  %v687 = vrot.slane %v534, %v686
  %v688 = vlaneseq
  %v689 = vshrl.u32 %v688, 7
  %v690 = vsub.s32 0, %v689
  %v691 = vrot.slane %v541, %v690
  %v696 = vrot.slane %v658, 4
  %v697 = vrot.slane %v661, 4
  %vm700 = vcmask 1040384
  %v701 = vsel %vm700, %v223, %v667
  %v702 = vsel %vm700, %v230, %v671
  %vm703 = vcmask 1041408
  %v704 = vsel %vm703, %v701, %v677
  %v705 = vsel %vm703, %v702, %v681
  %vm706 = vcmask 1042432
  %v707 = vsel %vm706, %v704, %v687
  %v708 = vsel %vm706, %v705, %v691
  %vm709 = vcmask 1043456
  %v710 = vsel %vm709, %v707, %v696
  %v711 = vsel %vm709, %v708, %v697
  %v712 = vld [vmem:[%s8] sm:$0xf]
  %v713 = vld [vmem:[%s8 + $0x4] sm:$0x3]
  %v714 = vunpack.c.l.bf16 %v712
  %v715 = vunpack.c.l.bf16 %v713
  %v716 = vadd.f32 %v710, %v714
  %v717 = vadd.f32 %v696, %v715
  %v718 = vadd.f32 %v711, %v714
  %v719 = vadd.f32 %v697, %v715
  %v720 = vlaneseq
  %v721 = vshrl.u32 %v720, 7
  %v722 = vadd.s32 %v721, 8
  %vm723 = vcmp.le.s32.totalorder %v543, %v721
  %vm724 = vcmp.le.s32.totalorder %v543, %v722
  %v725 = vld [vmem:[%s15] sm:$0x7]
  %v726 = vunpack.c.l.bf16 %v725
  %v727 = vld [vmem:[%s9] sm:$0xf]
  %v728 = vld [vmem:[%s9 + $0x4] sm:$0xf]
  %v729 = vld [vmem:[%s9 + $0x8] sm:$0xf]
  %v730 = vld [vmem:[%s9 + $0xc] sm:$0xf]
  %v731 = vld [vmem:[%s9 + $0x10] sm:$0xf]
  %v732 = vld [vmem:[%s9 + $0x14] sm:$0xf]
  %v733 = vld [vmem:[%s9 + $0x18] sm:$0xf]
  %v734 = vld [vmem:[%s9 + $0x1c] sm:$0xf]
  %v735 = vld [vmem:[%s9 + $0x20] sm:$0xf]
  %v736 = vld [vmem:[%s9 + $0x24] sm:$0xf]
  %v737 = vld [vmem:[%s9 + $0x28] sm:$0xf]
  %v738 = vld [vmem:[%s9 + $0x2c] sm:$0xf]
  %v739 = vld [vmem:[%s9 + $0x30] sm:$0xf]
  %v740 = vld [vmem:[%s9 + $0x34] sm:$0xf]
  %v741 = vld [vmem:[%s9 + $0x38] sm:$0xf]
  %v742 = vld [vmem:[%s9 + $0x3c] sm:$0xf]
  %v743 = vld [vmem:[%s9 + $0x40] sm:$0xf]
  %v744 = vld [vmem:[%s9 + $0x44] sm:$0xf]
  %v745 = vld [vmem:[%s9 + $0x48] sm:$0xf]
  %v746 = vld [vmem:[%s9 + $0x4c] sm:$0xf]
  %v747 = vld [vmem:[%s9 + $0x50] sm:$0xf]
  %v748 = vld [vmem:[%s9 + $0x54] sm:$0xf]
  %v749 = vld [vmem:[%s9 + $0x58] sm:$0xf]
  %v750 = vld [vmem:[%s9 + $0x5c] sm:$0xf]
  %v751 = vld [vmem:[%s10] sm:$0x7]
  %v752 = vunpack.c.l.bf16 %v751
  %v753 = vld [vmem:[%s11] sm:$0xf]
  %v754 = vld [vmem:[%s11 + $0x4] sm:$0xf]
  %v755 = vld [vmem:[%s11 + $0x8] sm:$0xf]
  %v756 = vld [vmem:[%s11 + $0xc] sm:$0xf]
  %v757 = vld [vmem:[%s12] sm:$0xf]
  %v758 = vld [vmem:[%s12 + $0x4] sm:$0xf]
  %v759 = vld [vmem:[%s12 + $0x8] sm:$0xf]
  %v760 = vld [vmem:[%s12 + $0xc] sm:$0xf]
  %v761 = vld [vmem:[%s13] sm:$0x1]
  %v762 = vunpack.c.l.bf16 %v761
  %v763 = vld [vmem:[%s14] sm:$0xf]
  %v764 = vld [vmem:[%s14 + $0x4] sm:$0xf]
  %v765 = vld [vmem:[%s14 + $0x8] sm:$0xf]
  %v766 = vld [vmem:[%s14 + $0xc] sm:$0xf]
  %v767 = vld [vmem:[%s14 + $0x10] sm:$0xf]
  %v768 = vld [vmem:[%s14 + $0x14] sm:$0xf]
  %v769 = vld [vmem:[%s14 + $0x18] sm:$0xf]
  %v770 = vld [vmem:[%s14 + $0x1c] sm:$0xf]
  %v771 = vld [vmem:[%s14 + $0x20] sm:$0xf]
  %v772 = vld [vmem:[%s14 + $0x24] sm:$0xf]
  %v773 = vld [vmem:[%s14 + $0x28] sm:$0xf]
  %v774 = vld [vmem:[%s14 + $0x2c] sm:$0xf]
  %v775 = vld [vmem:[%s14 + $0x30] sm:$0xf]
  %v776 = vld [vmem:[%s14 + $0x34] sm:$0xf]
  %v777 = vld [vmem:[%s14 + $0x38] sm:$0xf]
  %v778 = vld [vmem:[%s14 + $0x3c] sm:$0xf]
  %v779 = vsel %vm80, %v716, 0.0
  %780 = vadd.xlane.f32.xlu0 %v779
  %v781 = vpop.xlane.xlu0 %780
  %vm782 = vcmask 257024
  %v783 = vsel %vm782, %v717, 0.0
  %784 = vadd.xlane.f32.xlu0 %v783
  %v785 = vpop.xlane.xlu0 %784
  %v786 = vsel %vm80, %v718, 0.0
  %787 = vadd.xlane.f32.xlu0 %v786
  %v788 = vpop.xlane.xlu0 %787
  %v789 = vsel %vm782, %v719, 0.0
  %790 = vadd.xlane.f32.xlu0 %v789
  %v791 = vpop.xlane.xlu0 %790
  %v792 = vrcp.pop 32.0
  %v793 = vmul.f32 %v781, %v792
  %v794 = vmul.f32 %v785, %v792
  %v795 = vmul.f32 %v788, %v792
  %v796 = vmul.f32 %v791, %v792
  %v797 = vsub.f32 %v716, %v793
  %v798 = vsub.f32 %v717, %v794
  %v799 = vsub.f32 %v718, %v795
  %v800 = vsub.f32 %v719, %v796
  %v801 = vmul.f32 %v797, %v797
  %v802 = vmul.f32 %v798, %v798
  %v803 = vmul.f32 %v799, %v799
  %v804 = vmul.f32 %v800, %v800
  %v805 = vsel %vm80, %v801, 0.0
  %806 = vadd.xlane.f32.xlu0 %v805
  %v807 = vpop.xlane.xlu0 %806
  %v808 = vsel %vm782, %v802, 0.0
  %809 = vadd.xlane.f32.xlu0 %v808
  %v810 = vpop.xlane.xlu0 %809
  %v811 = vsel %vm80, %v803, 0.0
  %812 = vadd.xlane.f32.xlu0 %v811
  %v813 = vpop.xlane.xlu0 %812
  %v814 = vsel %vm782, %v804, 0.0
  %815 = vadd.xlane.f32.xlu0 %v814
  %v816 = vpop.xlane.xlu0 %815
  %v817 = vmul.f32 %v807, %v792
  %v818 = vmul.f32 %v810, %v792
  %v819 = vmul.f32 %v813, %v792
  %v820 = vmul.f32 %v816, %v792
  %v821 = vadd.f32 %v817, 1e-05
  %v822 = vadd.f32 %v818, 1e-05
  %v823 = vadd.f32 %v819, 1e-05
  %v824 = vadd.f32 %v820, 1e-05
  %v825 = vrsqrt.pop %v821
  %v826 = vrsqrt.pop %v822
  %v827 = vrsqrt.pop %v823
  %v828 = vrsqrt.pop %v824
  %v829 = vmul.f32 %v797, %v825
  %v830 = vmul.f32 %v798, %v826
  %v831 = vmul.f32 %v799, %v827
  %v832 = vmul.f32 %v800, %v828
  %v833 = vlaneseq
  %v834 = vshrl.u32 %v833, 7
  %v835 = vsub.s32 0, %v834
  %v836 = vrot.slane %v726, %v835
  %v837 = vmul.f32 %v829, %v836
  %v838 = vmul.f32 %v830, %v836
  %v839 = vmul.f32 %v831, %v836
  %v840 = vmul.f32 %v832, %v836
  %v841 = vlaneseq
  %v842 = vshrl.u32 %v841, 7
  %v843 = vsub.s32 1, %v842
  %v844 = vrot.slane %v726, %v843
  %v845 = vadd.f32 %v837, %v844
  %v846 = vadd.f32 %v838, %v844
  %v847 = vadd.f32 %v839, %v844
  %v848 = vadd.f32 %v840, %v844
  %v853 = vcombine.high %v845, %v845
  %v854 = vcombine.high %v847, %v847
  %v855 = vcombine.low %v845, %v853
  %v856 = vcombine.low %v846, %v847
  %v857 = vcombine.low %v854, %v848
  %v861 = vpack.c.bf16 %v856, %v855
  %v862 = vpack.c.bf16 %v857, %v857
  %v863 = vlaneseq
  %v864 = vshrl.u32 %v863, 7
  %v865 = vsub.s32 0, %v864
  %v866 = vrot.slane %v752, %v865
  %v871 = vunpack.c.l.b16 %v727
  %v872 = vunpack.c.l.b16 %v728
  %v873 = vunpack.c.l.b16 %v729
  %v874 = vunpack.c.l.b16 %v730
  %v875 = vpack.c.b16 %v872, %v871
  %v876 = vpack.c.b16 %v874, %v873
  %v880 = vsel %vm80, %v861, 0
  %v883 = vsel %vm80, %v862, 0
  %885 = vmatprep.subr.bf16.mxu0 0
  %886 = vmatpush1.bf16.msra.mxu0 %v875
  %887 = vmatprep.subr.bf16.mxu0 0
  %888 = vmatpush1.bf16.msra.mxu0 %v876
  %889 = vmatprep.subr.bf16.mxu0 0
  %890 = vmatpush1.bf16.msra.mxu0 0
  %891 = vmatprep.subr.bf16.mxu0 0
  %892 = vmatpush1.bf16.msra.mxu0 0
  %893 = vmatprep.subr.bf16.mxu0 0
  %894 = vmatpush1.bf16.msra.mxu0 0
  %895 = vmatprep.subr.bf16.mxu0 0
  %896 = vmatpush1.bf16.msra.mxu0 0
  %897 = vmatprep.subr.bf16.mxu0 0
  %898 = vmatpush1.bf16.msra.mxu0 0
  %899 = vmatprep.subr.bf16.mxu0 0
  %900 = vmatpush1.bf16.msra.mxu0 0
  %901 = vmatprep.subr.bf16.mxu0 0
  %902 = vmatpush1.bf16.msra.mxu0 0
  %903 = vmatprep.subr.bf16.mxu0 0
  %904 = vmatpush1.bf16.msra.mxu0 0
  %905 = vmatprep.subr.bf16.mxu0 0
  %906 = vmatpush1.bf16.msra.mxu0 0
  %907 = vmatprep.subr.bf16.mxu0 0
  %908 = vmatpush1.bf16.msra.mxu0 0
  %909 = vmatprep.subr.bf16.mxu0 0
  %910 = vmatpush1.bf16.msra.mxu0 0
  %911 = vmatprep.subr.bf16.mxu0 0
  %912 = vmatpush1.bf16.msra.mxu0 0
  %913 = vmatprep.subr.bf16.mxu0 0
  %914 = vmatpush1.bf16.msra.mxu0 0
  %915 = vmatprep.subr.bf16.mxu0 0
  %916 = vmatpush1.bf16.msra.mxu0 0
  %917 = vmatprep.mubr.bf16.mxu0 0
  %918 = vmatmul.mubr.bf16.gmra.mrb[0].mxu0 %v880
  %v919 = vpop.f32.mrb[0].mxu0
  %v920 = vadd.f32 %v866, %v919
  %v921 = vpop.f32.mrb[0].mxu0
  %v922 = vpop.f32.mrb[0].mxu0
  %v923 = vadd.f32 %v866, %v922
  %v924 = vpop.f32.mrb[0].mxu0
  %925 = vmatprep.mubr.bf16.mxu0 0
  %926 = vmatmul.mubr.bf16.gmra.mrb[0].mxu0 %v883
  %v927 = vpop.f32.mrb[0].mxu0
  %v928 = vadd.f32 %v866, %v927
  %v929 = vpop.f32.mrb[0].mxu0
  %v930 = vpop.f32.mrb[0].mxu0
  %v931 = vpop.f32.mrb[0].mxu0
  %932 = vdwg.mxu0
  %v936 = vcombine.high %v920, %v920
  %v937 = vcombine.high %v923, %v923
  %v938 = vcombine.high %v928, %v928
  %v940 = vlaneseq
  %v941 = vshrl.u32 %v940, 7
  %v942 = vsub.s32 1, %v941
  %v943 = vrot.slane %v752, %v942
  %v948 = vunpack.c.l.b16 %v731
  %v949 = vunpack.c.l.b16 %v732
  %v950 = vunpack.c.l.b16 %v733
  %v951 = vunpack.c.l.b16 %v734
  %v952 = vpack.c.b16 %v949, %v948
  %v953 = vpack.c.b16 %v951, %v950
  %956 = vmatprep.subr.bf16.mxu0 0
  %957 = vmatpush1.bf16.msra.mxu0 %v952
  %958 = vmatprep.subr.bf16.mxu0 0
  %959 = vmatpush1.bf16.msra.mxu0 %v953
  %960 = vmatprep.subr.bf16.mxu0 0
  %961 = vmatpush1.bf16.msra.mxu0 0
  %962 = vmatprep.subr.bf16.mxu0 0
  %963 = vmatpush1.bf16.msra.mxu0 0
  %964 = vmatprep.subr.bf16.mxu0 0
  %965 = vmatpush1.bf16.msra.mxu0 0
  %966 = vmatprep.subr.bf16.mxu0 0
  %967 = vmatpush1.bf16.msra.mxu0 0
  %968 = vmatprep.subr.bf16.mxu0 0
  %969 = vmatpush1.bf16.msra.mxu0 0
  %970 = vmatprep.subr.bf16.mxu0 0
  %971 = vmatpush1.bf16.msra.mxu0 0
  %972 = vmatprep.subr.bf16.mxu0 0
  %973 = vmatpush1.bf16.msra.mxu0 0
  %974 = vmatprep.subr.bf16.mxu0 0
  %975 = vmatpush1.bf16.msra.mxu0 0
  %976 = vmatprep.subr.bf16.mxu0 0
  %977 = vmatpush1.bf16.msra.mxu0 0
  %978 = vmatprep.subr.bf16.mxu0 0
  %979 = vmatpush1.bf16.msra.mxu0 0
  %980 = vmatprep.subr.bf16.mxu0 0
  %981 = vmatpush1.bf16.msra.mxu0 0
  %982 = vmatprep.subr.bf16.mxu0 0
  %983 = vmatpush1.bf16.msra.mxu0 0
  %984 = vmatprep.subr.bf16.mxu0 0
  %985 = vmatpush1.bf16.msra.mxu0 0
  %986 = vmatprep.subr.bf16.mxu0 0
  %987 = vmatpush1.bf16.msra.mxu0 0
  %988 = vmatprep.mubr.bf16.mxu0 0
  %989 = vmatmul.mubr.bf16.gmra.mrb[0].mxu0 %v880
  %v990 = vpop.f32.mrb[0].mxu0
  %v991 = vadd.f32 %v943, %v990
  %v992 = vpop.f32.mrb[0].mxu0
  %v993 = vpop.f32.mrb[0].mxu0
  %v994 = vadd.f32 %v943, %v993
  %v995 = vpop.f32.mrb[0].mxu0
  %996 = vmatprep.mubr.bf16.mxu0 0
  %997 = vmatmul.mubr.bf16.gmra.mrb[0].mxu0 %v883
  %v998 = vpop.f32.mrb[0].mxu0
  %v999 = vadd.f32 %v943, %v998
  %v1000 = vpop.f32.mrb[0].mxu0
  %v1001 = vpop.f32.mrb[0].mxu0
  %v1002 = vpop.f32.mrb[0].mxu0
  %1003 = vdwg.mxu0
  %v1007 = vcombine.high %v991, %v991
  %v1008 = vcombine.high %v994, %v994
  %v1009 = vcombine.high %v999, %v999
  %v1011 = vlaneseq
  %v1012 = vshrl.u32 %v1011, 7
  %v1013 = vsub.s32 2, %v1012
  %v1014 = vrot.slane %v752, %v1013
  %v1019 = vunpack.c.l.b16 %v735
  %v1020 = vunpack.c.l.b16 %v736
  %v1021 = vunpack.c.l.b16 %v737
  %v1022 = vunpack.c.l.b16 %v738
  %v1023 = vpack.c.b16 %v1020, %v1019
  %v1024 = vpack.c.b16 %v1022, %v1021
  %1027 = vmatprep.subr.bf16.mxu0 0
  %1028 = vmatpush1.bf16.msra.mxu0 %v1023
  %1029 = vmatprep.subr.bf16.mxu0 0
  %1030 = vmatpush1.bf16.msra.mxu0 %v1024
  %1031 = vmatprep.subr.bf16.mxu0 0
  %1032 = vmatpush1.bf16.msra.mxu0 0
  %1033 = vmatprep.subr.bf16.mxu0 0
  %1034 = vmatpush1.bf16.msra.mxu0 0
  %1035 = vmatprep.subr.bf16.mxu0 0
  %1036 = vmatpush1.bf16.msra.mxu0 0
  %1037 = vmatprep.subr.bf16.mxu0 0
  %1038 = vmatpush1.bf16.msra.mxu0 0
  %1039 = vmatprep.subr.bf16.mxu0 0
  %1040 = vmatpush1.bf16.msra.mxu0 0
  %1041 = vmatprep.subr.bf16.mxu0 0
  %1042 = vmatpush1.bf16.msra.mxu0 0
  %1043 = vmatprep.subr.bf16.mxu0 0
  %1044 = vmatpush1.bf16.msra.mxu0 0
  %1045 = vmatprep.subr.bf16.mxu0 0
  %1046 = vmatpush1.bf16.msra.mxu0 0
  %1047 = vmatprep.subr.bf16.mxu0 0
  %1048 = vmatpush1.bf16.msra.mxu0 0
  %1049 = vmatprep.subr.bf16.mxu0 0
  %1050 = vmatpush1.bf16.msra.mxu0 0
  %1051 = vmatprep.subr.bf16.mxu0 0
  %1052 = vmatpush1.bf16.msra.mxu0 0
  %1053 = vmatprep.subr.bf16.mxu0 0
  %1054 = vmatpush1.bf16.msra.mxu0 0
  %1055 = vmatprep.subr.bf16.mxu0 0
  %1056 = vmatpush1.bf16.msra.mxu0 0
  %1057 = vmatprep.subr.bf16.mxu0 0
  %1058 = vmatpush1.bf16.msra.mxu0 0
  %1059 = vmatprep.mubr.bf16.mxu0 0
  %1060 = vmatmul.mubr.bf16.gmra.mrb[0].mxu0 %v880
  %v1061 = vpop.f32.mrb[0].mxu0
  %v1062 = vadd.f32 %v1014, %v1061
  %v1063 = vpop.f32.mrb[0].mxu0
  %v1064 = vpop.f32.mrb[0].mxu0
  %v1065 = vadd.f32 %v1014, %v1064
  %v1066 = vpop.f32.mrb[0].mxu0
  %1067 = vmatprep.mubr.bf16.mxu0 0
  %1068 = vmatmul.mubr.bf16.gmra.mrb[0].mxu0 %v883
  %v1069 = vpop.f32.mrb[0].mxu0
  %v1070 = vadd.f32 %v1014, %v1069
  %v1071 = vpop.f32.mrb[0].mxu0
  %v1072 = vpop.f32.mrb[0].mxu0
  %v1073 = vpop.f32.mrb[0].mxu0
  %1074 = vdwg.mxu0
  %v1078 = vcombine.high %v1062, %v1062
  %v1079 = vcombine.high %v1065, %v1065
  %v1080 = vcombine.high %v1070, %v1070
  %v1082 = vlaneseq
  %v1083 = vshrl.u32 %v1082, 7
  %v1084 = vsub.s32 3, %v1083
  %v1085 = vrot.slane %v752, %v1084
  %v1090 = vunpack.c.l.b16 %v739
  %v1091 = vunpack.c.l.b16 %v740
  %v1092 = vunpack.c.l.b16 %v741
  %v1093 = vunpack.c.l.b16 %v742
  %v1094 = vpack.c.b16 %v1091, %v1090
  %v1095 = vpack.c.b16 %v1093, %v1092
  %1098 = vmatprep.subr.bf16.mxu0 0
  %1099 = vmatpush1.bf16.msra.mxu0 %v1094
  %1100 = vmatprep.subr.bf16.mxu0 0
  %1101 = vmatpush1.bf16.msra.mxu0 %v1095
  %1102 = vmatprep.subr.bf16.mxu0 0
  %1103 = vmatpush1.bf16.msra.mxu0 0
  %1104 = vmatprep.subr.bf16.mxu0 0
  %1105 = vmatpush1.bf16.msra.mxu0 0
  %1106 = vmatprep.subr.bf16.mxu0 0
  %1107 = vmatpush1.bf16.msra.mxu0 0
  %1108 = vmatprep.subr.bf16.mxu0 0
  %1109 = vmatpush1.bf16.msra.mxu0 0
  %1110 = vmatprep.subr.bf16.mxu0 0
  %1111 = vmatpush1.bf16.msra.mxu0 0
  %1112 = vmatprep.subr.bf16.mxu0 0
  %1113 = vmatpush1.bf16.msra.mxu0 0
  %1114 = vmatprep.subr.bf16.mxu0 0
  %1115 = vmatpush1.bf16.msra.mxu0 0
  %1116 = vmatprep.subr.bf16.mxu0 0
  %1117 = vmatpush1.bf16.msra.mxu0 0
  %1118 = vmatprep.subr.bf16.mxu0 0
  %1119 = vmatpush1.bf16.msra.mxu0 0
  %1120 = vmatprep.subr.bf16.mxu0 0
  %1121 = vmatpush1.bf16.msra.mxu0 0
  %1122 = vmatprep.subr.bf16.mxu0 0
  %1123 = vmatpush1.bf16.msra.mxu0 0
  %1124 = vmatprep.subr.bf16.mxu0 0
  %1125 = vmatpush1.bf16.msra.mxu0 0
  %1126 = vmatprep.subr.bf16.mxu0 0
  %1127 = vmatpush1.bf16.msra.mxu0 0
  %1128 = vmatprep.subr.bf16.mxu0 0
  %1129 = vmatpush1.bf16.msra.mxu0 0
  %1130 = vmatprep.mubr.bf16.mxu0 0
  %1131 = vmatmul.mubr.bf16.gmra.mrb[0].mxu0 %v880
  %v1132 = vpop.f32.mrb[0].mxu0
  %v1133 = vadd.f32 %v1085, %v1132
  %v1134 = vpop.f32.mrb[0].mxu0
  %v1135 = vpop.f32.mrb[0].mxu0
  %v1136 = vadd.f32 %v1085, %v1135
  %v1137 = vpop.f32.mrb[0].mxu0
  %1138 = vmatprep.mubr.bf16.mxu0 0
  %1139 = vmatmul.mubr.bf16.gmra.mrb[0].mxu0 %v883
  %v1140 = vpop.f32.mrb[0].mxu0
  %v1141 = vadd.f32 %v1085, %v1140
  %v1142 = vpop.f32.mrb[0].mxu0
  %v1143 = vpop.f32.mrb[0].mxu0
  %v1144 = vpop.f32.mrb[0].mxu0
  %1145 = vdwg.mxu0
  %v1149 = vcombine.high %v1133, %v1133
  %v1150 = vcombine.high %v1136, %v1136
  %v1151 = vcombine.high %v1141, %v1141
  %v1153 = vlaneseq
  %v1154 = vshrl.u32 %v1153, 7
  %v1155 = vsub.s32 4, %v1154
  %v1156 = vrot.slane %v752, %v1155
  %v1161 = vunpack.c.l.b16 %v743
  %v1162 = vunpack.c.l.b16 %v744
  %v1163 = vunpack.c.l.b16 %v745
  %v1164 = vunpack.c.l.b16 %v746
  %v1165 = vpack.c.b16 %v1162, %v1161
  %v1166 = vpack.c.b16 %v1164, %v1163
  %1169 = vmatprep.subr.bf16.mxu0 0
  %1170 = vmatpush1.bf16.msra.mxu0 %v1165
  %1171 = vmatprep.subr.bf16.mxu0 0
  %1172 = vmatpush1.bf16.msra.mxu0 %v1166
  %1173 = vmatprep.subr.bf16.mxu0 0
  %1174 = vmatpush1.bf16.msra.mxu0 0
  %1175 = vmatprep.subr.bf16.mxu0 0
  %1176 = vmatpush1.bf16.msra.mxu0 0
  %1177 = vmatprep.subr.bf16.mxu0 0
  %1178 = vmatpush1.bf16.msra.mxu0 0
  %1179 = vmatprep.subr.bf16.mxu0 0
  %1180 = vmatpush1.bf16.msra.mxu0 0
  %1181 = vmatprep.subr.bf16.mxu0 0
  %1182 = vmatpush1.bf16.msra.mxu0 0
  %1183 = vmatprep.subr.bf16.mxu0 0
  %1184 = vmatpush1.bf16.msra.mxu0 0
  %1185 = vmatprep.subr.bf16.mxu0 0
  %1186 = vmatpush1.bf16.msra.mxu0 0
  %1187 = vmatprep.subr.bf16.mxu0 0
  %1188 = vmatpush1.bf16.msra.mxu0 0
  %1189 = vmatprep.subr.bf16.mxu0 0
  %1190 = vmatpush1.bf16.msra.mxu0 0
  %1191 = vmatprep.subr.bf16.mxu0 0
  %1192 = vmatpush1.bf16.msra.mxu0 0
  %1193 = vmatprep.subr.bf16.mxu0 0
  %1194 = vmatpush1.bf16.msra.mxu0 0
  %1195 = vmatprep.subr.bf16.mxu0 0
  %1196 = vmatpush1.bf16.msra.mxu0 0
  %1197 = vmatprep.subr.bf16.mxu0 0
  %1198 = vmatpush1.bf16.msra.mxu0 0
  %1199 = vmatprep.subr.bf16.mxu0 0
  %1200 = vmatpush1.bf16.msra.mxu0 0
  %1201 = vmatprep.mubr.bf16.mxu0 0
  %1202 = vmatmul.mubr.bf16.gmra.mrb[0].mxu0 %v880
  %v1203 = vpop.f32.mrb[0].mxu0
  %v1204 = vadd.f32 %v1156, %v1203
  %v1205 = vpop.f32.mrb[0].mxu0
  %v1206 = vpop.f32.mrb[0].mxu0
  %v1207 = vadd.f32 %v1156, %v1206
  %v1208 = vpop.f32.mrb[0].mxu0
  %1209 = vmatprep.mubr.bf16.mxu0 0
  %1210 = vmatmul.mubr.bf16.gmra.mrb[0].mxu0 %v883
  %v1211 = vpop.f32.mrb[0].mxu0
  %v1212 = vadd.f32 %v1156, %v1211
  %v1213 = vpop.f32.mrb[0].mxu0
  %v1214 = vpop.f32.mrb[0].mxu0
  %v1215 = vpop.f32.mrb[0].mxu0
  %1216 = vdwg.mxu0
  %v1220 = vcombine.high %v1204, %v1204
  %v1221 = vcombine.high %v1207, %v1207
  %v1222 = vcombine.high %v1212, %v1212
  %v1224 = vlaneseq
  %v1225 = vshrl.u32 %v1224, 7
  %v1226 = vsub.s32 5, %v1225
  %v1227 = vrot.slane %v752, %v1226
  %v1232 = vunpack.c.l.b16 %v747
  %v1233 = vunpack.c.l.b16 %v748
  %v1234 = vunpack.c.l.b16 %v749
  %v1235 = vunpack.c.l.b16 %v750
  %v1236 = vpack.c.b16 %v1233, %v1232
  %v1237 = vpack.c.b16 %v1235, %v1234
  %1240 = vmatprep.subr.bf16.mxu0 0
  %1241 = vmatpush1.bf16.msra.mxu0 %v1236
  %1242 = vmatprep.subr.bf16.mxu0 0
  %1243 = vmatpush1.bf16.msra.mxu0 %v1237
  %1244 = vmatprep.subr.bf16.mxu0 0
  %1245 = vmatpush1.bf16.msra.mxu0 0
  %1246 = vmatprep.subr.bf16.mxu0 0
  %1247 = vmatpush1.bf16.msra.mxu0 0
  %1248 = vmatprep.subr.bf16.mxu0 0
  %1249 = vmatpush1.bf16.msra.mxu0 0
  %1250 = vmatprep.subr.bf16.mxu0 0
  %1251 = vmatpush1.bf16.msra.mxu0 0
  %1252 = vmatprep.subr.bf16.mxu0 0
  %1253 = vmatpush1.bf16.msra.mxu0 0
  %1254 = vmatprep.subr.bf16.mxu0 0
  %1255 = vmatpush1.bf16.msra.mxu0 0
  %1256 = vmatprep.subr.bf16.mxu0 0
  %1257 = vmatpush1.bf16.msra.mxu0 0
  %1258 = vmatprep.subr.bf16.mxu0 0
  %1259 = vmatpush1.bf16.msra.mxu0 0
  %1260 = vmatprep.subr.bf16.mxu0 0
  %1261 = vmatpush1.bf16.msra.mxu0 0
  %1262 = vmatprep.subr.bf16.mxu0 0
  %1263 = vmatpush1.bf16.msra.mxu0 0
  %1264 = vmatprep.subr.bf16.mxu0 0
  %1265 = vmatpush1.bf16.msra.mxu0 0
  %1266 = vmatprep.subr.bf16.mxu0 0
  %1267 = vmatpush1.bf16.msra.mxu0 0
  %1268 = vmatprep.subr.bf16.mxu0 0
  %1269 = vmatpush1.bf16.msra.mxu0 0
  %1270 = vmatprep.subr.bf16.mxu0 0
  %1271 = vmatpush1.bf16.msra.mxu0 0
  %1272 = vmatprep.mubr.bf16.mxu0 0
  %1273 = vmatmul.mubr.bf16.gmra.mrb[0].mxu0 %v880
  %v1274 = vpop.f32.mrb[0].mxu0
  %v1275 = vadd.f32 %v1227, %v1274
  %v1276 = vpop.f32.mrb[0].mxu0
  %v1277 = vpop.f32.mrb[0].mxu0
  %v1278 = vadd.f32 %v1227, %v1277
  %v1279 = vpop.f32.mrb[0].mxu0
  %1280 = vmatprep.mubr.bf16.mxu0 0
  %1281 = vmatmul.mubr.bf16.gmra.mrb[0].mxu0 %v883
  %v1282 = vpop.f32.mrb[0].mxu0
  %v1283 = vadd.f32 %v1227, %v1282
  %v1284 = vpop.f32.mrb[0].mxu0
  %v1285 = vpop.f32.mrb[0].mxu0
  %v1286 = vpop.f32.mrb[0].mxu0
  %1287 = vdwg.mxu0
  %v1291 = vcombine.high %v1275, %v1275
  %v1292 = vcombine.high %v1278, %v1278
  %v1293 = vcombine.high %v1283, %v1283
  %v1295 = vcombine.low %v920, %v936
  %v1296 = vcombine.low %v937, %v928
  %v1297 = vcombine.low %v991, %v1007
  %v1298 = vcombine.low %v1008, %v999
  %v1303 = vpack.c.bf16 %v923, %v1295
  %v1304 = vpack.c.bf16 %v938, %v1296
  %v1305 = vpack.c.bf16 %v994, %v1297
  %v1306 = vpack.c.bf16 %v1009, %v1298
  %v1307 = vcombine.low %v1062, %v1078
  %v1308 = vcombine.low %v1079, %v1070
  %v1309 = vcombine.low %v1133, %v1149
  %v1310 = vcombine.low %v1150, %v1141
  %v1315 = vpack.c.bf16 %v1065, %v1307
  %v1316 = vpack.c.bf16 %v1080, %v1308
  %v1317 = vpack.c.bf16 %v1136, %v1309
  %v1318 = vpack.c.bf16 %v1151, %v1310
  %vm1319 = vcmask 130048
  %v1321 = vsel %vm1319, %v1303, 0
  %v1324 = vsel %vm1319, %v1315, 0
  %1326 = vmatprep.subr.bf16.mxu0 0
  %1327 = vmatpush1.bf16.xpose.msra.mxu0 %v1324
  %1328 = vmatprep.subr.bf16.mxu0 0
  %1329 = vmatpush1.bf16.xpose.msra.mxu0 0
  %1330 = vmatprep.subr.bf16.mxu0 0
  %1331 = vmatpush1.bf16.xpose.msra.mxu0 0
  %1332 = vmatprep.subr.bf16.mxu0 0
  %1333 = vmatpush1.bf16.xpose.msra.mxu0 0
  %1334 = vmatprep.subr.bf16.mxu0 0
  %1335 = vmatpush1.bf16.xpose.msra.mxu0 0
  %1336 = vmatprep.subr.bf16.mxu0 0
  %1337 = vmatpush1.bf16.xpose.msra.mxu0 0
  %1338 = vmatprep.subr.bf16.mxu0 0
  %1339 = vmatpush1.bf16.xpose.msra.mxu0 0
  %1340 = vmatprep.subr.bf16.mxu0 0
  %1341 = vmatpush1.bf16.xpose.msra.mxu0 0
  %1342 = vmatprep.subr.bf16.mxu0 0
  %1343 = vmatpush1.bf16.xpose.msra.mxu0 0
  %1344 = vmatprep.subr.bf16.mxu0 0
  %1345 = vmatpush1.bf16.xpose.msra.mxu0 0
  %1346 = vmatprep.subr.bf16.mxu0 0
  %1347 = vmatpush1.bf16.xpose.msra.mxu0 0
  %1348 = vmatprep.subr.bf16.mxu0 0
  %1349 = vmatpush1.bf16.xpose.msra.mxu0 0
  %1350 = vmatprep.subr.bf16.mxu0 0
  %1351 = vmatpush1.bf16.xpose.msra.mxu0 0
  %1352 = vmatprep.subr.bf16.mxu0 0
  %1353 = vmatpush1.bf16.xpose.msra.mxu0 0
  %1354 = vmatprep.subr.bf16.mxu0 0
  %1355 = vmatpush1.bf16.xpose.msra.mxu0 0
  %1356 = vmatprep.subr.bf16.mxu0 0
  %1357 = vmatpush1.bf16.xpose.msra.mxu0 0
  %1358 = vmatprep.mubr.bf16.mxu0 0
  %1359 = vmatmul.mubr.bf16.gmra.mrb[0].mxu0 %v1321
  %v1360 = vpop.f32.mrb[0].mxu0
  %v1361 = vadd.f32 0.0, %v1360
  %v1362 = vpop.f32.mrb[0].mxu0
  %v1363 = vpop.f32.mrb[0].mxu0
  %v1364 = vadd.f32 0.0, %v1363
  %v1365 = vpop.f32.mrb[0].mxu0
  %1366 = vdwg.mxu0
  %v1368 = vsel %vm1319, %v1304, 0
  %v1371 = vsel %vm1319, %v1316, 0
  %1373 = vmatprep.subr.bf16.mxu0 0
  %1374 = vmatpush1.bf16.xpose.msra.mxu0 %v1371
  %1375 = vmatprep.subr.bf16.mxu0 0
  %1376 = vmatpush1.bf16.xpose.msra.mxu0 0
  %1377 = vmatprep.subr.bf16.mxu0 0
  %1378 = vmatpush1.bf16.xpose.msra.mxu0 0
  %1379 = vmatprep.subr.bf16.mxu0 0
  %1380 = vmatpush1.bf16.xpose.msra.mxu0 0
  %1381 = vmatprep.subr.bf16.mxu0 0
  %1382 = vmatpush1.bf16.xpose.msra.mxu0 0
  %1383 = vmatprep.subr.bf16.mxu0 0
  %1384 = vmatpush1.bf16.xpose.msra.mxu0 0
  %1385 = vmatprep.subr.bf16.mxu0 0
  %1386 = vmatpush1.bf16.xpose.msra.mxu0 0
  %1387 = vmatprep.subr.bf16.mxu0 0
  %1388 = vmatpush1.bf16.xpose.msra.mxu0 0
  %1389 = vmatprep.subr.bf16.mxu0 0
  %1390 = vmatpush1.bf16.xpose.msra.mxu0 0
  %1391 = vmatprep.subr.bf16.mxu0 0
  %1392 = vmatpush1.bf16.xpose.msra.mxu0 0
  %1393 = vmatprep.subr.bf16.mxu0 0
  %1394 = vmatpush1.bf16.xpose.msra.mxu0 0
  %1395 = vmatprep.subr.bf16.mxu0 0
  %1396 = vmatpush1.bf16.xpose.msra.mxu0 0
  %1397 = vmatprep.subr.bf16.mxu0 0
  %1398 = vmatpush1.bf16.xpose.msra.mxu0 0
  %1399 = vmatprep.subr.bf16.mxu0 0
  %1400 = vmatpush1.bf16.xpose.msra.mxu0 0
  %1401 = vmatprep.subr.bf16.mxu0 0
  %1402 = vmatpush1.bf16.xpose.msra.mxu0 0
  %1403 = vmatprep.subr.bf16.mxu0 0
  %1404 = vmatpush1.bf16.xpose.msra.mxu0 0
  %1405 = vmatprep.mubr.bf16.mxu0 0
  %1406 = vmatmul.mubr.bf16.gmra.mrb[0].mxu0 %v1368
  %v1407 = vpop.f32.mrb[0].mxu0
  %v1408 = vadd.f32 0.0, %v1407
  %v1409 = vpop.f32.mrb[0].mxu0
  %v1410 = vpop.f32.mrb[0].mxu0
  %v1411 = vadd.f32 0.0, %v1410
  %v1412 = vpop.f32.mrb[0].mxu0
  %1413 = vdwg.mxu0
  %v1415 = vsel %vm1319, %v1305, 0
  %v1418 = vsel %vm1319, %v1317, 0
  %1420 = vmatprep.subr.bf16.mxu0 0
  %1421 = vmatpush1.bf16.xpose.msra.mxu0 %v1418
  %1422 = vmatprep.subr.bf16.mxu0 0
  %1423 = vmatpush1.bf16.xpose.msra.mxu0 0
  %1424 = vmatprep.subr.bf16.mxu0 0
  %1425 = vmatpush1.bf16.xpose.msra.mxu0 0
  %1426 = vmatprep.subr.bf16.mxu0 0
  %1427 = vmatpush1.bf16.xpose.msra.mxu0 0
  %1428 = vmatprep.subr.bf16.mxu0 0
  %1429 = vmatpush1.bf16.xpose.msra.mxu0 0
  %1430 = vmatprep.subr.bf16.mxu0 0
  %1431 = vmatpush1.bf16.xpose.msra.mxu0 0
  %1432 = vmatprep.subr.bf16.mxu0 0
  %1433 = vmatpush1.bf16.xpose.msra.mxu0 0
  %1434 = vmatprep.subr.bf16.mxu0 0
  %1435 = vmatpush1.bf16.xpose.msra.mxu0 0
  %1436 = vmatprep.subr.bf16.mxu0 0
  %1437 = vmatpush1.bf16.xpose.msra.mxu0 0
  %1438 = vmatprep.subr.bf16.mxu0 0
  %1439 = vmatpush1.bf16.xpose.msra.mxu0 0
  %1440 = vmatprep.subr.bf16.mxu0 0
  %1441 = vmatpush1.bf16.xpose.msra.mxu0 0
  %1442 = vmatprep.subr.bf16.mxu0 0
  %1443 = vmatpush1.bf16.xpose.msra.mxu0 0
  %1444 = vmatprep.subr.bf16.mxu0 0
  %1445 = vmatpush1.bf16.xpose.msra.mxu0 0
  %1446 = vmatprep.subr.bf16.mxu0 0
  %1447 = vmatpush1.bf16.xpose.msra.mxu0 0
  %1448 = vmatprep.subr.bf16.mxu0 0
  %1449 = vmatpush1.bf16.xpose.msra.mxu0 0
  %1450 = vmatprep.subr.bf16.mxu0 0
  %1451 = vmatpush1.bf16.xpose.msra.mxu0 0
  %1452 = vmatprep.mubr.bf16.mxu0 0
  %1453 = vmatmul.mubr.bf16.gmra.mrb[0].mxu0 %v1415
  %v1454 = vpop.f32.mrb[0].mxu0
  %v1455 = vadd.f32 0.0, %v1454
  %v1456 = vpop.f32.mrb[0].mxu0
  %v1457 = vpop.f32.mrb[0].mxu0
  %v1458 = vadd.f32 0.0, %v1457
  %v1459 = vpop.f32.mrb[0].mxu0
  %1460 = vdwg.mxu0
  %v1462 = vsel %vm1319, %v1306, 0
  %v1465 = vsel %vm1319, %v1318, 0
  %1467 = vmatprep.subr.bf16.mxu0 0
  %1468 = vmatpush1.bf16.xpose.msra.mxu0 %v1465
  %1469 = vmatprep.subr.bf16.mxu0 0
  %1470 = vmatpush1.bf16.xpose.msra.mxu0 0
  %1471 = vmatprep.subr.bf16.mxu0 0
  %1472 = vmatpush1.bf16.xpose.msra.mxu0 0
  %1473 = vmatprep.subr.bf16.mxu0 0
  %1474 = vmatpush1.bf16.xpose.msra.mxu0 0
  %1475 = vmatprep.subr.bf16.mxu0 0
  %1476 = vmatpush1.bf16.xpose.msra.mxu0 0
  %1477 = vmatprep.subr.bf16.mxu0 0
  %1478 = vmatpush1.bf16.xpose.msra.mxu0 0
  %1479 = vmatprep.subr.bf16.mxu0 0
  %1480 = vmatpush1.bf16.xpose.msra.mxu0 0
  %1481 = vmatprep.subr.bf16.mxu0 0
  %1482 = vmatpush1.bf16.xpose.msra.mxu0 0
  %1483 = vmatprep.subr.bf16.mxu0 0
  %1484 = vmatpush1.bf16.xpose.msra.mxu0 0
  %1485 = vmatprep.subr.bf16.mxu0 0
  %1486 = vmatpush1.bf16.xpose.msra.mxu0 0
  %1487 = vmatprep.subr.bf16.mxu0 0
  %1488 = vmatpush1.bf16.xpose.msra.mxu0 0
  %1489 = vmatprep.subr.bf16.mxu0 0
  %1490 = vmatpush1.bf16.xpose.msra.mxu0 0
  %1491 = vmatprep.subr.bf16.mxu0 0
  %1492 = vmatpush1.bf16.xpose.msra.mxu0 0
  %1493 = vmatprep.subr.bf16.mxu0 0
  %1494 = vmatpush1.bf16.xpose.msra.mxu0 0
  %1495 = vmatprep.subr.bf16.mxu0 0
  %1496 = vmatpush1.bf16.xpose.msra.mxu0 0
  %1497 = vmatprep.subr.bf16.mxu0 0
  %1498 = vmatpush1.bf16.xpose.msra.mxu0 0
  %1499 = vmatprep.mubr.bf16.mxu0 0
  %1500 = vmatmul.mubr.bf16.gmra.mrb[0].mxu0 %v1462
  %v1501 = vpop.f32.mrb[0].mxu0
  %v1502 = vadd.f32 0.0, %v1501
  %v1503 = vpop.f32.mrb[0].mxu0
  %v1504 = vpop.f32.mrb[0].mxu0
  %v1505 = vadd.f32 0.0, %v1504
  %v1506 = vpop.f32.mrb[0].mxu0
  %1507 = vdwg.mxu0
  %v1508 = vmul.f32 %v1361, 0.25
  %v1509 = vmul.f32 %v1364, 0.25
  %v1510 = vmul.f32 %v1408, 0.25
  %v1511 = vmul.f32 %v1411, 0.25
  %v1512 = vmul.f32 %v1455, 0.25
  %v1513 = vmul.f32 %v1458, 0.25
  %v1514 = vmul.f32 %v1502, 0.25
  %v1515 = vmul.f32 %v1505, 0.25
  %v1516 = vsel %vm723, 1, 0
  %v1517 = vsel %vm724, 1, 0
  %vm1518 = vcmp.eq.s32.totalorder %v1516, 1
  %vm1519 = vcmp.eq.s32.totalorder %v1517, 1
  %v1520 = vsel %vm1518, %v1508, -1e+09
  %v1521 = vsel %vm1519, %v1509, -1e+09
  %v1522 = vsel %vm1518, %v1510, -1e+09
  %v1523 = vsel %vm1519, %v1511, -1e+09
  %v1524 = vsel %vm1518, %v1512, -1e+09
  %v1525 = vsel %vm1519, %v1513, -1e+09
  %v1526 = vsel %vm1518, %v1514, -1e+09
  %v1527 = vsel %vm1519, %v1515, -1e+09
  %vm1528 = vcmask 97280
  %v1529 = vsel %vm1528, %v1520, -inf
  %1530 = vmax.xlane.f32.xlu0 %v1529
  %v1531 = vpop.xlane.xlu0 %1530
  %vm1532 = vcmask 93184
  %v1533 = vsel %vm1532, %v1521, -inf
  %1534 = vmax.xlane.f32.xlu0 %v1533
  %v1535 = vpop.xlane.xlu0 %1534
  %v1536 = vsel %vm1528, %v1522, -inf
  %1537 = vmax.xlane.f32.xlu0 %v1536
  %v1538 = vpop.xlane.xlu0 %1537
  %v1539 = vsel %vm1532, %v1523, -inf
  %1540 = vmax.xlane.f32.xlu0 %v1539
  %v1541 = vpop.xlane.xlu0 %1540
  %v1542 = vsel %vm1528, %v1524, -inf
  %1543 = vmax.xlane.f32.xlu0 %v1542
  %v1544 = vpop.xlane.xlu0 %1543
  %v1545 = vsel %vm1532, %v1525, -inf
  %1546 = vmax.xlane.f32.xlu0 %v1545
  %v1547 = vpop.xlane.xlu0 %1546
  %v1548 = vsel %vm1528, %v1526, -inf
  %1549 = vmax.xlane.f32.xlu0 %v1548
  %v1550 = vpop.xlane.xlu0 %1549
  %v1551 = vsel %vm1532, %v1527, -inf
  %1552 = vmax.xlane.f32.xlu0 %v1551
  %v1553 = vpop.xlane.xlu0 %1552
  %v1554 = vsub.f32 %v1520, %v1531
  %v1555 = vsub.f32 %v1521, %v1535
  %v1556 = vsub.f32 %v1522, %v1538
  %v1557 = vsub.f32 %v1523, %v1541
  %v1558 = vsub.f32 %v1524, %v1544
  %v1559 = vsub.f32 %v1525, %v1547
  %v1560 = vsub.f32 %v1526, %v1550
  %v1561 = vsub.f32 %v1527, %v1553
  %v1562 = vmul.f32 %v1554, 1.442695
  %v1563 = vpow.pop %v1562
  %v1564 = vmul.f32 %v1555, 1.442695
  %v1565 = vpow.pop %v1564
  %v1566 = vmul.f32 %v1556, 1.442695
  %v1567 = vpow.pop %v1566
  %v1568 = vmul.f32 %v1557, 1.442695
  %v1569 = vpow.pop %v1568
  %v1570 = vmul.f32 %v1558, 1.442695
  %v1571 = vpow.pop %v1570
  %v1572 = vmul.f32 %v1559, 1.442695
  %v1573 = vpow.pop %v1572
  %v1574 = vmul.f32 %v1560, 1.442695
  %v1575 = vpow.pop %v1574
  %v1576 = vmul.f32 %v1561, 1.442695
  %v1577 = vpow.pop %v1576
  %v1578 = vsel %vm1528, %v1563, 0.0
  %1579 = vadd.xlane.f32.xlu0 %v1578
  %v1580 = vpop.xlane.xlu0 %1579
  %v1581 = vsel %vm1532, %v1565, 0.0
  %1582 = vadd.xlane.f32.xlu0 %v1581
  %v1583 = vpop.xlane.xlu0 %1582
  %v1584 = vsel %vm1528, %v1567, 0.0
  %1585 = vadd.xlane.f32.xlu0 %v1584
  %v1586 = vpop.xlane.xlu0 %1585
  %v1587 = vsel %vm1532, %v1569, 0.0
  %1588 = vadd.xlane.f32.xlu0 %v1587
  %v1589 = vpop.xlane.xlu0 %1588
  %v1590 = vsel %vm1528, %v1571, 0.0
  %1591 = vadd.xlane.f32.xlu0 %v1590
  %v1592 = vpop.xlane.xlu0 %1591
  %v1593 = vsel %vm1532, %v1573, 0.0
  %1594 = vadd.xlane.f32.xlu0 %v1593
  %v1595 = vpop.xlane.xlu0 %1594
  %v1596 = vsel %vm1528, %v1575, 0.0
  %1597 = vadd.xlane.f32.xlu0 %v1596
  %v1598 = vpop.xlane.xlu0 %1597
  %v1599 = vsel %vm1532, %v1577, 0.0
  %1600 = vadd.xlane.f32.xlu0 %v1599
  %v1601 = vpop.xlane.xlu0 %1600
  %v1602 = vrcp.pop %v1580
  %v1603 = vrcp.pop %v1583
  %v1604 = vrcp.pop %v1586
  %v1605 = vrcp.pop %v1589
  %v1606 = vrcp.pop %v1592
  %v1607 = vrcp.pop %v1595
  %v1608 = vrcp.pop %v1598
  %v1609 = vrcp.pop %v1601
  %v1610 = vmul.f32 %v1563, %v1602
  %v1611 = vmul.f32 %v1565, %v1603
  %v1612 = vmul.f32 %v1567, %v1604
  %v1613 = vmul.f32 %v1569, %v1605
  %v1614 = vmul.f32 %v1571, %v1606
  %v1615 = vmul.f32 %v1573, %v1607
  %v1616 = vmul.f32 %v1575, %v1608
  %v1617 = vmul.f32 %v1577, %v1609
  %v1618 = vpack.c.bf16 %v1611, %v1610
  %v1619 = vpack.c.bf16 %v1613, %v1612
  %v1620 = vpack.c.bf16 %v1615, %v1614
  %v1621 = vpack.c.bf16 %v1617, %v1616
  %v1622 = vcombine.low %v1204, %v1220
  %v1623 = vcombine.low %v1221, %v1212
  %v1624 = vcombine.low %v1275, %v1291
  %v1625 = vcombine.low %v1292, %v1283
  %v1630 = vpack.c.bf16 %v1207, %v1622
  %v1631 = vpack.c.bf16 %v1222, %v1623
  %v1632 = vpack.c.bf16 %v1278, %v1624
  %v1633 = vpack.c.bf16 %v1293, %v1625
  %v1635 = vsel %vm1528, %v1618, 0
  %vm1637 = vcmask 1045504
  %v1639 = vsel %vm1637, %v1630, 0
  %1641 = vmatprep.subr.bf16.mxu0 0
  %1642 = vmatpush1.bf16.msra.mxu0 %v1639
  %1643 = vmatprep.subr.bf16.mxu0 0
  %1644 = vmatpush1.bf16.msra.mxu0 0
  %1645 = vmatprep.subr.bf16.mxu0 0
  %1646 = vmatpush1.bf16.msra.mxu0 0
  %1647 = vmatprep.subr.bf16.mxu0 0
  %1648 = vmatpush1.bf16.msra.mxu0 0
  %1649 = vmatprep.subr.bf16.mxu0 0
  %1650 = vmatpush1.bf16.msra.mxu0 0
  %1651 = vmatprep.subr.bf16.mxu0 0
  %1652 = vmatpush1.bf16.msra.mxu0 0
  %1653 = vmatprep.subr.bf16.mxu0 0
  %1654 = vmatpush1.bf16.msra.mxu0 0
  %1655 = vmatprep.subr.bf16.mxu0 0
  %1656 = vmatpush1.bf16.msra.mxu0 0
  %1657 = vmatprep.subr.bf16.mxu0 0
  %1658 = vmatpush1.bf16.msra.mxu0 0
  %1659 = vmatprep.subr.bf16.mxu0 0
  %1660 = vmatpush1.bf16.msra.mxu0 0
  %1661 = vmatprep.subr.bf16.mxu0 0
  %1662 = vmatpush1.bf16.msra.mxu0 0
  %1663 = vmatprep.subr.bf16.mxu0 0
  %1664 = vmatpush1.bf16.msra.mxu0 0
  %1665 = vmatprep.subr.bf16.mxu0 0
  %1666 = vmatpush1.bf16.msra.mxu0 0
  %1667 = vmatprep.subr.bf16.mxu0 0
  %1668 = vmatpush1.bf16.msra.mxu0 0
  %1669 = vmatprep.subr.bf16.mxu0 0
  %1670 = vmatpush1.bf16.msra.mxu0 0
  %1671 = vmatprep.subr.bf16.mxu0 0
  %1672 = vmatpush1.bf16.msra.mxu0 0
  %1673 = vmatprep.mubr.bf16.mxu0 0
  %1674 = vmatmul.mubr.bf16.gmra.mrb[0].mxu0 %v1635
  %v1675 = vpop.f32.mrb[0].mxu0
  %v1676 = vadd.f32 0.0, %v1675
  %v1677 = vpop.f32.mrb[0].mxu0
  %v1678 = vpop.f32.mrb[0].mxu0
  %v1679 = vadd.f32 0.0, %v1678
  %v1680 = vpop.f32.mrb[0].mxu0
  %1681 = vdwg.mxu0
  %v1683 = vsel %vm1528, %v1619, 0
  %v1686 = vsel %vm1637, %v1631, 0
  %1688 = vmatprep.subr.bf16.mxu0 0
  %1689 = vmatpush1.bf16.msra.mxu0 %v1686
  %1690 = vmatprep.subr.bf16.mxu0 0
  %1691 = vmatpush1.bf16.msra.mxu0 0
  %1692 = vmatprep.subr.bf16.mxu0 0
  %1693 = vmatpush1.bf16.msra.mxu0 0
  %1694 = vmatprep.subr.bf16.mxu0 0
  %1695 = vmatpush1.bf16.msra.mxu0 0
  %1696 = vmatprep.subr.bf16.mxu0 0
  %1697 = vmatpush1.bf16.msra.mxu0 0
  %1698 = vmatprep.subr.bf16.mxu0 0
  %1699 = vmatpush1.bf16.msra.mxu0 0
  %1700 = vmatprep.subr.bf16.mxu0 0
  %1701 = vmatpush1.bf16.msra.mxu0 0
  %1702 = vmatprep.subr.bf16.mxu0 0
  %1703 = vmatpush1.bf16.msra.mxu0 0
  %1704 = vmatprep.subr.bf16.mxu0 0
  %1705 = vmatpush1.bf16.msra.mxu0 0
  %1706 = vmatprep.subr.bf16.mxu0 0
  %1707 = vmatpush1.bf16.msra.mxu0 0
  %1708 = vmatprep.subr.bf16.mxu0 0
  %1709 = vmatpush1.bf16.msra.mxu0 0
  %1710 = vmatprep.subr.bf16.mxu0 0
  %1711 = vmatpush1.bf16.msra.mxu0 0
  %1712 = vmatprep.subr.bf16.mxu0 0
  %1713 = vmatpush1.bf16.msra.mxu0 0
  %1714 = vmatprep.subr.bf16.mxu0 0
  %1715 = vmatpush1.bf16.msra.mxu0 0
  %1716 = vmatprep.subr.bf16.mxu0 0
  %1717 = vmatpush1.bf16.msra.mxu0 0
  %1718 = vmatprep.subr.bf16.mxu0 0
  %1719 = vmatpush1.bf16.msra.mxu0 0
  %1720 = vmatprep.mubr.bf16.mxu0 0
  %1721 = vmatmul.mubr.bf16.gmra.mrb[0].mxu0 %v1683
  %v1722 = vpop.f32.mrb[0].mxu0
  %v1723 = vadd.f32 0.0, %v1722
  %v1724 = vpop.f32.mrb[0].mxu0
  %v1725 = vpop.f32.mrb[0].mxu0
  %v1726 = vadd.f32 0.0, %v1725
  %v1727 = vpop.f32.mrb[0].mxu0
  %1728 = vdwg.mxu0
  %v1730 = vsel %vm1528, %v1620, 0
  %v1733 = vsel %vm1637, %v1632, 0
  %1735 = vmatprep.subr.bf16.mxu0 0
  %1736 = vmatpush1.bf16.msra.mxu0 %v1733
  %1737 = vmatprep.subr.bf16.mxu0 0
  %1738 = vmatpush1.bf16.msra.mxu0 0
  %1739 = vmatprep.subr.bf16.mxu0 0
  %1740 = vmatpush1.bf16.msra.mxu0 0
  %1741 = vmatprep.subr.bf16.mxu0 0
  %1742 = vmatpush1.bf16.msra.mxu0 0
  %1743 = vmatprep.subr.bf16.mxu0 0
  %1744 = vmatpush1.bf16.msra.mxu0 0
  %1745 = vmatprep.subr.bf16.mxu0 0
  %1746 = vmatpush1.bf16.msra.mxu0 0
  %1747 = vmatprep.subr.bf16.mxu0 0
  %1748 = vmatpush1.bf16.msra.mxu0 0
  %1749 = vmatprep.subr.bf16.mxu0 0
  %1750 = vmatpush1.bf16.msra.mxu0 0
  %1751 = vmatprep.subr.bf16.mxu0 0
  %1752 = vmatpush1.bf16.msra.mxu0 0
  %1753 = vmatprep.subr.bf16.mxu0 0
  %1754 = vmatpush1.bf16.msra.mxu0 0
  %1755 = vmatprep.subr.bf16.mxu0 0
  %1756 = vmatpush1.bf16.msra.mxu0 0
  %1757 = vmatprep.subr.bf16.mxu0 0
  %1758 = vmatpush1.bf16.msra.mxu0 0
  %1759 = vmatprep.subr.bf16.mxu0 0
  %1760 = vmatpush1.bf16.msra.mxu0 0
  %1761 = vmatprep.subr.bf16.mxu0 0
  %1762 = vmatpush1.bf16.msra.mxu0 0
  %1763 = vmatprep.subr.bf16.mxu0 0
  %1764 = vmatpush1.bf16.msra.mxu0 0
  %1765 = vmatprep.subr.bf16.mxu0 0
  %1766 = vmatpush1.bf16.msra.mxu0 0
  %1767 = vmatprep.mubr.bf16.mxu0 0
  %1768 = vmatmul.mubr.bf16.gmra.mrb[0].mxu0 %v1730
  %v1769 = vpop.f32.mrb[0].mxu0
  %v1770 = vadd.f32 0.0, %v1769
  %v1771 = vpop.f32.mrb[0].mxu0
  %v1772 = vpop.f32.mrb[0].mxu0
  %v1773 = vadd.f32 0.0, %v1772
  %v1774 = vpop.f32.mrb[0].mxu0
  %1775 = vdwg.mxu0
  %v1777 = vsel %vm1528, %v1621, 0
  %v1780 = vsel %vm1637, %v1633, 0
  %1782 = vmatprep.subr.bf16.mxu0 0
  %1783 = vmatpush1.bf16.msra.mxu0 %v1780
  %1784 = vmatprep.subr.bf16.mxu0 0
  %1785 = vmatpush1.bf16.msra.mxu0 0
  %1786 = vmatprep.subr.bf16.mxu0 0
  %1787 = vmatpush1.bf16.msra.mxu0 0
  %1788 = vmatprep.subr.bf16.mxu0 0
  %1789 = vmatpush1.bf16.msra.mxu0 0
  %1790 = vmatprep.subr.bf16.mxu0 0
  %1791 = vmatpush1.bf16.msra.mxu0 0
  %1792 = vmatprep.subr.bf16.mxu0 0
  %1793 = vmatpush1.bf16.msra.mxu0 0
  %1794 = vmatprep.subr.bf16.mxu0 0
  %1795 = vmatpush1.bf16.msra.mxu0 0
  %1796 = vmatprep.subr.bf16.mxu0 0
  %1797 = vmatpush1.bf16.msra.mxu0 0
  %1798 = vmatprep.subr.bf16.mxu0 0
  %1799 = vmatpush1.bf16.msra.mxu0 0
  %1800 = vmatprep.subr.bf16.mxu0 0
  %1801 = vmatpush1.bf16.msra.mxu0 0
  %1802 = vmatprep.subr.bf16.mxu0 0
  %1803 = vmatpush1.bf16.msra.mxu0 0
  %1804 = vmatprep.subr.bf16.mxu0 0
  %1805 = vmatpush1.bf16.msra.mxu0 0
  %1806 = vmatprep.subr.bf16.mxu0 0
  %1807 = vmatpush1.bf16.msra.mxu0 0
  %1808 = vmatprep.subr.bf16.mxu0 0
  %1809 = vmatpush1.bf16.msra.mxu0 0
  %1810 = vmatprep.subr.bf16.mxu0 0
  %1811 = vmatpush1.bf16.msra.mxu0 0
  %1812 = vmatprep.subr.bf16.mxu0 0
  %1813 = vmatpush1.bf16.msra.mxu0 0
  %1814 = vmatprep.mubr.bf16.mxu0 0
  %1815 = vmatmul.mubr.bf16.gmra.mrb[0].mxu0 %v1777
  %v1816 = vpop.f32.mrb[0].mxu0
  %v1817 = vadd.f32 0.0, %v1816
  %v1818 = vpop.f32.mrb[0].mxu0
  %v1819 = vpop.f32.mrb[0].mxu0
  %v1820 = vadd.f32 0.0, %v1819
  %v1821 = vpop.f32.mrb[0].mxu0
  %1822 = vdwg.mxu0
  %v1827 = vcombine.high %v1676, %v1676
  %v1828 = vcombine.high %v1723, %v1723
  %v1829 = vcombine.low %v1676, %v1827
  %v1830 = vcombine.low %v1679, %v1723
  %v1831 = vcombine.low %v1828, %v1726
  %v1835 = vpack.c.bf16 %v1830, %v1829
  %v1836 = vpack.c.bf16 %v1831, %v1831
  %v1839 = vunpack.c.l.b16 %v753
  %v1840 = vunpack.c.l.b16 %v754
  %v1841 = vpack.c.b16 %v1840, %v1839
  %v1844 = vsel %vm1319, %v1835, 0
  %v1847 = vsel %vm1319, %v1836, 0
  %1849 = vmatprep.subr.bf16.mxu0 0
  %1850 = vmatpush1.bf16.msra.mxu0 %v1841
  %1851 = vmatprep.subr.bf16.mxu0 0
  %1852 = vmatpush1.bf16.msra.mxu0 0
  %1853 = vmatprep.subr.bf16.mxu0 0
  %1854 = vmatpush1.bf16.msra.mxu0 0
  %1855 = vmatprep.subr.bf16.mxu0 0
  %1856 = vmatpush1.bf16.msra.mxu0 0
  %1857 = vmatprep.subr.bf16.mxu0 0
  %1858 = vmatpush1.bf16.msra.mxu0 0
  %1859 = vmatprep.subr.bf16.mxu0 0
  %1860 = vmatpush1.bf16.msra.mxu0 0
  %1861 = vmatprep.subr.bf16.mxu0 0
  %1862 = vmatpush1.bf16.msra.mxu0 0
  %1863 = vmatprep.subr.bf16.mxu0 0
  %1864 = vmatpush1.bf16.msra.mxu0 0
  %1865 = vmatprep.subr.bf16.mxu0 0
  %1866 = vmatpush1.bf16.msra.mxu0 0
  %1867 = vmatprep.subr.bf16.mxu0 0
  %1868 = vmatpush1.bf16.msra.mxu0 0
  %1869 = vmatprep.subr.bf16.mxu0 0
  %1870 = vmatpush1.bf16.msra.mxu0 0
  %1871 = vmatprep.subr.bf16.mxu0 0
  %1872 = vmatpush1.bf16.msra.mxu0 0
  %1873 = vmatprep.subr.bf16.mxu0 0
  %1874 = vmatpush1.bf16.msra.mxu0 0
  %1875 = vmatprep.subr.bf16.mxu0 0
  %1876 = vmatpush1.bf16.msra.mxu0 0
  %1877 = vmatprep.subr.bf16.mxu0 0
  %1878 = vmatpush1.bf16.msra.mxu0 0
  %1879 = vmatprep.subr.bf16.mxu0 0
  %1880 = vmatpush1.bf16.msra.mxu0 0
  %1881 = vmatprep.mubr.bf16.mxu0 0
  %1882 = vmatmul.mubr.bf16.gmra.mrb[0].mxu0 %v1844
  %v1883 = vpop.f32.mrb[0].mxu0
  %v1884 = vadd.f32 0.0, %v1883
  %v1885 = vpop.f32.mrb[0].mxu0
  %v1886 = vpop.f32.mrb[0].mxu0
  %v1887 = vadd.f32 0.0, %v1886
  %v1888 = vpop.f32.mrb[0].mxu0
  %1889 = vmatprep.mubr.bf16.mxu0 0
  %1890 = vmatmul.mubr.bf16.gmra.mrb[0].mxu0 %v1847
  %v1891 = vpop.f32.mrb[0].mxu0
  %v1892 = vadd.f32 0.0, %v1891
  %v1893 = vpop.f32.mrb[0].mxu0
  %v1894 = vpop.f32.mrb[0].mxu0
  %v1895 = vpop.f32.mrb[0].mxu0
  %1896 = vdwg.mxu0
  %v1897 = vlaneseq
  %v1898 = vshrl.u32 %v1897, 7
  %v1899 = vsub.s32 2, %v1898
  %v1900 = vrot.slane %v726, %v1899
  %v1901 = vadd.f32 %v1900, %v1884
  %v1902 = vadd.f32 %v1900, %v1887
  %v1903 = vadd.f32 %v1900, %v1892
  %v1908 = vcombine.high %v1770, %v1770
  %v1909 = vcombine.high %v1817, %v1817
  %v1910 = vcombine.low %v1770, %v1908
  %v1911 = vcombine.low %v1773, %v1817
  %v1912 = vcombine.low %v1909, %v1820
  %v1916 = vpack.c.bf16 %v1911, %v1910
  %v1917 = vpack.c.bf16 %v1912, %v1912
  %v1920 = vunpack.c.l.b16 %v755
  %v1921 = vunpack.c.l.b16 %v756
  %v1922 = vpack.c.b16 %v1921, %v1920
  %v1925 = vsel %vm1319, %v1916, 0
  %v1928 = vsel %vm1319, %v1917, 0
  %1930 = vmatprep.subr.bf16.mxu0 0
  %1931 = vmatpush1.bf16.msra.mxu0 %v1922
  %1932 = vmatprep.subr.bf16.mxu0 0
  %1933 = vmatpush1.bf16.msra.mxu0 0
  %1934 = vmatprep.subr.bf16.mxu0 0
  %1935 = vmatpush1.bf16.msra.mxu0 0
  %1936 = vmatprep.subr.bf16.mxu0 0
  %1937 = vmatpush1.bf16.msra.mxu0 0
  %1938 = vmatprep.subr.bf16.mxu0 0
  %1939 = vmatpush1.bf16.msra.mxu0 0
  %1940 = vmatprep.subr.bf16.mxu0 0
  %1941 = vmatpush1.bf16.msra.mxu0 0
  %1942 = vmatprep.subr.bf16.mxu0 0
  %1943 = vmatpush1.bf16.msra.mxu0 0
  %1944 = vmatprep.subr.bf16.mxu0 0
  %1945 = vmatpush1.bf16.msra.mxu0 0
  %1946 = vmatprep.subr.bf16.mxu0 0
  %1947 = vmatpush1.bf16.msra.mxu0 0
  %1948 = vmatprep.subr.bf16.mxu0 0
  %1949 = vmatpush1.bf16.msra.mxu0 0
  %1950 = vmatprep.subr.bf16.mxu0 0
  %1951 = vmatpush1.bf16.msra.mxu0 0
  %1952 = vmatprep.subr.bf16.mxu0 0
  %1953 = vmatpush1.bf16.msra.mxu0 0
  %1954 = vmatprep.subr.bf16.mxu0 0
  %1955 = vmatpush1.bf16.msra.mxu0 0
  %1956 = vmatprep.subr.bf16.mxu0 0
  %1957 = vmatpush1.bf16.msra.mxu0 0
  %1958 = vmatprep.subr.bf16.mxu0 0
  %1959 = vmatpush1.bf16.msra.mxu0 0
  %1960 = vmatprep.subr.bf16.mxu0 0
  %1961 = vmatpush1.bf16.msra.mxu0 0
  %1962 = vmatprep.mubr.bf16.mxu0 0
  %1963 = vmatmul.mubr.bf16.gmra.mrb[0].mxu0 %v1925
  %v1964 = vpop.f32.mrb[0].mxu0
  %v1965 = vadd.f32 0.0, %v1964
  %v1966 = vpop.f32.mrb[0].mxu0
  %v1967 = vpop.f32.mrb[0].mxu0
  %v1968 = vadd.f32 0.0, %v1967
  %v1969 = vpop.f32.mrb[0].mxu0
  %1970 = vmatprep.mubr.bf16.mxu0 0
  %1971 = vmatmul.mubr.bf16.gmra.mrb[0].mxu0 %v1928
  %v1972 = vpop.f32.mrb[0].mxu0
  %v1973 = vadd.f32 0.0, %v1972
  %v1974 = vpop.f32.mrb[0].mxu0
  %v1975 = vpop.f32.mrb[0].mxu0
  %v1976 = vpop.f32.mrb[0].mxu0
  %1977 = vdwg.mxu0
  %v1978 = vadd.f32 %v1901, %v1965
  %v1979 = vadd.f32 %v1902, %v1968
  %v1980 = vadd.f32 %v1903, %v1973
  %v1984 = vcombine.high %v1978, %v1978
  %v1985 = vcombine.high %v1979, %v1979
  %v1986 = vcombine.high %v1980, %v1980
  %v1988 = vcombine.low %v1978, %v1984
  %v1989 = vcombine.low %v1985, %v1980
  %v1992 = vadd.f32 %v716, %v1988
  %v1993 = vadd.f32 %v717, %v1979
  %v1994 = vadd.f32 %v718, %v1989
  %v1995 = vadd.f32 %v719, %v1986
  %v1996 = vsel %vm80, %v1992, 0.0
  %1997 = vadd.xlane.f32.xlu0 %v1996
  %v1998 = vpop.xlane.xlu0 %1997
  %v1999 = vsel %vm782, %v1993, 0.0
  %2000 = vadd.xlane.f32.xlu0 %v1999
  %v2001 = vpop.xlane.xlu0 %2000
  %v2002 = vsel %vm80, %v1994, 0.0
  %2003 = vadd.xlane.f32.xlu0 %v2002
  %v2004 = vpop.xlane.xlu0 %2003
  %v2005 = vsel %vm782, %v1995, 0.0
  %2006 = vadd.xlane.f32.xlu0 %v2005
  %v2007 = vpop.xlane.xlu0 %2006
  %v2008 = vmul.f32 %v1998, %v792
  %v2009 = vmul.f32 %v2001, %v792
  %v2010 = vmul.f32 %v2004, %v792
  %v2011 = vmul.f32 %v2007, %v792
  %v2012 = vsub.f32 %v1992, %v2008
  %v2013 = vsub.f32 %v1993, %v2009
  %v2014 = vsub.f32 %v1994, %v2010
  %v2015 = vsub.f32 %v1995, %v2011
  %v2016 = vmul.f32 %v2012, %v2012
  %v2017 = vmul.f32 %v2013, %v2013
  %v2018 = vmul.f32 %v2014, %v2014
  %v2019 = vmul.f32 %v2015, %v2015
  %v2020 = vsel %vm80, %v2016, 0.0
  %2021 = vadd.xlane.f32.xlu0 %v2020
  %v2022 = vpop.xlane.xlu0 %2021
  %v2023 = vsel %vm782, %v2017, 0.0
  %2024 = vadd.xlane.f32.xlu0 %v2023
  %v2025 = vpop.xlane.xlu0 %2024
  %v2026 = vsel %vm80, %v2018, 0.0
  %2027 = vadd.xlane.f32.xlu0 %v2026
  %v2028 = vpop.xlane.xlu0 %2027
  %v2029 = vsel %vm782, %v2019, 0.0
  %2030 = vadd.xlane.f32.xlu0 %v2029
  %v2031 = vpop.xlane.xlu0 %2030
  %v2032 = vmul.f32 %v2022, %v792
  %v2033 = vmul.f32 %v2025, %v792
  %v2034 = vmul.f32 %v2028, %v792
  %v2035 = vmul.f32 %v2031, %v792
  %v2036 = vadd.f32 %v2032, 1e-05
  %v2037 = vadd.f32 %v2033, 1e-05
  %v2038 = vadd.f32 %v2034, 1e-05
  %v2039 = vadd.f32 %v2035, 1e-05
  %v2040 = vrsqrt.pop %v2036
  %v2041 = vrsqrt.pop %v2037
  %v2042 = vrsqrt.pop %v2038
  %v2043 = vrsqrt.pop %v2039
  %v2044 = vmul.f32 %v2012, %v2040
  %v2045 = vmul.f32 %v2013, %v2041
  %v2046 = vmul.f32 %v2014, %v2042
  %v2047 = vmul.f32 %v2015, %v2043
  %v2048 = vlaneseq
  %v2049 = vshrl.u32 %v2048, 7
  %v2050 = vsub.s32 3, %v2049
  %v2051 = vrot.slane %v726, %v2050
  %v2052 = vmul.f32 %v2044, %v2051
  %v2053 = vmul.f32 %v2045, %v2051
  %v2054 = vmul.f32 %v2046, %v2051
  %v2055 = vmul.f32 %v2047, %v2051
  %v2056 = vlaneseq
  %v2057 = vshrl.u32 %v2056, 7
  %v2058 = vsub.s32 4, %v2057
  %v2059 = vrot.slane %v726, %v2058
  %v2060 = vadd.f32 %v2052, %v2059
  %v2061 = vadd.f32 %v2053, %v2059
  %v2062 = vadd.f32 %v2054, %v2059
  %v2063 = vadd.f32 %v2055, %v2059
  %v2068 = vcombine.high %v2060, %v2060
  %v2069 = vcombine.high %v2062, %v2062
  %v2070 = vcombine.low %v2060, %v2068
  %v2071 = vcombine.low %v2061, %v2062
  %v2072 = vcombine.low %v2069, %v2063
  %v2076 = vpack.c.bf16 %v2071, %v2070
  %v2077 = vpack.c.bf16 %v2072, %v2072
  %v2078 = vlaneseq
  %v2079 = vshrl.u32 %v2078, 7
  %v2080 = vsub.s32 0, %v2079
  %v2081 = vrot.slane %v762, %v2080
  %v2086 = vunpack.c.l.b16 %v757
  %v2087 = vunpack.c.l.b16 %v758
  %v2088 = vunpack.c.l.b16 %v759
  %v2089 = vunpack.c.l.b16 %v760
  %v2090 = vpack.c.b16 %v2087, %v2086
  %v2091 = vpack.c.b16 %v2089, %v2088
  %v2095 = vsel %vm80, %v2076, 0
  %v2098 = vsel %vm80, %v2077, 0
  %2100 = vmatprep.subr.bf16.mxu0 0
  %2101 = vmatpush1.bf16.msra.mxu0 %v2090
  %2102 = vmatprep.subr.bf16.mxu0 0
  %2103 = vmatpush1.bf16.msra.mxu0 %v2091
  %2104 = vmatprep.subr.bf16.mxu0 0
  %2105 = vmatpush1.bf16.msra.mxu0 0
  %2106 = vmatprep.subr.bf16.mxu0 0
  %2107 = vmatpush1.bf16.msra.mxu0 0
  %2108 = vmatprep.subr.bf16.mxu0 0
  %2109 = vmatpush1.bf16.msra.mxu0 0
  %2110 = vmatprep.subr.bf16.mxu0 0
  %2111 = vmatpush1.bf16.msra.mxu0 0
  %2112 = vmatprep.subr.bf16.mxu0 0
  %2113 = vmatpush1.bf16.msra.mxu0 0
  %2114 = vmatprep.subr.bf16.mxu0 0
  %2115 = vmatpush1.bf16.msra.mxu0 0
  %2116 = vmatprep.subr.bf16.mxu0 0
  %2117 = vmatpush1.bf16.msra.mxu0 0
  %2118 = vmatprep.subr.bf16.mxu0 0
  %2119 = vmatpush1.bf16.msra.mxu0 0
  %2120 = vmatprep.subr.bf16.mxu0 0
  %2121 = vmatpush1.bf16.msra.mxu0 0
  %2122 = vmatprep.subr.bf16.mxu0 0
  %2123 = vmatpush1.bf16.msra.mxu0 0
  %2124 = vmatprep.subr.bf16.mxu0 0
  %2125 = vmatpush1.bf16.msra.mxu0 0
  %2126 = vmatprep.subr.bf16.mxu0 0
  %2127 = vmatpush1.bf16.msra.mxu0 0
  %2128 = vmatprep.subr.bf16.mxu0 0
  %2129 = vmatpush1.bf16.msra.mxu0 0
  %2130 = vmatprep.subr.bf16.mxu0 0
  %2131 = vmatpush1.bf16.msra.mxu0 0
  %2132 = vmatprep.mubr.bf16.mxu0 0
  %2133 = vmatmul.mubr.bf16.gmra.mrb[0].mxu0 %v2095
  %v2134 = vpop.f32.mrb[0].mxu0
  %v2135 = vadd.f32 %v2081, %v2134
  %v2136 = vpop.f32.mrb[0].mxu0
  %v2137 = vpop.f32.mrb[0].mxu0
  %v2138 = vadd.f32 %v2081, %v2137
  %v2139 = vpop.f32.mrb[0].mxu0
  %2140 = vmatprep.mubr.bf16.mxu0 0
  %2141 = vmatmul.mubr.bf16.gmra.mrb[0].mxu0 %v2098
  %v2142 = vpop.f32.mrb[0].mxu0
  %v2143 = vadd.f32 %v2081, %v2142
  %v2144 = vpop.f32.mrb[0].mxu0
  %v2145 = vpop.f32.mrb[0].mxu0
  %v2146 = vpop.f32.mrb[0].mxu0
  %2147 = vdwg.mxu0
  %v2148 = vmul.f32 %v2135, 0.5
  %v2149 = vmul.f32 %v2138, 0.5
  %v2150 = vmul.f32 %v2143, 0.5
  %v2151 = vmul.f32 %v2135, %v2135
  %v2152 = vmul.f32 %v2138, %v2138
  %v2153 = vmul.f32 %v2143, %v2143
  %v2154 = vmul.f32 %v2135, %v2151
  %v2155 = vmul.f32 %v2138, %v2152
  %v2156 = vmul.f32 %v2143, %v2153
  %v2157 = vmul.f32 %v2154, 0.044715
  %v2158 = vmul.f32 %v2155, 0.044715
  %v2159 = vmul.f32 %v2156, 0.044715
  %v2160 = vadd.f32 %v2135, %v2157
  %v2161 = vadd.f32 %v2138, %v2158
  %v2162 = vadd.f32 %v2143, %v2159
  %v2163 = vmul.f32 %v2160, 0.7978845
  %v2164 = vmul.f32 %v2161, 0.7978845
  %v2165 = vmul.f32 %v2162, 0.7978845
  %v2166 = vtanh.pop %v2163
  %v2167 = vtanh.pop %v2164
  %v2168 = vtanh.pop %v2165
  %v2169 = vadd.f32 %v2166, 1.0
  %v2170 = vadd.f32 %v2167, 1.0
  %v2171 = vadd.f32 %v2168, 1.0
  %v2172 = vmul.f32 %v2148, %v2169
  %v2173 = vmul.f32 %v2149, %v2170
  %v2174 = vmul.f32 %v2150, %v2171
  %v2175 = vpack.c.bf16 %v2173, %v2172
  %v2176 = vpack.c.bf16 %v2174, %v2174
  %v2177 = vlaneseq
  %v2178 = vshrl.u32 %v2177, 7
  %v2179 = vsub.s32 5, %v2178
  %v2180 = vrot.slane %v726, %v2179
  %v2197 = vunpack.c.l.b16 %v763
  %v2198 = vunpack.c.l.b16 %v764
  %v2199 = vunpack.c.l.b16 %v765
  %v2200 = vunpack.c.l.b16 %v766
  %v2201 = vunpack.c.l.b16 %v767
  %v2202 = vunpack.c.l.b16 %v768
  %v2203 = vunpack.c.l.b16 %v769
  %v2204 = vunpack.c.l.b16 %v770
  %v2205 = vunpack.c.l.b16 %v771
  %v2206 = vunpack.c.l.b16 %v772
  %v2207 = vunpack.c.l.b16 %v773
  %v2208 = vunpack.c.l.b16 %v774
  %v2209 = vunpack.c.l.b16 %v775
  %v2210 = vunpack.c.l.b16 %v776
  %v2211 = vunpack.c.l.b16 %v777
  %v2212 = vunpack.c.l.b16 %v778
  %v2213 = vpack.c.b16 %v2198, %v2197
  %v2214 = vpack.c.b16 %v2200, %v2199
  %v2215 = vpack.c.b16 %v2202, %v2201
  %v2216 = vpack.c.b16 %v2204, %v2203
  %v2217 = vpack.c.b16 %v2206, %v2205
  %v2218 = vpack.c.b16 %v2208, %v2207
  %v2219 = vpack.c.b16 %v2210, %v2209
  %v2220 = vpack.c.b16 %v2212, %v2211
  %2229 = vmatprep.subr.bf16.mxu0 0
  %2230 = vmatpush1.bf16.msra.mxu0 %v2213
  %2231 = vmatprep.subr.bf16.mxu0 0
  %2232 = vmatpush1.bf16.msra.mxu0 %v2214
  %2233 = vmatprep.subr.bf16.mxu0 0
  %2234 = vmatpush1.bf16.msra.mxu0 %v2215
  %2235 = vmatprep.subr.bf16.mxu0 0
  %2236 = vmatpush1.bf16.msra.mxu0 %v2216
  %2237 = vmatprep.subr.bf16.mxu0 0
  %2238 = vmatpush1.bf16.msra.mxu0 %v2217
  %2239 = vmatprep.subr.bf16.mxu0 0
  %2240 = vmatpush1.bf16.msra.mxu0 %v2218
  %2241 = vmatprep.subr.bf16.mxu0 0
  %2242 = vmatpush1.bf16.msra.mxu0 %v2219
  %2243 = vmatprep.subr.bf16.mxu0 0
  %2244 = vmatpush1.bf16.msra.mxu0 %v2220
  %2245 = vmatprep.subr.bf16.mxu0 0
  %2246 = vmatpush1.bf16.msra.mxu0 0
  %2247 = vmatprep.subr.bf16.mxu0 0
  %2248 = vmatpush1.bf16.msra.mxu0 0
  %2249 = vmatprep.subr.bf16.mxu0 0
  %2250 = vmatpush1.bf16.msra.mxu0 0
  %2251 = vmatprep.subr.bf16.mxu0 0
  %2252 = vmatpush1.bf16.msra.mxu0 0
  %2253 = vmatprep.subr.bf16.mxu0 0
  %2254 = vmatpush1.bf16.msra.mxu0 0
  %2255 = vmatprep.subr.bf16.mxu0 0
  %2256 = vmatpush1.bf16.msra.mxu0 0
  %2257 = vmatprep.subr.bf16.mxu0 0
  %2258 = vmatpush1.bf16.msra.mxu0 0
  %2259 = vmatprep.subr.bf16.mxu0 0
  %2260 = vmatpush1.bf16.msra.mxu0 0
  %2261 = vmatprep.mubr.bf16.mxu0 0
  %2262 = vmatmul.mubr.bf16.gmra.mrb[0].mxu0 %v2175
  %v2263 = vpop.f32.mrb[0].mxu0
  %v2264 = vadd.f32 %v2180, %v2263
  %v2265 = vpop.f32.mrb[0].mxu0
  %v2266 = vpop.f32.mrb[0].mxu0
  %v2267 = vadd.f32 %v2180, %v2266
  %v2268 = vpop.f32.mrb[0].mxu0
  %2269 = vmatprep.mubr.bf16.mxu0 0
  %2270 = vmatmul.mubr.bf16.gmra.mrb[0].mxu0 %v2176
  %v2271 = vpop.f32.mrb[0].mxu0
  %v2272 = vadd.f32 %v2180, %v2271
  %v2273 = vpop.f32.mrb[0].mxu0
  %v2274 = vpop.f32.mrb[0].mxu0
  %v2275 = vpop.f32.mrb[0].mxu0
  %2276 = vdwg.mxu0
  %v2280 = vcombine.high %v2264, %v2264
  %v2281 = vcombine.high %v2267, %v2267
  %v2282 = vcombine.high %v2272, %v2272
  %v2284 = vcombine.low %v2264, %v2280
  %v2285 = vcombine.low %v2281, %v2272
  %v2288 = vadd.f32 %v1992, %v2284
  %v2289 = vadd.f32 %v1993, %v2267
  %v2290 = vadd.f32 %v1994, %v2285
  %v2291 = vadd.f32 %v1995, %v2282
  %s2292 = scalar_lea.vmem %s15, 4
  %v2293 = vld [vmem:[%s2292] sm:$0x7]
  %v2294 = vunpack.c.l.bf16 %v2293
  %s2295 = scalar_lea.vmem %s9, 96
  %v2296 = vld [vmem:[%s2295] sm:$0xf]
  %v2297 = vld [vmem:[%s2295 + $0x4] sm:$0xf]
  %v2298 = vld [vmem:[%s2295 + $0x8] sm:$0xf]
  %v2299 = vld [vmem:[%s2295 + $0xc] sm:$0xf]
  %v2300 = vld [vmem:[%s2295 + $0x10] sm:$0xf]
  %v2301 = vld [vmem:[%s2295 + $0x14] sm:$0xf]
  %v2302 = vld [vmem:[%s2295 + $0x18] sm:$0xf]
  %v2303 = vld [vmem:[%s2295 + $0x1c] sm:$0xf]
  %v2304 = vld [vmem:[%s2295 + $0x20] sm:$0xf]
  %v2305 = vld [vmem:[%s2295 + $0x24] sm:$0xf]
  %v2306 = vld [vmem:[%s2295 + $0x28] sm:$0xf]
  %v2307 = vld [vmem:[%s2295 + $0x2c] sm:$0xf]
  %v2308 = vld [vmem:[%s2295 + $0x30] sm:$0xf]
  %v2309 = vld [vmem:[%s2295 + $0x34] sm:$0xf]
  %v2310 = vld [vmem:[%s2295 + $0x38] sm:$0xf]
  %v2311 = vld [vmem:[%s2295 + $0x3c] sm:$0xf]
  %v2312 = vld [vmem:[%s2295 + $0x40] sm:$0xf]
  %v2313 = vld [vmem:[%s2295 + $0x44] sm:$0xf]
  %v2314 = vld [vmem:[%s2295 + $0x48] sm:$0xf]
  %v2315 = vld [vmem:[%s2295 + $0x4c] sm:$0xf]
  %v2316 = vld [vmem:[%s2295 + $0x50] sm:$0xf]
  %v2317 = vld [vmem:[%s2295 + $0x54] sm:$0xf]
  %v2318 = vld [vmem:[%s2295 + $0x58] sm:$0xf]
  %v2319 = vld [vmem:[%s2295 + $0x5c] sm:$0xf]
  %s2320 = scalar_lea.vmem %s10, 4
  %v2321 = vld [vmem:[%s2320] sm:$0x7]
  %v2322 = vunpack.c.l.bf16 %v2321
  %s2323 = scalar_lea.vmem %s11, 16
  %v2324 = vld [vmem:[%s2323] sm:$0xf]
  %v2325 = vld [vmem:[%s2323 + $0x4] sm:$0xf]
  %v2326 = vld [vmem:[%s2323 + $0x8] sm:$0xf]
  %v2327 = vld [vmem:[%s2323 + $0xc] sm:$0xf]
  %s2328 = scalar_lea.vmem %s12, 16
  %v2329 = vld [vmem:[%s2328] sm:$0xf]
  %v2330 = vld [vmem:[%s2328 + $0x4] sm:$0xf]
  %v2331 = vld [vmem:[%s2328 + $0x8] sm:$0xf]
  %v2332 = vld [vmem:[%s2328 + $0xc] sm:$0xf]
  %s2333 = scalar_lea.vmem %s13, 1
  %v2334 = vld [vmem:[%s2333] sm:$0x1]
  %v2335 = vunpack.c.l.bf16 %v2334
  %s2336 = scalar_lea.vmem %s14, 64
  %v2337 = vld [vmem:[%s2336] sm:$0xf]
  %v2338 = vld [vmem:[%s2336 + $0x4] sm:$0xf]
  %v2339 = vld [vmem:[%s2336 + $0x8] sm:$0xf]
  %v2340 = vld [vmem:[%s2336 + $0xc] sm:$0xf]
  %v2341 = vld [vmem:[%s2336 + $0x10] sm:$0xf]
  %v2342 = vld [vmem:[%s2336 + $0x14] sm:$0xf]
  %v2343 = vld [vmem:[%s2336 + $0x18] sm:$0xf]
  %v2344 = vld [vmem:[%s2336 + $0x1c] sm:$0xf]
  %v2345 = vld [vmem:[%s2336 + $0x20] sm:$0xf]
  %v2346 = vld [vmem:[%s2336 + $0x24] sm:$0xf]
  %v2347 = vld [vmem:[%s2336 + $0x28] sm:$0xf]
  %v2348 = vld [vmem:[%s2336 + $0x2c] sm:$0xf]
  %v2349 = vld [vmem:[%s2336 + $0x30] sm:$0xf]
  %v2350 = vld [vmem:[%s2336 + $0x34] sm:$0xf]
  %v2351 = vld [vmem:[%s2336 + $0x38] sm:$0xf]
  %v2352 = vld [vmem:[%s2336 + $0x3c] sm:$0xf]
  %v2353 = vsel %vm80, %v2288, 0.0
  %2354 = vadd.xlane.f32.xlu0 %v2353
  %v2355 = vpop.xlane.xlu0 %2354
  %v2356 = vsel %vm782, %v2289, 0.0
  %2357 = vadd.xlane.f32.xlu0 %v2356
  %v2358 = vpop.xlane.xlu0 %2357
  %v2359 = vsel %vm80, %v2290, 0.0
  %2360 = vadd.xlane.f32.xlu0 %v2359
  %v2361 = vpop.xlane.xlu0 %2360
  %v2362 = vsel %vm782, %v2291, 0.0
  %2363 = vadd.xlane.f32.xlu0 %v2362
  %v2364 = vpop.xlane.xlu0 %2363
  %v2365 = vmul.f32 %v2355, %v792
  %v2366 = vmul.f32 %v2358, %v792
  %v2367 = vmul.f32 %v2361, %v792
  %v2368 = vmul.f32 %v2364, %v792
  %v2369 = vsub.f32 %v2288, %v2365
  %v2370 = vsub.f32 %v2289, %v2366
  %v2371 = vsub.f32 %v2290, %v2367
  %v2372 = vsub.f32 %v2291, %v2368
  %v2373 = vmul.f32 %v2369, %v2369
  %v2374 = vmul.f32 %v2370, %v2370
  %v2375 = vmul.f32 %v2371, %v2371
  %v2376 = vmul.f32 %v2372, %v2372
  %v2377 = vsel %vm80, %v2373, 0.0
  %2378 = vadd.xlane.f32.xlu0 %v2377
  %v2379 = vpop.xlane.xlu0 %2378
  %v2380 = vsel %vm782, %v2374, 0.0
  %2381 = vadd.xlane.f32.xlu0 %v2380
  %v2382 = vpop.xlane.xlu0 %2381
  %v2383 = vsel %vm80, %v2375, 0.0
  %2384 = vadd.xlane.f32.xlu0 %v2383
  %v2385 = vpop.xlane.xlu0 %2384
  %v2386 = vsel %vm782, %v2376, 0.0
  %2387 = vadd.xlane.f32.xlu0 %v2386
  %v2388 = vpop.xlane.xlu0 %2387
  %v2389 = vmul.f32 %v2379, %v792
  %v2390 = vmul.f32 %v2382, %v792
  %v2391 = vmul.f32 %v2385, %v792
  %v2392 = vmul.f32 %v2388, %v792
  %v2393 = vadd.f32 %v2389, 1e-05
  %v2394 = vadd.f32 %v2390, 1e-05
  %v2395 = vadd.f32 %v2391, 1e-05
  %v2396 = vadd.f32 %v2392, 1e-05
  %v2397 = vrsqrt.pop %v2393
  %v2398 = vrsqrt.pop %v2394
  %v2399 = vrsqrt.pop %v2395
  %v2400 = vrsqrt.pop %v2396
  %v2401 = vmul.f32 %v2369, %v2397
  %v2402 = vmul.f32 %v2370, %v2398
  %v2403 = vmul.f32 %v2371, %v2399
  %v2404 = vmul.f32 %v2372, %v2400
  %v2405 = vlaneseq
  %v2406 = vshrl.u32 %v2405, 7
  %v2407 = vsub.s32 0, %v2406
  %v2408 = vrot.slane %v2294, %v2407
  %v2409 = vmul.f32 %v2401, %v2408
  %v2410 = vmul.f32 %v2402, %v2408
  %v2411 = vmul.f32 %v2403, %v2408
  %v2412 = vmul.f32 %v2404, %v2408
  %v2413 = vlaneseq
  %v2414 = vshrl.u32 %v2413, 7
  %v2415 = vsub.s32 1, %v2414
  %v2416 = vrot.slane %v2294, %v2415
  %v2417 = vadd.f32 %v2409, %v2416
  %v2418 = vadd.f32 %v2410, %v2416
  %v2419 = vadd.f32 %v2411, %v2416
  %v2420 = vadd.f32 %v2412, %v2416
  %v2425 = vcombine.high %v2417, %v2417
  %v2426 = vcombine.high %v2419, %v2419
  %v2427 = vcombine.low %v2417, %v2425
  %v2428 = vcombine.low %v2418, %v2419
  %v2429 = vcombine.low %v2426, %v2420
  %v2433 = vpack.c.bf16 %v2428, %v2427
  %v2434 = vpack.c.bf16 %v2429, %v2429
  %v2435 = vlaneseq
  %v2436 = vshrl.u32 %v2435, 7
  %v2437 = vsub.s32 0, %v2436
  %v2438 = vrot.slane %v2322, %v2437
  %v2443 = vunpack.c.l.b16 %v2296
  %v2444 = vunpack.c.l.b16 %v2297
  %v2445 = vunpack.c.l.b16 %v2298
  %v2446 = vunpack.c.l.b16 %v2299
  %v2447 = vpack.c.b16 %v2444, %v2443
  %v2448 = vpack.c.b16 %v2446, %v2445
  %v2452 = vsel %vm80, %v2433, 0
  %v2455 = vsel %vm80, %v2434, 0
  %2457 = vmatprep.subr.bf16.mxu0 0
  %2458 = vmatpush1.bf16.msra.mxu0 %v2447
  %2459 = vmatprep.subr.bf16.mxu0 0
  %2460 = vmatpush1.bf16.msra.mxu0 %v2448
  %2461 = vmatprep.subr.bf16.mxu0 0
  %2462 = vmatpush1.bf16.msra.mxu0 0
  %2463 = vmatprep.subr.bf16.mxu0 0
  %2464 = vmatpush1.bf16.msra.mxu0 0
  %2465 = vmatprep.subr.bf16.mxu0 0
  %2466 = vmatpush1.bf16.msra.mxu0 0
  %2467 = vmatprep.subr.bf16.mxu0 0
  %2468 = vmatpush1.bf16.msra.mxu0 0
  %2469 = vmatprep.subr.bf16.mxu0 0
  %2470 = vmatpush1.bf16.msra.mxu0 0
  %2471 = vmatprep.subr.bf16.mxu0 0
  %2472 = vmatpush1.bf16.msra.mxu0 0
  %2473 = vmatprep.subr.bf16.mxu0 0
  %2474 = vmatpush1.bf16.msra.mxu0 0
  %2475 = vmatprep.subr.bf16.mxu0 0
  %2476 = vmatpush1.bf16.msra.mxu0 0
  %2477 = vmatprep.subr.bf16.mxu0 0
  %2478 = vmatpush1.bf16.msra.mxu0 0
  %2479 = vmatprep.subr.bf16.mxu0 0
  %2480 = vmatpush1.bf16.msra.mxu0 0
  %2481 = vmatprep.subr.bf16.mxu0 0
  %2482 = vmatpush1.bf16.msra.mxu0 0
  %2483 = vmatprep.subr.bf16.mxu0 0
  %2484 = vmatpush1.bf16.msra.mxu0 0
  %2485 = vmatprep.subr.bf16.mxu0 0
  %2486 = vmatpush1.bf16.msra.mxu0 0
  %2487 = vmatprep.subr.bf16.mxu0 0
  %2488 = vmatpush1.bf16.msra.mxu0 0
  %2489 = vmatprep.mubr.bf16.mxu0 0
  %2490 = vmatmul.mubr.bf16.gmra.mrb[0].mxu0 %v2452
  %v2491 = vpop.f32.mrb[0].mxu0
  %v2492 = vadd.f32 %v2438, %v2491
  %v2493 = vpop.f32.mrb[0].mxu0
  %v2494 = vpop.f32.mrb[0].mxu0
  %v2495 = vadd.f32 %v2438, %v2494
  %v2496 = vpop.f32.mrb[0].mxu0
  %2497 = vmatprep.mubr.bf16.mxu0 0
  %2498 = vmatmul.mubr.bf16.gmra.mrb[0].mxu0 %v2455
  %v2499 = vpop.f32.mrb[0].mxu0
  %v2500 = vadd.f32 %v2438, %v2499
  %v2501 = vpop.f32.mrb[0].mxu0
  %v2502 = vpop.f32.mrb[0].mxu0
  %v2503 = vpop.f32.mrb[0].mxu0
  %2504 = vdwg.mxu0
  %v2508 = vcombine.high %v2492, %v2492
  %v2509 = vcombine.high %v2495, %v2495
  %v2510 = vcombine.high %v2500, %v2500
  %v2512 = vlaneseq
  %v2513 = vshrl.u32 %v2512, 7
  %v2514 = vsub.s32 1, %v2513
  %v2515 = vrot.slane %v2322, %v2514
  %v2520 = vunpack.c.l.b16 %v2300
  %v2521 = vunpack.c.l.b16 %v2301
  %v2522 = vunpack.c.l.b16 %v2302
  %v2523 = vunpack.c.l.b16 %v2303
  %v2524 = vpack.c.b16 %v2521, %v2520
  %v2525 = vpack.c.b16 %v2523, %v2522
  %2528 = vmatprep.subr.bf16.mxu0 0
  %2529 = vmatpush1.bf16.msra.mxu0 %v2524
  %2530 = vmatprep.subr.bf16.mxu0 0
  %2531 = vmatpush1.bf16.msra.mxu0 %v2525
  %2532 = vmatprep.subr.bf16.mxu0 0
  %2533 = vmatpush1.bf16.msra.mxu0 0
  %2534 = vmatprep.subr.bf16.mxu0 0
  %2535 = vmatpush1.bf16.msra.mxu0 0
  %2536 = vmatprep.subr.bf16.mxu0 0
  %2537 = vmatpush1.bf16.msra.mxu0 0
  %2538 = vmatprep.subr.bf16.mxu0 0
  %2539 = vmatpush1.bf16.msra.mxu0 0
  %2540 = vmatprep.subr.bf16.mxu0 0
  %2541 = vmatpush1.bf16.msra.mxu0 0
  %2542 = vmatprep.subr.bf16.mxu0 0
  %2543 = vmatpush1.bf16.msra.mxu0 0
  %2544 = vmatprep.subr.bf16.mxu0 0
  %2545 = vmatpush1.bf16.msra.mxu0 0
  %2546 = vmatprep.subr.bf16.mxu0 0
  %2547 = vmatpush1.bf16.msra.mxu0 0
  %2548 = vmatprep.subr.bf16.mxu0 0
  %2549 = vmatpush1.bf16.msra.mxu0 0
  %2550 = vmatprep.subr.bf16.mxu0 0
  %2551 = vmatpush1.bf16.msra.mxu0 0
  %2552 = vmatprep.subr.bf16.mxu0 0
  %2553 = vmatpush1.bf16.msra.mxu0 0
  %2554 = vmatprep.subr.bf16.mxu0 0
  %2555 = vmatpush1.bf16.msra.mxu0 0
  %2556 = vmatprep.subr.bf16.mxu0 0
  %2557 = vmatpush1.bf16.msra.mxu0 0
  %2558 = vmatprep.subr.bf16.mxu0 0
  %2559 = vmatpush1.bf16.msra.mxu0 0
  %2560 = vmatprep.mubr.bf16.mxu0 0
  %2561 = vmatmul.mubr.bf16.gmra.mrb[0].mxu0 %v2452
  %v2562 = vpop.f32.mrb[0].mxu0
  %v2563 = vadd.f32 %v2515, %v2562
  %v2564 = vpop.f32.mrb[0].mxu0
  %v2565 = vpop.f32.mrb[0].mxu0
  %v2566 = vadd.f32 %v2515, %v2565
  %v2567 = vpop.f32.mrb[0].mxu0
  %2568 = vmatprep.mubr.bf16.mxu0 0
  %2569 = vmatmul.mubr.bf16.gmra.mrb[0].mxu0 %v2455
  %v2570 = vpop.f32.mrb[0].mxu0
  %v2571 = vadd.f32 %v2515, %v2570
  %v2572 = vpop.f32.mrb[0].mxu0
  %v2573 = vpop.f32.mrb[0].mxu0
  %v2574 = vpop.f32.mrb[0].mxu0
  %2575 = vdwg.mxu0
  %v2579 = vcombine.high %v2563, %v2563
  %v2580 = vcombine.high %v2566, %v2566
  %v2581 = vcombine.high %v2571, %v2571
  %v2583 = vlaneseq
  %v2584 = vshrl.u32 %v2583, 7
  %v2585 = vsub.s32 2, %v2584
  %v2586 = vrot.slane %v2322, %v2585
  %v2591 = vunpack.c.l.b16 %v2304
  %v2592 = vunpack.c.l.b16 %v2305
  %v2593 = vunpack.c.l.b16 %v2306
  %v2594 = vunpack.c.l.b16 %v2307
  %v2595 = vpack.c.b16 %v2592, %v2591
  %v2596 = vpack.c.b16 %v2594, %v2593
  %2599 = vmatprep.subr.bf16.mxu0 0
  %2600 = vmatpush1.bf16.msra.mxu0 %v2595
  %2601 = vmatprep.subr.bf16.mxu0 0
  %2602 = vmatpush1.bf16.msra.mxu0 %v2596
  %2603 = vmatprep.subr.bf16.mxu0 0
  %2604 = vmatpush1.bf16.msra.mxu0 0
  %2605 = vmatprep.subr.bf16.mxu0 0
  %2606 = vmatpush1.bf16.msra.mxu0 0
  %2607 = vmatprep.subr.bf16.mxu0 0
  %2608 = vmatpush1.bf16.msra.mxu0 0
  %2609 = vmatprep.subr.bf16.mxu0 0
  %2610 = vmatpush1.bf16.msra.mxu0 0
  %2611 = vmatprep.subr.bf16.mxu0 0
  %2612 = vmatpush1.bf16.msra.mxu0 0
  %2613 = vmatprep.subr.bf16.mxu0 0
  %2614 = vmatpush1.bf16.msra.mxu0 0
  %2615 = vmatprep.subr.bf16.mxu0 0
  %2616 = vmatpush1.bf16.msra.mxu0 0
  %2617 = vmatprep.subr.bf16.mxu0 0
  %2618 = vmatpush1.bf16.msra.mxu0 0
  %2619 = vmatprep.subr.bf16.mxu0 0
  %2620 = vmatpush1.bf16.msra.mxu0 0
  %2621 = vmatprep.subr.bf16.mxu0 0
  %2622 = vmatpush1.bf16.msra.mxu0 0
  %2623 = vmatprep.subr.bf16.mxu0 0
  %2624 = vmatpush1.bf16.msra.mxu0 0
  %2625 = vmatprep.subr.bf16.mxu0 0
  %2626 = vmatpush1.bf16.msra.mxu0 0
  %2627 = vmatprep.subr.bf16.mxu0 0
  %2628 = vmatpush1.bf16.msra.mxu0 0
  %2629 = vmatprep.subr.bf16.mxu0 0
  %2630 = vmatpush1.bf16.msra.mxu0 0
  %2631 = vmatprep.mubr.bf16.mxu0 0
  %2632 = vmatmul.mubr.bf16.gmra.mrb[0].mxu0 %v2452
  %v2633 = vpop.f32.mrb[0].mxu0
  %v2634 = vadd.f32 %v2586, %v2633
  %v2635 = vpop.f32.mrb[0].mxu0
  %v2636 = vpop.f32.mrb[0].mxu0
  %v2637 = vadd.f32 %v2586, %v2636
  %v2638 = vpop.f32.mrb[0].mxu0
  %2639 = vmatprep.mubr.bf16.mxu0 0
  %2640 = vmatmul.mubr.bf16.gmra.mrb[0].mxu0 %v2455
  %v2641 = vpop.f32.mrb[0].mxu0
  %v2642 = vadd.f32 %v2586, %v2641
  %v2643 = vpop.f32.mrb[0].mxu0
  %v2644 = vpop.f32.mrb[0].mxu0
  %v2645 = vpop.f32.mrb[0].mxu0
  %2646 = vdwg.mxu0
  %v2650 = vcombine.high %v2634, %v2634
  %v2651 = vcombine.high %v2637, %v2637
  %v2652 = vcombine.high %v2642, %v2642
  %v2654 = vlaneseq
  %v2655 = vshrl.u32 %v2654, 7
  %v2656 = vsub.s32 3, %v2655
  %v2657 = vrot.slane %v2322, %v2656
  %v2662 = vunpack.c.l.b16 %v2308
  %v2663 = vunpack.c.l.b16 %v2309
  %v2664 = vunpack.c.l.b16 %v2310
  %v2665 = vunpack.c.l.b16 %v2311
  %v2666 = vpack.c.b16 %v2663, %v2662
  %v2667 = vpack.c.b16 %v2665, %v2664
  %2670 = vmatprep.subr.bf16.mxu0 0
  %2671 = vmatpush1.bf16.msra.mxu0 %v2666
  %2672 = vmatprep.subr.bf16.mxu0 0
  %2673 = vmatpush1.bf16.msra.mxu0 %v2667
  %2674 = vmatprep.subr.bf16.mxu0 0
  %2675 = vmatpush1.bf16.msra.mxu0 0
  %2676 = vmatprep.subr.bf16.mxu0 0
  %2677 = vmatpush1.bf16.msra.mxu0 0
  %2678 = vmatprep.subr.bf16.mxu0 0
  %2679 = vmatpush1.bf16.msra.mxu0 0
  %2680 = vmatprep.subr.bf16.mxu0 0
  %2681 = vmatpush1.bf16.msra.mxu0 0
  %2682 = vmatprep.subr.bf16.mxu0 0
  %2683 = vmatpush1.bf16.msra.mxu0 0
  %2684 = vmatprep.subr.bf16.mxu0 0
  %2685 = vmatpush1.bf16.msra.mxu0 0
  %2686 = vmatprep.subr.bf16.mxu0 0
  %2687 = vmatpush1.bf16.msra.mxu0 0
  %2688 = vmatprep.subr.bf16.mxu0 0
  %2689 = vmatpush1.bf16.msra.mxu0 0
  %2690 = vmatprep.subr.bf16.mxu0 0
  %2691 = vmatpush1.bf16.msra.mxu0 0
  %2692 = vmatprep.subr.bf16.mxu0 0
  %2693 = vmatpush1.bf16.msra.mxu0 0
  %2694 = vmatprep.subr.bf16.mxu0 0
  %2695 = vmatpush1.bf16.msra.mxu0 0
  %2696 = vmatprep.subr.bf16.mxu0 0
  %2697 = vmatpush1.bf16.msra.mxu0 0
  %2698 = vmatprep.subr.bf16.mxu0 0
  %2699 = vmatpush1.bf16.msra.mxu0 0
  %2700 = vmatprep.subr.bf16.mxu0 0
  %2701 = vmatpush1.bf16.msra.mxu0 0
  %2702 = vmatprep.mubr.bf16.mxu0 0
  %2703 = vmatmul.mubr.bf16.gmra.mrb[0].mxu0 %v2452
  %v2704 = vpop.f32.mrb[0].mxu0
  %v2705 = vadd.f32 %v2657, %v2704
  %v2706 = vpop.f32.mrb[0].mxu0
  %v2707 = vpop.f32.mrb[0].mxu0
  %v2708 = vadd.f32 %v2657, %v2707
  %v2709 = vpop.f32.mrb[0].mxu0
  %2710 = vmatprep.mubr.bf16.mxu0 0
  %2711 = vmatmul.mubr.bf16.gmra.mrb[0].mxu0 %v2455
  %v2712 = vpop.f32.mrb[0].mxu0
  %v2713 = vadd.f32 %v2657, %v2712
  %v2714 = vpop.f32.mrb[0].mxu0
  %v2715 = vpop.f32.mrb[0].mxu0
  %v2716 = vpop.f32.mrb[0].mxu0
  %2717 = vdwg.mxu0
  %v2721 = vcombine.high %v2705, %v2705
  %v2722 = vcombine.high %v2708, %v2708
  %v2723 = vcombine.high %v2713, %v2713
  %v2725 = vlaneseq
  %v2726 = vshrl.u32 %v2725, 7
  %v2727 = vsub.s32 4, %v2726
  %v2728 = vrot.slane %v2322, %v2727
  %v2733 = vunpack.c.l.b16 %v2312
  %v2734 = vunpack.c.l.b16 %v2313
  %v2735 = vunpack.c.l.b16 %v2314
  %v2736 = vunpack.c.l.b16 %v2315
  %v2737 = vpack.c.b16 %v2734, %v2733
  %v2738 = vpack.c.b16 %v2736, %v2735
  %2741 = vmatprep.subr.bf16.mxu0 0
  %2742 = vmatpush1.bf16.msra.mxu0 %v2737
  %2743 = vmatprep.subr.bf16.mxu0 0
  %2744 = vmatpush1.bf16.msra.mxu0 %v2738
  %2745 = vmatprep.subr.bf16.mxu0 0
  %2746 = vmatpush1.bf16.msra.mxu0 0
  %2747 = vmatprep.subr.bf16.mxu0 0
  %2748 = vmatpush1.bf16.msra.mxu0 0
  %2749 = vmatprep.subr.bf16.mxu0 0
  %2750 = vmatpush1.bf16.msra.mxu0 0
  %2751 = vmatprep.subr.bf16.mxu0 0
  %2752 = vmatpush1.bf16.msra.mxu0 0
  %2753 = vmatprep.subr.bf16.mxu0 0
  %2754 = vmatpush1.bf16.msra.mxu0 0
  %2755 = vmatprep.subr.bf16.mxu0 0
  %2756 = vmatpush1.bf16.msra.mxu0 0
  %2757 = vmatprep.subr.bf16.mxu0 0
  %2758 = vmatpush1.bf16.msra.mxu0 0
  %2759 = vmatprep.subr.bf16.mxu0 0
  %2760 = vmatpush1.bf16.msra.mxu0 0
  %2761 = vmatprep.subr.bf16.mxu0 0
  %2762 = vmatpush1.bf16.msra.mxu0 0
  %2763 = vmatprep.subr.bf16.mxu0 0
  %2764 = vmatpush1.bf16.msra.mxu0 0
  %2765 = vmatprep.subr.bf16.mxu0 0
  %2766 = vmatpush1.bf16.msra.mxu0 0
  %2767 = vmatprep.subr.bf16.mxu0 0
  %2768 = vmatpush1.bf16.msra.mxu0 0
  %2769 = vmatprep.subr.bf16.mxu0 0
  %2770 = vmatpush1.bf16.msra.mxu0 0
  %2771 = vmatprep.subr.bf16.mxu0 0
  %2772 = vmatpush1.bf16.msra.mxu0 0
  %2773 = vmatprep.mubr.bf16.mxu0 0
  %2774 = vmatmul.mubr.bf16.gmra.mrb[0].mxu0 %v2452
  %v2775 = vpop.f32.mrb[0].mxu0
  %v2776 = vadd.f32 %v2728, %v2775
  %v2777 = vpop.f32.mrb[0].mxu0
  %v2778 = vpop.f32.mrb[0].mxu0
  %v2779 = vadd.f32 %v2728, %v2778
  %v2780 = vpop.f32.mrb[0].mxu0
  %2781 = vmatprep.mubr.bf16.mxu0 0
  %2782 = vmatmul.mubr.bf16.gmra.mrb[0].mxu0 %v2455
  %v2783 = vpop.f32.mrb[0].mxu0
  %v2784 = vadd.f32 %v2728, %v2783
  %v2785 = vpop.f32.mrb[0].mxu0
  %v2786 = vpop.f32.mrb[0].mxu0
  %v2787 = vpop.f32.mrb[0].mxu0
  %2788 = vdwg.mxu0
  %v2792 = vcombine.high %v2776, %v2776
  %v2793 = vcombine.high %v2779, %v2779
  %v2794 = vcombine.high %v2784, %v2784
  %v2796 = vlaneseq
  %v2797 = vshrl.u32 %v2796, 7
  %v2798 = vsub.s32 5, %v2797
  %v2799 = vrot.slane %v2322, %v2798
  %v2804 = vunpack.c.l.b16 %v2316
  %v2805 = vunpack.c.l.b16 %v2317
  %v2806 = vunpack.c.l.b16 %v2318
  %v2807 = vunpack.c.l.b16 %v2319
  %v2808 = vpack.c.b16 %v2805, %v2804
  %v2809 = vpack.c.b16 %v2807, %v2806
  %2812 = vmatprep.subr.bf16.mxu0 0
  %2813 = vmatpush1.bf16.msra.mxu0 %v2808
  %2814 = vmatprep.subr.bf16.mxu0 0
  %2815 = vmatpush1.bf16.msra.mxu0 %v2809
  %2816 = vmatprep.subr.bf16.mxu0 0
  %2817 = vmatpush1.bf16.msra.mxu0 0
  %2818 = vmatprep.subr.bf16.mxu0 0
  %2819 = vmatpush1.bf16.msra.mxu0 0
  %2820 = vmatprep.subr.bf16.mxu0 0
  %2821 = vmatpush1.bf16.msra.mxu0 0
  %2822 = vmatprep.subr.bf16.mxu0 0
  %2823 = vmatpush1.bf16.msra.mxu0 0
  %2824 = vmatprep.subr.bf16.mxu0 0
  %2825 = vmatpush1.bf16.msra.mxu0 0
  %2826 = vmatprep.subr.bf16.mxu0 0
  %2827 = vmatpush1.bf16.msra.mxu0 0
  %2828 = vmatprep.subr.bf16.mxu0 0
  %2829 = vmatpush1.bf16.msra.mxu0 0
  %2830 = vmatprep.subr.bf16.mxu0 0
  %2831 = vmatpush1.bf16.msra.mxu0 0
  %2832 = vmatprep.subr.bf16.mxu0 0
  %2833 = vmatpush1.bf16.msra.mxu0 0
  %2834 = vmatprep.subr.bf16.mxu0 0
  %2835 = vmatpush1.bf16.msra.mxu0 0
  %2836 = vmatprep.subr.bf16.mxu0 0
  %2837 = vmatpush1.bf16.msra.mxu0 0
  %2838 = vmatprep.subr.bf16.mxu0 0
  %2839 = vmatpush1.bf16.msra.mxu0 0
  %2840 = vmatprep.subr.bf16.mxu0 0
  %2841 = vmatpush1.bf16.msra.mxu0 0
  %2842 = vmatprep.subr.bf16.mxu0 0
  %2843 = vmatpush1.bf16.msra.mxu0 0
  %2844 = vmatprep.mubr.bf16.mxu0 0
  %2845 = vmatmul.mubr.bf16.gmra.mrb[0].mxu0 %v2452
  %v2846 = vpop.f32.mrb[0].mxu0
  %v2847 = vadd.f32 %v2799, %v2846
  %v2848 = vpop.f32.mrb[0].mxu0
  %v2849 = vpop.f32.mrb[0].mxu0
  %v2850 = vadd.f32 %v2799, %v2849
  %v2851 = vpop.f32.mrb[0].mxu0
  %2852 = vmatprep.mubr.bf16.mxu0 0
  %2853 = vmatmul.mubr.bf16.gmra.mrb[0].mxu0 %v2455
  %v2854 = vpop.f32.mrb[0].mxu0
  %v2855 = vadd.f32 %v2799, %v2854
  %v2856 = vpop.f32.mrb[0].mxu0
  %v2857 = vpop.f32.mrb[0].mxu0
  %v2858 = vpop.f32.mrb[0].mxu0
  %2859 = vdwg.mxu0
  %v2863 = vcombine.high %v2847, %v2847
  %v2864 = vcombine.high %v2850, %v2850
  %v2865 = vcombine.high %v2855, %v2855
  %v2867 = vcombine.low %v2492, %v2508
  %v2868 = vcombine.low %v2509, %v2500
  %v2869 = vcombine.low %v2563, %v2579
  %v2870 = vcombine.low %v2580, %v2571
  %v2875 = vpack.c.bf16 %v2495, %v2867
  %v2876 = vpack.c.bf16 %v2510, %v2868
  %v2877 = vpack.c.bf16 %v2566, %v2869
  %v2878 = vpack.c.bf16 %v2581, %v2870
  %v2879 = vcombine.low %v2634, %v2650
  %v2880 = vcombine.low %v2651, %v2642
  %v2881 = vcombine.low %v2705, %v2721
  %v2882 = vcombine.low %v2722, %v2713
  %v2887 = vpack.c.bf16 %v2637, %v2879
  %v2888 = vpack.c.bf16 %v2652, %v2880
  %v2889 = vpack.c.bf16 %v2708, %v2881
  %v2890 = vpack.c.bf16 %v2723, %v2882
  %v2892 = vsel %vm1319, %v2875, 0
  %v2895 = vsel %vm1319, %v2887, 0
  %2897 = vmatprep.subr.bf16.mxu0 0
  %2898 = vmatpush1.bf16.xpose.msra.mxu0 %v2895
  %2899 = vmatprep.subr.bf16.mxu0 0
  %2900 = vmatpush1.bf16.xpose.msra.mxu0 0
  %2901 = vmatprep.subr.bf16.mxu0 0
  %2902 = vmatpush1.bf16.xpose.msra.mxu0 0
  %2903 = vmatprep.subr.bf16.mxu0 0
  %2904 = vmatpush1.bf16.xpose.msra.mxu0 0
  %2905 = vmatprep.subr.bf16.mxu0 0
  %2906 = vmatpush1.bf16.xpose.msra.mxu0 0
  %2907 = vmatprep.subr.bf16.mxu0 0
  %2908 = vmatpush1.bf16.xpose.msra.mxu0 0
  %2909 = vmatprep.subr.bf16.mxu0 0
  %2910 = vmatpush1.bf16.xpose.msra.mxu0 0
  %2911 = vmatprep.subr.bf16.mxu0 0
  %2912 = vmatpush1.bf16.xpose.msra.mxu0 0
  %2913 = vmatprep.subr.bf16.mxu0 0
  %2914 = vmatpush1.bf16.xpose.msra.mxu0 0
  %2915 = vmatprep.subr.bf16.mxu0 0
  %2916 = vmatpush1.bf16.xpose.msra.mxu0 0
  %2917 = vmatprep.subr.bf16.mxu0 0
  %2918 = vmatpush1.bf16.xpose.msra.mxu0 0
  %2919 = vmatprep.subr.bf16.mxu0 0
  %2920 = vmatpush1.bf16.xpose.msra.mxu0 0
  %2921 = vmatprep.subr.bf16.mxu0 0
  %2922 = vmatpush1.bf16.xpose.msra.mxu0 0
  %2923 = vmatprep.subr.bf16.mxu0 0
  %2924 = vmatpush1.bf16.xpose.msra.mxu0 0
  %2925 = vmatprep.subr.bf16.mxu0 0
  %2926 = vmatpush1.bf16.xpose.msra.mxu0 0
  %2927 = vmatprep.subr.bf16.mxu0 0
  %2928 = vmatpush1.bf16.xpose.msra.mxu0 0
  %2929 = vmatprep.mubr.bf16.mxu0 0
  %2930 = vmatmul.mubr.bf16.gmra.mrb[0].mxu0 %v2892
  %v2931 = vpop.f32.mrb[0].mxu0
  %v2932 = vadd.f32 0.0, %v2931
  %v2933 = vpop.f32.mrb[0].mxu0
  %v2934 = vpop.f32.mrb[0].mxu0
  %v2935 = vadd.f32 0.0, %v2934
  %v2936 = vpop.f32.mrb[0].mxu0
  %2937 = vdwg.mxu0
  %v2939 = vsel %vm1319, %v2876, 0
  %v2942 = vsel %vm1319, %v2888, 0
  %2944 = vmatprep.subr.bf16.mxu0 0
  %2945 = vmatpush1.bf16.xpose.msra.mxu0 %v2942
  %2946 = vmatprep.subr.bf16.mxu0 0
  %2947 = vmatpush1.bf16.xpose.msra.mxu0 0
  %2948 = vmatprep.subr.bf16.mxu0 0
  %2949 = vmatpush1.bf16.xpose.msra.mxu0 0
  %2950 = vmatprep.subr.bf16.mxu0 0
  %2951 = vmatpush1.bf16.xpose.msra.mxu0 0
  %2952 = vmatprep.subr.bf16.mxu0 0
  %2953 = vmatpush1.bf16.xpose.msra.mxu0 0
  %2954 = vmatprep.subr.bf16.mxu0 0
  %2955 = vmatpush1.bf16.xpose.msra.mxu0 0
  %2956 = vmatprep.subr.bf16.mxu0 0
  %2957 = vmatpush1.bf16.xpose.msra.mxu0 0
  %2958 = vmatprep.subr.bf16.mxu0 0
  %2959 = vmatpush1.bf16.xpose.msra.mxu0 0
  %2960 = vmatprep.subr.bf16.mxu0 0
  %2961 = vmatpush1.bf16.xpose.msra.mxu0 0
  %2962 = vmatprep.subr.bf16.mxu0 0
  %2963 = vmatpush1.bf16.xpose.msra.mxu0 0
  %2964 = vmatprep.subr.bf16.mxu0 0
  %2965 = vmatpush1.bf16.xpose.msra.mxu0 0
  %2966 = vmatprep.subr.bf16.mxu0 0
  %2967 = vmatpush1.bf16.xpose.msra.mxu0 0
  %2968 = vmatprep.subr.bf16.mxu0 0
  %2969 = vmatpush1.bf16.xpose.msra.mxu0 0
  %2970 = vmatprep.subr.bf16.mxu0 0
  %2971 = vmatpush1.bf16.xpose.msra.mxu0 0
  %2972 = vmatprep.subr.bf16.mxu0 0
  %2973 = vmatpush1.bf16.xpose.msra.mxu0 0
  %2974 = vmatprep.subr.bf16.mxu0 0
  %2975 = vmatpush1.bf16.xpose.msra.mxu0 0
  %2976 = vmatprep.mubr.bf16.mxu0 0
  %2977 = vmatmul.mubr.bf16.gmra.mrb[0].mxu0 %v2939
  %v2978 = vpop.f32.mrb[0].mxu0
  %v2979 = vadd.f32 0.0, %v2978
  %v2980 = vpop.f32.mrb[0].mxu0
  %v2981 = vpop.f32.mrb[0].mxu0
  %v2982 = vadd.f32 0.0, %v2981
  %v2983 = vpop.f32.mrb[0].mxu0
  %2984 = vdwg.mxu0
  %v2986 = vsel %vm1319, %v2877, 0
  %v2989 = vsel %vm1319, %v2889, 0
  %2991 = vmatprep.subr.bf16.mxu0 0
  %2992 = vmatpush1.bf16.xpose.msra.mxu0 %v2989
  %2993 = vmatprep.subr.bf16.mxu0 0
  %2994 = vmatpush1.bf16.xpose.msra.mxu0 0
  %2995 = vmatprep.subr.bf16.mxu0 0
  %2996 = vmatpush1.bf16.xpose.msra.mxu0 0
  %2997 = vmatprep.subr.bf16.mxu0 0
  %2998 = vmatpush1.bf16.xpose.msra.mxu0 0
  %2999 = vmatprep.subr.bf16.mxu0 0
  %3000 = vmatpush1.bf16.xpose.msra.mxu0 0
  %3001 = vmatprep.subr.bf16.mxu0 0
  %3002 = vmatpush1.bf16.xpose.msra.mxu0 0
  %3003 = vmatprep.subr.bf16.mxu0 0
  %3004 = vmatpush1.bf16.xpose.msra.mxu0 0
  %3005 = vmatprep.subr.bf16.mxu0 0
  %3006 = vmatpush1.bf16.xpose.msra.mxu0 0
  %3007 = vmatprep.subr.bf16.mxu0 0
  %3008 = vmatpush1.bf16.xpose.msra.mxu0 0
  %3009 = vmatprep.subr.bf16.mxu0 0
  %3010 = vmatpush1.bf16.xpose.msra.mxu0 0
  %3011 = vmatprep.subr.bf16.mxu0 0
  %3012 = vmatpush1.bf16.xpose.msra.mxu0 0
  %3013 = vmatprep.subr.bf16.mxu0 0
  %3014 = vmatpush1.bf16.xpose.msra.mxu0 0
  %3015 = vmatprep.subr.bf16.mxu0 0
  %3016 = vmatpush1.bf16.xpose.msra.mxu0 0
  %3017 = vmatprep.subr.bf16.mxu0 0
  %3018 = vmatpush1.bf16.xpose.msra.mxu0 0
  %3019 = vmatprep.subr.bf16.mxu0 0
  %3020 = vmatpush1.bf16.xpose.msra.mxu0 0
  %3021 = vmatprep.subr.bf16.mxu0 0
  %3022 = vmatpush1.bf16.xpose.msra.mxu0 0
  %3023 = vmatprep.mubr.bf16.mxu0 0
  %3024 = vmatmul.mubr.bf16.gmra.mrb[0].mxu0 %v2986
  %v3025 = vpop.f32.mrb[0].mxu0
  %v3026 = vadd.f32 0.0, %v3025
  %v3027 = vpop.f32.mrb[0].mxu0
  %v3028 = vpop.f32.mrb[0].mxu0
  %v3029 = vadd.f32 0.0, %v3028
  %v3030 = vpop.f32.mrb[0].mxu0
  %3031 = vdwg.mxu0
  %v3033 = vsel %vm1319, %v2878, 0
  %v3036 = vsel %vm1319, %v2890, 0
  %3038 = vmatprep.subr.bf16.mxu0 0
  %3039 = vmatpush1.bf16.xpose.msra.mxu0 %v3036
  %3040 = vmatprep.subr.bf16.mxu0 0
  %3041 = vmatpush1.bf16.xpose.msra.mxu0 0
  %3042 = vmatprep.subr.bf16.mxu0 0
  %3043 = vmatpush1.bf16.xpose.msra.mxu0 0
  %3044 = vmatprep.subr.bf16.mxu0 0
  %3045 = vmatpush1.bf16.xpose.msra.mxu0 0
  %3046 = vmatprep.subr.bf16.mxu0 0
  %3047 = vmatpush1.bf16.xpose.msra.mxu0 0
  %3048 = vmatprep.subr.bf16.mxu0 0
  %3049 = vmatpush1.bf16.xpose.msra.mxu0 0
  %3050 = vmatprep.subr.bf16.mxu0 0
  %3051 = vmatpush1.bf16.xpose.msra.mxu0 0
  %3052 = vmatprep.subr.bf16.mxu0 0
  %3053 = vmatpush1.bf16.xpose.msra.mxu0 0
  %3054 = vmatprep.subr.bf16.mxu0 0
  %3055 = vmatpush1.bf16.xpose.msra.mxu0 0
  %3056 = vmatprep.subr.bf16.mxu0 0
  %3057 = vmatpush1.bf16.xpose.msra.mxu0 0
  %3058 = vmatprep.subr.bf16.mxu0 0
  %3059 = vmatpush1.bf16.xpose.msra.mxu0 0
  %3060 = vmatprep.subr.bf16.mxu0 0
  %3061 = vmatpush1.bf16.xpose.msra.mxu0 0
  %3062 = vmatprep.subr.bf16.mxu0 0
  %3063 = vmatpush1.bf16.xpose.msra.mxu0 0
  %3064 = vmatprep.subr.bf16.mxu0 0
  %3065 = vmatpush1.bf16.xpose.msra.mxu0 0
  %3066 = vmatprep.subr.bf16.mxu0 0
  %3067 = vmatpush1.bf16.xpose.msra.mxu0 0
  %3068 = vmatprep.subr.bf16.mxu0 0
  %3069 = vmatpush1.bf16.xpose.msra.mxu0 0
  %3070 = vmatprep.mubr.bf16.mxu0 0
  %3071 = vmatmul.mubr.bf16.gmra.mrb[0].mxu0 %v3033
  %v3072 = vpop.f32.mrb[0].mxu0
  %v3073 = vadd.f32 0.0, %v3072
  %v3074 = vpop.f32.mrb[0].mxu0
  %v3075 = vpop.f32.mrb[0].mxu0
  %v3076 = vadd.f32 0.0, %v3075
  %v3077 = vpop.f32.mrb[0].mxu0
  %3078 = vdwg.mxu0
  %v3079 = vmul.f32 %v2932, 0.25
  %v3080 = vmul.f32 %v2935, 0.25
  %v3081 = vmul.f32 %v2979, 0.25
  %v3082 = vmul.f32 %v2982, 0.25
  %v3083 = vmul.f32 %v3026, 0.25
  %v3084 = vmul.f32 %v3029, 0.25
  %v3085 = vmul.f32 %v3073, 0.25
  %v3086 = vmul.f32 %v3076, 0.25
  %v3087 = vsel %vm1518, %v3079, -1e+09
  %v3088 = vsel %vm1519, %v3080, -1e+09
  %v3089 = vsel %vm1518, %v3081, -1e+09
  %v3090 = vsel %vm1519, %v3082, -1e+09
  %v3091 = vsel %vm1518, %v3083, -1e+09
  %v3092 = vsel %vm1519, %v3084, -1e+09
  %v3093 = vsel %vm1518, %v3085, -1e+09
  %v3094 = vsel %vm1519, %v3086, -1e+09
  %v3095 = vsel %vm1528, %v3087, -inf
  %3096 = vmax.xlane.f32.xlu0 %v3095
  %v3097 = vpop.xlane.xlu0 %3096
  %v3098 = vsel %vm1532, %v3088, -inf
  %3099 = vmax.xlane.f32.xlu0 %v3098
  %v3100 = vpop.xlane.xlu0 %3099
  %v3101 = vsel %vm1528, %v3089, -inf
  %3102 = vmax.xlane.f32.xlu0 %v3101
  %v3103 = vpop.xlane.xlu0 %3102
  %v3104 = vsel %vm1532, %v3090, -inf
  %3105 = vmax.xlane.f32.xlu0 %v3104
  %v3106 = vpop.xlane.xlu0 %3105
  %v3107 = vsel %vm1528, %v3091, -inf
  %3108 = vmax.xlane.f32.xlu0 %v3107
  %v3109 = vpop.xlane.xlu0 %3108
  %v3110 = vsel %vm1532, %v3092, -inf
  %3111 = vmax.xlane.f32.xlu0 %v3110
  %v3112 = vpop.xlane.xlu0 %3111
  %v3113 = vsel %vm1528, %v3093, -inf
  %3114 = vmax.xlane.f32.xlu0 %v3113
  %v3115 = vpop.xlane.xlu0 %3114
  %v3116 = vsel %vm1532, %v3094, -inf
  %3117 = vmax.xlane.f32.xlu0 %v3116
  %v3118 = vpop.xlane.xlu0 %3117
  %v3119 = vsub.f32 %v3087, %v3097
  %v3120 = vsub.f32 %v3088, %v3100
  %v3121 = vsub.f32 %v3089, %v3103
  %v3122 = vsub.f32 %v3090, %v3106
  %v3123 = vsub.f32 %v3091, %v3109
  %v3124 = vsub.f32 %v3092, %v3112
  %v3125 = vsub.f32 %v3093, %v3115
  %v3126 = vsub.f32 %v3094, %v3118
  %v3127 = vmul.f32 %v3119, 1.442695
  %v3128 = vpow.pop %v3127
  %v3129 = vmul.f32 %v3120, 1.442695
  %v3130 = vpow.pop %v3129
  %v3131 = vmul.f32 %v3121, 1.442695
  %v3132 = vpow.pop %v3131
  %v3133 = vmul.f32 %v3122, 1.442695
  %v3134 = vpow.pop %v3133
  %v3135 = vmul.f32 %v3123, 1.442695
  %v3136 = vpow.pop %v3135
  %v3137 = vmul.f32 %v3124, 1.442695
  %v3138 = vpow.pop %v3137
  %v3139 = vmul.f32 %v3125, 1.442695
  %v3140 = vpow.pop %v3139
  %v3141 = vmul.f32 %v3126, 1.442695
  %v3142 = vpow.pop %v3141
  %v3143 = vsel %vm1528, %v3128, 0.0
  %3144 = vadd.xlane.f32.xlu0 %v3143
  %v3145 = vpop.xlane.xlu0 %3144
  %v3146 = vsel %vm1532, %v3130, 0.0
  %3147 = vadd.xlane.f32.xlu0 %v3146
  %v3148 = vpop.xlane.xlu0 %3147
  %v3149 = vsel %vm1528, %v3132, 0.0
  %3150 = vadd.xlane.f32.xlu0 %v3149
  %v3151 = vpop.xlane.xlu0 %3150
  %v3152 = vsel %vm1532, %v3134, 0.0
  %3153 = vadd.xlane.f32.xlu0 %v3152
  %v3154 = vpop.xlane.xlu0 %3153
  %v3155 = vsel %vm1528, %v3136, 0.0
  %3156 = vadd.xlane.f32.xlu0 %v3155
  %v3157 = vpop.xlane.xlu0 %3156
  %v3158 = vsel %vm1532, %v3138, 0.0
  %3159 = vadd.xlane.f32.xlu0 %v3158
  %v3160 = vpop.xlane.xlu0 %3159
  %v3161 = vsel %vm1528, %v3140, 0.0
  %3162 = vadd.xlane.f32.xlu0 %v3161
  %v3163 = vpop.xlane.xlu0 %3162
  %v3164 = vsel %vm1532, %v3142, 0.0
  %3165 = vadd.xlane.f32.xlu0 %v3164
  %v3166 = vpop.xlane.xlu0 %3165
  %v3167 = vrcp.pop %v3145
  %v3168 = vrcp.pop %v3148
  %v3169 = vrcp.pop %v3151
  %v3170 = vrcp.pop %v3154
  %v3171 = vrcp.pop %v3157
  %v3172 = vrcp.pop %v3160
  %v3173 = vrcp.pop %v3163
  %v3174 = vrcp.pop %v3166
  %v3175 = vmul.f32 %v3128, %v3167
  %v3176 = vmul.f32 %v3130, %v3168
  %v3177 = vmul.f32 %v3132, %v3169
  %v3178 = vmul.f32 %v3134, %v3170
  %v3179 = vmul.f32 %v3136, %v3171
  %v3180 = vmul.f32 %v3138, %v3172
  %v3181 = vmul.f32 %v3140, %v3173
  %v3182 = vmul.f32 %v3142, %v3174
  %v3183 = vpack.c.bf16 %v3176, %v3175
  %v3184 = vpack.c.bf16 %v3178, %v3177
  %v3185 = vpack.c.bf16 %v3180, %v3179
  %v3186 = vpack.c.bf16 %v3182, %v3181
  %v3187 = vcombine.low %v2776, %v2792
  %v3188 = vcombine.low %v2793, %v2784
  %v3189 = vcombine.low %v2847, %v2863
  %v3190 = vcombine.low %v2864, %v2855
  %v3195 = vpack.c.bf16 %v2779, %v3187
  %v3196 = vpack.c.bf16 %v2794, %v3188
  %v3197 = vpack.c.bf16 %v2850, %v3189
  %v3198 = vpack.c.bf16 %v2865, %v3190
  %v3200 = vsel %vm1528, %v3183, 0
  %v3203 = vsel %vm1637, %v3195, 0
  %3205 = vmatprep.subr.bf16.mxu0 0
  %3206 = vmatpush1.bf16.msra.mxu0 %v3203
  %3207 = vmatprep.subr.bf16.mxu0 0
  %3208 = vmatpush1.bf16.msra.mxu0 0
  %3209 = vmatprep.subr.bf16.mxu0 0
  %3210 = vmatpush1.bf16.msra.mxu0 0
  %3211 = vmatprep.subr.bf16.mxu0 0
  %3212 = vmatpush1.bf16.msra.mxu0 0
  %3213 = vmatprep.subr.bf16.mxu0 0
  %3214 = vmatpush1.bf16.msra.mxu0 0
  %3215 = vmatprep.subr.bf16.mxu0 0
  %3216 = vmatpush1.bf16.msra.mxu0 0
  %3217 = vmatprep.subr.bf16.mxu0 0
  %3218 = vmatpush1.bf16.msra.mxu0 0
  %3219 = vmatprep.subr.bf16.mxu0 0
  %3220 = vmatpush1.bf16.msra.mxu0 0
  %3221 = vmatprep.subr.bf16.mxu0 0
  %3222 = vmatpush1.bf16.msra.mxu0 0
  %3223 = vmatprep.subr.bf16.mxu0 0
  %3224 = vmatpush1.bf16.msra.mxu0 0
  %3225 = vmatprep.subr.bf16.mxu0 0
  %3226 = vmatpush1.bf16.msra.mxu0 0
  %3227 = vmatprep.subr.bf16.mxu0 0
  %3228 = vmatpush1.bf16.msra.mxu0 0
  %3229 = vmatprep.subr.bf16.mxu0 0
  %3230 = vmatpush1.bf16.msra.mxu0 0
  %3231 = vmatprep.subr.bf16.mxu0 0
  %3232 = vmatpush1.bf16.msra.mxu0 0
  %3233 = vmatprep.subr.bf16.mxu0 0
  %3234 = vmatpush1.bf16.msra.mxu0 0
  %3235 = vmatprep.subr.bf16.mxu0 0
  %3236 = vmatpush1.bf16.msra.mxu0 0
  %3237 = vmatprep.mubr.bf16.mxu0 0
  %3238 = vmatmul.mubr.bf16.gmra.mrb[0].mxu0 %v3200
  %v3239 = vpop.f32.mrb[0].mxu0
  %v3240 = vadd.f32 0.0, %v3239
  %v3241 = vpop.f32.mrb[0].mxu0
  %v3242 = vpop.f32.mrb[0].mxu0
  %v3243 = vadd.f32 0.0, %v3242
  %v3244 = vpop.f32.mrb[0].mxu0
  %3245 = vdwg.mxu0
  %v3247 = vsel %vm1528, %v3184, 0
  %v3250 = vsel %vm1637, %v3196, 0
  %3252 = vmatprep.subr.bf16.mxu0 0
  %3253 = vmatpush1.bf16.msra.mxu0 %v3250
  %3254 = vmatprep.subr.bf16.mxu0 0
  %3255 = vmatpush1.bf16.msra.mxu0 0
  %3256 = vmatprep.subr.bf16.mxu0 0
  %3257 = vmatpush1.bf16.msra.mxu0 0
  %3258 = vmatprep.subr.bf16.mxu0 0
  %3259 = vmatpush1.bf16.msra.mxu0 0
  %3260 = vmatprep.subr.bf16.mxu0 0
  %3261 = vmatpush1.bf16.msra.mxu0 0
  %3262 = vmatprep.subr.bf16.mxu0 0
  %3263 = vmatpush1.bf16.msra.mxu0 0
  %3264 = vmatprep.subr.bf16.mxu0 0
  %3265 = vmatpush1.bf16.msra.mxu0 0
  %3266 = vmatprep.subr.bf16.mxu0 0
  %3267 = vmatpush1.bf16.msra.mxu0 0
  %3268 = vmatprep.subr.bf16.mxu0 0
  %3269 = vmatpush1.bf16.msra.mxu0 0
  %3270 = vmatprep.subr.bf16.mxu0 0
  %3271 = vmatpush1.bf16.msra.mxu0 0
  %3272 = vmatprep.subr.bf16.mxu0 0
  %3273 = vmatpush1.bf16.msra.mxu0 0
  %3274 = vmatprep.subr.bf16.mxu0 0
  %3275 = vmatpush1.bf16.msra.mxu0 0
  %3276 = vmatprep.subr.bf16.mxu0 0
  %3277 = vmatpush1.bf16.msra.mxu0 0
  %3278 = vmatprep.subr.bf16.mxu0 0
  %3279 = vmatpush1.bf16.msra.mxu0 0
  %3280 = vmatprep.subr.bf16.mxu0 0
  %3281 = vmatpush1.bf16.msra.mxu0 0
  %3282 = vmatprep.subr.bf16.mxu0 0
  %3283 = vmatpush1.bf16.msra.mxu0 0
  %3284 = vmatprep.mubr.bf16.mxu0 0
  %3285 = vmatmul.mubr.bf16.gmra.mrb[0].mxu0 %v3247
  %v3286 = vpop.f32.mrb[0].mxu0
  %v3287 = vadd.f32 0.0, %v3286
  %v3288 = vpop.f32.mrb[0].mxu0
  %v3289 = vpop.f32.mrb[0].mxu0
  %v3290 = vadd.f32 0.0, %v3289
  %v3291 = vpop.f32.mrb[0].mxu0
  %3292 = vdwg.mxu0
  %v3294 = vsel %vm1528, %v3185, 0
  %v3297 = vsel %vm1637, %v3197, 0
  %3299 = vmatprep.subr.bf16.mxu0 0
  %3300 = vmatpush1.bf16.msra.mxu0 %v3297
  %3301 = vmatprep.subr.bf16.mxu0 0
  %3302 = vmatpush1.bf16.msra.mxu0 0
  %3303 = vmatprep.subr.bf16.mxu0 0
  %3304 = vmatpush1.bf16.msra.mxu0 0
  %3305 = vmatprep.subr.bf16.mxu0 0
  %3306 = vmatpush1.bf16.msra.mxu0 0
  %3307 = vmatprep.subr.bf16.mxu0 0
  %3308 = vmatpush1.bf16.msra.mxu0 0
  %3309 = vmatprep.subr.bf16.mxu0 0
  %3310 = vmatpush1.bf16.msra.mxu0 0
  %3311 = vmatprep.subr.bf16.mxu0 0
  %3312 = vmatpush1.bf16.msra.mxu0 0
  %3313 = vmatprep.subr.bf16.mxu0 0
  %3314 = vmatpush1.bf16.msra.mxu0 0
  %3315 = vmatprep.subr.bf16.mxu0 0
  %3316 = vmatpush1.bf16.msra.mxu0 0
  %3317 = vmatprep.subr.bf16.mxu0 0
  %3318 = vmatpush1.bf16.msra.mxu0 0
  %3319 = vmatprep.subr.bf16.mxu0 0
  %3320 = vmatpush1.bf16.msra.mxu0 0
  %3321 = vmatprep.subr.bf16.mxu0 0
  %3322 = vmatpush1.bf16.msra.mxu0 0
  %3323 = vmatprep.subr.bf16.mxu0 0
  %3324 = vmatpush1.bf16.msra.mxu0 0
  %3325 = vmatprep.subr.bf16.mxu0 0
  %3326 = vmatpush1.bf16.msra.mxu0 0
  %3327 = vmatprep.subr.bf16.mxu0 0
  %3328 = vmatpush1.bf16.msra.mxu0 0
  %3329 = vmatprep.subr.bf16.mxu0 0
  %3330 = vmatpush1.bf16.msra.mxu0 0
  %3331 = vmatprep.mubr.bf16.mxu0 0
  %3332 = vmatmul.mubr.bf16.gmra.mrb[0].mxu0 %v3294
  %v3333 = vpop.f32.mrb[0].mxu0
  %v3334 = vadd.f32 0.0, %v3333
  %v3335 = vpop.f32.mrb[0].mxu0
  %v3336 = vpop.f32.mrb[0].mxu0
  %v3337 = vadd.f32 0.0, %v3336
  %v3338 = vpop.f32.mrb[0].mxu0
  %3339 = vdwg.mxu0
  %v3341 = vsel %vm1528, %v3186, 0
  %v3344 = vsel %vm1637, %v3198, 0
  %3346 = vmatprep.subr.bf16.mxu0 0
  %3347 = vmatpush1.bf16.msra.mxu0 %v3344
  %3348 = vmatprep.subr.bf16.mxu0 0
  %3349 = vmatpush1.bf16.msra.mxu0 0
  %3350 = vmatprep.subr.bf16.mxu0 0
  %3351 = vmatpush1.bf16.msra.mxu0 0
  %3352 = vmatprep.subr.bf16.mxu0 0
  %3353 = vmatpush1.bf16.msra.mxu0 0
  %3354 = vmatprep.subr.bf16.mxu0 0
  %3355 = vmatpush1.bf16.msra.mxu0 0
  %3356 = vmatprep.subr.bf16.mxu0 0
  %3357 = vmatpush1.bf16.msra.mxu0 0
  %3358 = vmatprep.subr.bf16.mxu0 0
  %3359 = vmatpush1.bf16.msra.mxu0 0
  %3360 = vmatprep.subr.bf16.mxu0 0
  %3361 = vmatpush1.bf16.msra.mxu0 0
  %3362 = vmatprep.subr.bf16.mxu0 0
  %3363 = vmatpush1.bf16.msra.mxu0 0
  %3364 = vmatprep.subr.bf16.mxu0 0
  %3365 = vmatpush1.bf16.msra.mxu0 0
  %3366 = vmatprep.subr.bf16.mxu0 0
  %3367 = vmatpush1.bf16.msra.mxu0 0
  %3368 = vmatprep.subr.bf16.mxu0 0
  %3369 = vmatpush1.bf16.msra.mxu0 0
  %3370 = vmatprep.subr.bf16.mxu0 0
  %3371 = vmatpush1.bf16.msra.mxu0 0
  %3372 = vmatprep.subr.bf16.mxu0 0
  %3373 = vmatpush1.bf16.msra.mxu0 0
  %3374 = vmatprep.subr.bf16.mxu0 0
  %3375 = vmatpush1.bf16.msra.mxu0 0
  %3376 = vmatprep.subr.bf16.mxu0 0
  %3377 = vmatpush1.bf16.msra.mxu0 0
  %3378 = vmatprep.mubr.bf16.mxu0 0
  %3379 = vmatmul.mubr.bf16.gmra.mrb[0].mxu0 %v3341
  %v3380 = vpop.f32.mrb[0].mxu0
  %v3381 = vadd.f32 0.0, %v3380
  %v3382 = vpop.f32.mrb[0].mxu0
  %v3383 = vpop.f32.mrb[0].mxu0
  %v3384 = vadd.f32 0.0, %v3383
  %v3385 = vpop.f32.mrb[0].mxu0
  %3386 = vdwg.mxu0
  %v3391 = vcombine.high %v3240, %v3240
  %v3392 = vcombine.high %v3287, %v3287
  %v3393 = vcombine.low %v3240, %v3391
  %v3394 = vcombine.low %v3243, %v3287
  %v3395 = vcombine.low %v3392, %v3290
  %v3399 = vpack.c.bf16 %v3394, %v3393
  %v3400 = vpack.c.bf16 %v3395, %v3395
  %v3403 = vunpack.c.l.b16 %v2324
  %v3404 = vunpack.c.l.b16 %v2325
  %v3405 = vpack.c.b16 %v3404, %v3403
  %v3408 = vsel %vm1319, %v3399, 0
  %v3411 = vsel %vm1319, %v3400, 0
  %3413 = vmatprep.subr.bf16.mxu0 0
  %3414 = vmatpush1.bf16.msra.mxu0 %v3405
  %3415 = vmatprep.subr.bf16.mxu0 0
  %3416 = vmatpush1.bf16.msra.mxu0 0
  %3417 = vmatprep.subr.bf16.mxu0 0
  %3418 = vmatpush1.bf16.msra.mxu0 0
  %3419 = vmatprep.subr.bf16.mxu0 0
  %3420 = vmatpush1.bf16.msra.mxu0 0
  %3421 = vmatprep.subr.bf16.mxu0 0
  %3422 = vmatpush1.bf16.msra.mxu0 0
  %3423 = vmatprep.subr.bf16.mxu0 0
  %3424 = vmatpush1.bf16.msra.mxu0 0
  %3425 = vmatprep.subr.bf16.mxu0 0
  %3426 = vmatpush1.bf16.msra.mxu0 0
  %3427 = vmatprep.subr.bf16.mxu0 0
  %3428 = vmatpush1.bf16.msra.mxu0 0
  %3429 = vmatprep.subr.bf16.mxu0 0
  %3430 = vmatpush1.bf16.msra.mxu0 0
  %3431 = vmatprep.subr.bf16.mxu0 0
  %3432 = vmatpush1.bf16.msra.mxu0 0
  %3433 = vmatprep.subr.bf16.mxu0 0
  %3434 = vmatpush1.bf16.msra.mxu0 0
  %3435 = vmatprep.subr.bf16.mxu0 0
  %3436 = vmatpush1.bf16.msra.mxu0 0
  %3437 = vmatprep.subr.bf16.mxu0 0
  %3438 = vmatpush1.bf16.msra.mxu0 0
  %3439 = vmatprep.subr.bf16.mxu0 0
  %3440 = vmatpush1.bf16.msra.mxu0 0
  %3441 = vmatprep.subr.bf16.mxu0 0
  %3442 = vmatpush1.bf16.msra.mxu0 0
  %3443 = vmatprep.subr.bf16.mxu0 0
  %3444 = vmatpush1.bf16.msra.mxu0 0
  %3445 = vmatprep.mubr.bf16.mxu0 0
  %3446 = vmatmul.mubr.bf16.gmra.mrb[0].mxu0 %v3408
  %v3447 = vpop.f32.mrb[0].mxu0
  %v3448 = vadd.f32 0.0, %v3447
  %v3449 = vpop.f32.mrb[0].mxu0
  %v3450 = vpop.f32.mrb[0].mxu0
  %v3451 = vadd.f32 0.0, %v3450
  %v3452 = vpop.f32.mrb[0].mxu0
  %3453 = vmatprep.mubr.bf16.mxu0 0
  %3454 = vmatmul.mubr.bf16.gmra.mrb[0].mxu0 %v3411
  %v3455 = vpop.f32.mrb[0].mxu0
  %v3456 = vadd.f32 0.0, %v3455
  %v3457 = vpop.f32.mrb[0].mxu0
  %v3458 = vpop.f32.mrb[0].mxu0
  %v3459 = vpop.f32.mrb[0].mxu0
  %3460 = vdwg.mxu0
  %v3461 = vlaneseq
  %v3462 = vshrl.u32 %v3461, 7
  %v3463 = vsub.s32 2, %v3462
  %v3464 = vrot.slane %v2294, %v3463
  %v3465 = vadd.f32 %v3464, %v3448
  %v3466 = vadd.f32 %v3464, %v3451
  %v3467 = vadd.f32 %v3464, %v3456
  %v3472 = vcombine.high %v3334, %v3334
  %v3473 = vcombine.high %v3381, %v3381
  %v3474 = vcombine.low %v3334, %v3472
  %v3475 = vcombine.low %v3337, %v3381
  %v3476 = vcombine.low %v3473, %v3384
  %v3480 = vpack.c.bf16 %v3475, %v3474
  %v3481 = vpack.c.bf16 %v3476, %v3476
  %v3484 = vunpack.c.l.b16 %v2326
  %v3485 = vunpack.c.l.b16 %v2327
  %v3486 = vpack.c.b16 %v3485, %v3484
  %v3489 = vsel %vm1319, %v3480, 0
  %v3492 = vsel %vm1319, %v3481, 0
  %3494 = vmatprep.subr.bf16.mxu0 0
  %3495 = vmatpush1.bf16.msra.mxu0 %v3486
  %3496 = vmatprep.subr.bf16.mxu0 0
  %3497 = vmatpush1.bf16.msra.mxu0 0
  %3498 = vmatprep.subr.bf16.mxu0 0
  %3499 = vmatpush1.bf16.msra.mxu0 0
  %3500 = vmatprep.subr.bf16.mxu0 0
  %3501 = vmatpush1.bf16.msra.mxu0 0
  %3502 = vmatprep.subr.bf16.mxu0 0
  %3503 = vmatpush1.bf16.msra.mxu0 0
  %3504 = vmatprep.subr.bf16.mxu0 0
  %3505 = vmatpush1.bf16.msra.mxu0 0
  %3506 = vmatprep.subr.bf16.mxu0 0
  %3507 = vmatpush1.bf16.msra.mxu0 0
  %3508 = vmatprep.subr.bf16.mxu0 0
  %3509 = vmatpush1.bf16.msra.mxu0 0
  %3510 = vmatprep.subr.bf16.mxu0 0
  %3511 = vmatpush1.bf16.msra.mxu0 0
  %3512 = vmatprep.subr.bf16.mxu0 0
  %3513 = vmatpush1.bf16.msra.mxu0 0
  %3514 = vmatprep.subr.bf16.mxu0 0
  %3515 = vmatpush1.bf16.msra.mxu0 0
  %3516 = vmatprep.subr.bf16.mxu0 0
  %3517 = vmatpush1.bf16.msra.mxu0 0
  %3518 = vmatprep.subr.bf16.mxu0 0
  %3519 = vmatpush1.bf16.msra.mxu0 0
  %3520 = vmatprep.subr.bf16.mxu0 0
  %3521 = vmatpush1.bf16.msra.mxu0 0
  %3522 = vmatprep.subr.bf16.mxu0 0
  %3523 = vmatpush1.bf16.msra.mxu0 0
  %3524 = vmatprep.subr.bf16.mxu0 0
  %3525 = vmatpush1.bf16.msra.mxu0 0
  %3526 = vmatprep.mubr.bf16.mxu0 0
  %3527 = vmatmul.mubr.bf16.gmra.mrb[0].mxu0 %v3489
  %v3528 = vpop.f32.mrb[0].mxu0
  %v3529 = vadd.f32 0.0, %v3528
  %v3530 = vpop.f32.mrb[0].mxu0
  %v3531 = vpop.f32.mrb[0].mxu0
  %v3532 = vadd.f32 0.0, %v3531
  %v3533 = vpop.f32.mrb[0].mxu0
  %3534 = vmatprep.mubr.bf16.mxu0 0
  %3535 = vmatmul.mubr.bf16.gmra.mrb[0].mxu0 %v3492
  %v3536 = vpop.f32.mrb[0].mxu0
  %v3537 = vadd.f32 0.0, %v3536
  %v3538 = vpop.f32.mrb[0].mxu0
  %v3539 = vpop.f32.mrb[0].mxu0
  %v3540 = vpop.f32.mrb[0].mxu0
  %3541 = vdwg.mxu0
  %v3542 = vadd.f32 %v3465, %v3529
  %v3543 = vadd.f32 %v3466, %v3532
  %v3544 = vadd.f32 %v3467, %v3537
  %v3548 = vcombine.high %v3542, %v3542
  %v3549 = vcombine.high %v3543, %v3543
  %v3550 = vcombine.high %v3544, %v3544
  %v3552 = vcombine.low %v3542, %v3548
  %v3553 = vcombine.low %v3549, %v3544
  %v3556 = vadd.f32 %v2288, %v3552
  %v3557 = vadd.f32 %v2289, %v3543
  %v3558 = vadd.f32 %v2290, %v3553
  %v3559 = vadd.f32 %v2291, %v3550
  %v3560 = vsel %vm80, %v3556, 0.0
  %3561 = vadd.xlane.f32.xlu0 %v3560
  %v3562 = vpop.xlane.xlu0 %3561
  %v3563 = vsel %vm782, %v3557, 0.0
  %3564 = vadd.xlane.f32.xlu0 %v3563
  %v3565 = vpop.xlane.xlu0 %3564
  %v3566 = vsel %vm80, %v3558, 0.0
  %3567 = vadd.xlane.f32.xlu0 %v3566
  %v3568 = vpop.xlane.xlu0 %3567
  %v3569 = vsel %vm782, %v3559, 0.0
  %3570 = vadd.xlane.f32.xlu0 %v3569
  %v3571 = vpop.xlane.xlu0 %3570
  %v3572 = vmul.f32 %v3562, %v792
  %v3573 = vmul.f32 %v3565, %v792
  %v3574 = vmul.f32 %v3568, %v792
  %v3575 = vmul.f32 %v3571, %v792
  %v3576 = vsub.f32 %v3556, %v3572
  %v3577 = vsub.f32 %v3557, %v3573
  %v3578 = vsub.f32 %v3558, %v3574
  %v3579 = vsub.f32 %v3559, %v3575
  %v3580 = vmul.f32 %v3576, %v3576
  %v3581 = vmul.f32 %v3577, %v3577
  %v3582 = vmul.f32 %v3578, %v3578
  %v3583 = vmul.f32 %v3579, %v3579
  %v3584 = vsel %vm80, %v3580, 0.0
  %3585 = vadd.xlane.f32.xlu0 %v3584
  %v3586 = vpop.xlane.xlu0 %3585
  %v3587 = vsel %vm782, %v3581, 0.0
  %3588 = vadd.xlane.f32.xlu0 %v3587
  %v3589 = vpop.xlane.xlu0 %3588
  %v3590 = vsel %vm80, %v3582, 0.0
  %3591 = vadd.xlane.f32.xlu0 %v3590
  %v3592 = vpop.xlane.xlu0 %3591
  %v3593 = vsel %vm782, %v3583, 0.0
  %3594 = vadd.xlane.f32.xlu0 %v3593
  %v3595 = vpop.xlane.xlu0 %3594
  %v3596 = vmul.f32 %v3586, %v792
  %v3597 = vmul.f32 %v3589, %v792
  %v3598 = vmul.f32 %v3592, %v792
  %v3599 = vmul.f32 %v3595, %v792
  %v3600 = vadd.f32 %v3596, 1e-05
  %v3601 = vadd.f32 %v3597, 1e-05
  %v3602 = vadd.f32 %v3598, 1e-05
  %v3603 = vadd.f32 %v3599, 1e-05
  %v3604 = vrsqrt.pop %v3600
  %v3605 = vrsqrt.pop %v3601
  %v3606 = vrsqrt.pop %v3602
  %v3607 = vrsqrt.pop %v3603
  %v3608 = vmul.f32 %v3576, %v3604
  %v3609 = vmul.f32 %v3577, %v3605
  %v3610 = vmul.f32 %v3578, %v3606
  %v3611 = vmul.f32 %v3579, %v3607
  %v3612 = vlaneseq
  %v3613 = vshrl.u32 %v3612, 7
  %v3614 = vsub.s32 3, %v3613
  %v3615 = vrot.slane %v2294, %v3614
  %v3616 = vmul.f32 %v3608, %v3615
  %v3617 = vmul.f32 %v3609, %v3615
  %v3618 = vmul.f32 %v3610, %v3615
  %v3619 = vmul.f32 %v3611, %v3615
  %v3620 = vlaneseq
  %v3621 = vshrl.u32 %v3620, 7
  %v3622 = vsub.s32 4, %v3621
  %v3623 = vrot.slane %v2294, %v3622
  %v3624 = vadd.f32 %v3616, %v3623
  %v3625 = vadd.f32 %v3617, %v3623
  %v3626 = vadd.f32 %v3618, %v3623
  %v3627 = vadd.f32 %v3619, %v3623
  %v3632 = vcombine.high %v3624, %v3624
  %v3633 = vcombine.high %v3626, %v3626
  %v3634 = vcombine.low %v3624, %v3632
  %v3635 = vcombine.low %v3625, %v3626
  %v3636 = vcombine.low %v3633, %v3627
  %v3640 = vpack.c.bf16 %v3635, %v3634
  %v3641 = vpack.c.bf16 %v3636, %v3636
  %v3642 = vlaneseq
  %v3643 = vshrl.u32 %v3642, 7
  %v3644 = vsub.s32 0, %v3643
  %v3645 = vrot.slane %v2335, %v3644
  %v3650 = vunpack.c.l.b16 %v2329
  %v3651 = vunpack.c.l.b16 %v2330
  %v3652 = vunpack.c.l.b16 %v2331
  %v3653 = vunpack.c.l.b16 %v2332
  %v3654 = vpack.c.b16 %v3651, %v3650
  %v3655 = vpack.c.b16 %v3653, %v3652
  %v3659 = vsel %vm80, %v3640, 0
  %v3662 = vsel %vm80, %v3641, 0
  %3664 = vmatprep.subr.bf16.mxu0 0
  %3665 = vmatpush1.bf16.msra.mxu0 %v3654
  %3666 = vmatprep.subr.bf16.mxu0 0
  %3667 = vmatpush1.bf16.msra.mxu0 %v3655
  %3668 = vmatprep.subr.bf16.mxu0 0
  %3669 = vmatpush1.bf16.msra.mxu0 0
  %3670 = vmatprep.subr.bf16.mxu0 0
  %3671 = vmatpush1.bf16.msra.mxu0 0
  %3672 = vmatprep.subr.bf16.mxu0 0
  %3673 = vmatpush1.bf16.msra.mxu0 0
  %3674 = vmatprep.subr.bf16.mxu0 0
  %3675 = vmatpush1.bf16.msra.mxu0 0
  %3676 = vmatprep.subr.bf16.mxu0 0
  %3677 = vmatpush1.bf16.msra.mxu0 0
  %3678 = vmatprep.subr.bf16.mxu0 0
  %3679 = vmatpush1.bf16.msra.mxu0 0
  %3680 = vmatprep.subr.bf16.mxu0 0
  %3681 = vmatpush1.bf16.msra.mxu0 0
  %3682 = vmatprep.subr.bf16.mxu0 0
  %3683 = vmatpush1.bf16.msra.mxu0 0
  %3684 = vmatprep.subr.bf16.mxu0 0
  %3685 = vmatpush1.bf16.msra.mxu0 0
  %3686 = vmatprep.subr.bf16.mxu0 0
  %3687 = vmatpush1.bf16.msra.mxu0 0
  %3688 = vmatprep.subr.bf16.mxu0 0
  %3689 = vmatpush1.bf16.msra.mxu0 0
  %3690 = vmatprep.subr.bf16.mxu0 0
  %3691 = vmatpush1.bf16.msra.mxu0 0
  %3692 = vmatprep.subr.bf16.mxu0 0
  %3693 = vmatpush1.bf16.msra.mxu0 0
  %3694 = vmatprep.subr.bf16.mxu0 0
  %3695 = vmatpush1.bf16.msra.mxu0 0
  %3696 = vmatprep.mubr.bf16.mxu0 0
  %3697 = vmatmul.mubr.bf16.gmra.mrb[0].mxu0 %v3659
  %v3698 = vpop.f32.mrb[0].mxu0
  %v3699 = vadd.f32 %v3645, %v3698
  %v3700 = vpop.f32.mrb[0].mxu0
  %v3701 = vpop.f32.mrb[0].mxu0
  %v3702 = vadd.f32 %v3645, %v3701
  %v3703 = vpop.f32.mrb[0].mxu0
  %3704 = vmatprep.mubr.bf16.mxu0 0
  %3705 = vmatmul.mubr.bf16.gmra.mrb[0].mxu0 %v3662
  %v3706 = vpop.f32.mrb[0].mxu0
  %v3707 = vadd.f32 %v3645, %v3706
  %v3708 = vpop.f32.mrb[0].mxu0
  %v3709 = vpop.f32.mrb[0].mxu0
  %v3710 = vpop.f32.mrb[0].mxu0
  %3711 = vdwg.mxu0
  %v3712 = vmul.f32 %v3699, 0.5
  %v3713 = vmul.f32 %v3702, 0.5
  %v3714 = vmul.f32 %v3707, 0.5
  %v3715 = vmul.f32 %v3699, %v3699
  %v3716 = vmul.f32 %v3702, %v3702
  %v3717 = vmul.f32 %v3707, %v3707
  %v3718 = vmul.f32 %v3699, %v3715
  %v3719 = vmul.f32 %v3702, %v3716
  %v3720 = vmul.f32 %v3707, %v3717
  %v3721 = vmul.f32 %v3718, 0.044715
  %v3722 = vmul.f32 %v3719, 0.044715
  %v3723 = vmul.f32 %v3720, 0.044715
  %v3724 = vadd.f32 %v3699, %v3721
  %v3725 = vadd.f32 %v3702, %v3722
  %v3726 = vadd.f32 %v3707, %v3723
  %v3727 = vmul.f32 %v3724, 0.7978845
  %v3728 = vmul.f32 %v3725, 0.7978845
  %v3729 = vmul.f32 %v3726, 0.7978845
  %v3730 = vtanh.pop %v3727
  %v3731 = vtanh.pop %v3728
  %v3732 = vtanh.pop %v3729
  %v3733 = vadd.f32 %v3730, 1.0
  %v3734 = vadd.f32 %v3731, 1.0
  %v3735 = vadd.f32 %v3732, 1.0
  %v3736 = vmul.f32 %v3712, %v3733
  %v3737 = vmul.f32 %v3713, %v3734
  %v3738 = vmul.f32 %v3714, %v3735
  %v3739 = vpack.c.bf16 %v3737, %v3736
  %v3740 = vpack.c.bf16 %v3738, %v3738
  %v3741 = vlaneseq
  %v3742 = vshrl.u32 %v3741, 7
  %v3743 = vsub.s32 5, %v3742
  %v3744 = vrot.slane %v2294, %v3743
  %v3761 = vunpack.c.l.b16 %v2337
  %v3762 = vunpack.c.l.b16 %v2338
  %v3763 = vunpack.c.l.b16 %v2339
  %v3764 = vunpack.c.l.b16 %v2340
  %v3765 = vunpack.c.l.b16 %v2341
  %v3766 = vunpack.c.l.b16 %v2342
  %v3767 = vunpack.c.l.b16 %v2343
  %v3768 = vunpack.c.l.b16 %v2344
  %v3769 = vunpack.c.l.b16 %v2345
  %v3770 = vunpack.c.l.b16 %v2346
  %v3771 = vunpack.c.l.b16 %v2347
  %v3772 = vunpack.c.l.b16 %v2348
  %v3773 = vunpack.c.l.b16 %v2349
  %v3774 = vunpack.c.l.b16 %v2350
  %v3775 = vunpack.c.l.b16 %v2351
  %v3776 = vunpack.c.l.b16 %v2352
  %v3777 = vpack.c.b16 %v3762, %v3761
  %v3778 = vpack.c.b16 %v3764, %v3763
  %v3779 = vpack.c.b16 %v3766, %v3765
  %v3780 = vpack.c.b16 %v3768, %v3767
  %v3781 = vpack.c.b16 %v3770, %v3769
  %v3782 = vpack.c.b16 %v3772, %v3771
  %v3783 = vpack.c.b16 %v3774, %v3773
  %v3784 = vpack.c.b16 %v3776, %v3775
  %3793 = vmatprep.subr.bf16.mxu0 0
  %3794 = vmatpush1.bf16.msra.mxu0 %v3777
  %3795 = vmatprep.subr.bf16.mxu0 0
  %3796 = vmatpush1.bf16.msra.mxu0 %v3778
  %3797 = vmatprep.subr.bf16.mxu0 0
  %3798 = vmatpush1.bf16.msra.mxu0 %v3779
  %3799 = vmatprep.subr.bf16.mxu0 0
  %3800 = vmatpush1.bf16.msra.mxu0 %v3780
  %3801 = vmatprep.subr.bf16.mxu0 0
  %3802 = vmatpush1.bf16.msra.mxu0 %v3781
  %3803 = vmatprep.subr.bf16.mxu0 0
  %3804 = vmatpush1.bf16.msra.mxu0 %v3782
  %3805 = vmatprep.subr.bf16.mxu0 0
  %3806 = vmatpush1.bf16.msra.mxu0 %v3783
  %3807 = vmatprep.subr.bf16.mxu0 0
  %3808 = vmatpush1.bf16.msra.mxu0 %v3784
  %3809 = vmatprep.subr.bf16.mxu0 0
  %3810 = vmatpush1.bf16.msra.mxu0 0
  %3811 = vmatprep.subr.bf16.mxu0 0
  %3812 = vmatpush1.bf16.msra.mxu0 0
  %3813 = vmatprep.subr.bf16.mxu0 0
  %3814 = vmatpush1.bf16.msra.mxu0 0
  %3815 = vmatprep.subr.bf16.mxu0 0
  %3816 = vmatpush1.bf16.msra.mxu0 0
  %3817 = vmatprep.subr.bf16.mxu0 0
  %3818 = vmatpush1.bf16.msra.mxu0 0
  %3819 = vmatprep.subr.bf16.mxu0 0
  %3820 = vmatpush1.bf16.msra.mxu0 0
  %3821 = vmatprep.subr.bf16.mxu0 0
  %3822 = vmatpush1.bf16.msra.mxu0 0
  %3823 = vmatprep.subr.bf16.mxu0 0
  %3824 = vmatpush1.bf16.msra.mxu0 0
  %3825 = vmatprep.mubr.bf16.mxu0 0
  %3826 = vmatmul.mubr.bf16.gmra.mrb[0].mxu0 %v3739
  %v3827 = vpop.f32.mrb[0].mxu0
  %v3828 = vadd.f32 %v3744, %v3827
  %v3829 = vpop.f32.mrb[0].mxu0
  %v3830 = vpop.f32.mrb[0].mxu0
  %v3831 = vadd.f32 %v3744, %v3830
  %v3832 = vpop.f32.mrb[0].mxu0
  %3833 = vmatprep.mubr.bf16.mxu0 0
  %3834 = vmatmul.mubr.bf16.gmra.mrb[0].mxu0 %v3740
  %v3835 = vpop.f32.mrb[0].mxu0
  %v3836 = vadd.f32 %v3744, %v3835
  %v3837 = vpop.f32.mrb[0].mxu0
  %v3838 = vpop.f32.mrb[0].mxu0
  %v3839 = vpop.f32.mrb[0].mxu0
  %3840 = vdwg.mxu0
  %v3844 = vcombine.high %v3828, %v3828
  %v3845 = vcombine.high %v3831, %v3831
  %v3846 = vcombine.high %v3836, %v3836
  %v3848 = vcombine.low %v3828, %v3844
  %v3849 = vcombine.low %v3845, %v3836
  %v3852 = vadd.f32 %v3556, %v3848
  %v3853 = vadd.f32 %v3557, %v3831
  %v3854 = vadd.f32 %v3558, %v3849
  %v3855 = vadd.f32 %v3559, %v3846
  %v3856 = vld [vmem:[%s16] sm:$0x1]
  %v3857 = vunpack.c.l.bf16 %v3856
  %v3858 = vsel %vm80, %v3852, 0.0
  %3859 = vadd.xlane.f32.xlu0 %v3858
  %v3860 = vpop.xlane.xlu0 %3859
  %v3861 = vsel %vm782, %v3853, 0.0
  %3862 = vadd.xlane.f32.xlu0 %v3861
  %v3863 = vpop.xlane.xlu0 %3862
  %v3864 = vsel %vm80, %v3854, 0.0
  %3865 = vadd.xlane.f32.xlu0 %v3864
  %v3866 = vpop.xlane.xlu0 %3865
  %v3867 = vsel %vm782, %v3855, 0.0
  %3868 = vadd.xlane.f32.xlu0 %v3867
  %v3869 = vpop.xlane.xlu0 %3868
  %v3870 = vmul.f32 %v3860, %v792
  %v3871 = vmul.f32 %v3863, %v792
  %v3872 = vmul.f32 %v3866, %v792
  %v3873 = vmul.f32 %v3869, %v792
  %v3874 = vsub.f32 %v3852, %v3870
  %v3875 = vsub.f32 %v3853, %v3871
  %v3876 = vsub.f32 %v3854, %v3872
  %v3877 = vsub.f32 %v3855, %v3873
  %v3878 = vmul.f32 %v3874, %v3874
  %v3879 = vmul.f32 %v3875, %v3875
  %v3880 = vmul.f32 %v3876, %v3876
  %v3881 = vmul.f32 %v3877, %v3877
  %v3882 = vsel %vm80, %v3878, 0.0
  %3883 = vadd.xlane.f32.xlu0 %v3882
  %v3884 = vpop.xlane.xlu0 %3883
  %v3885 = vsel %vm782, %v3879, 0.0
  %3886 = vadd.xlane.f32.xlu0 %v3885
  %v3887 = vpop.xlane.xlu0 %3886
  %v3888 = vsel %vm80, %v3880, 0.0
  %3889 = vadd.xlane.f32.xlu0 %v3888
  %v3890 = vpop.xlane.xlu0 %3889
  %v3891 = vsel %vm782, %v3881, 0.0
  %3892 = vadd.xlane.f32.xlu0 %v3891
  %v3893 = vpop.xlane.xlu0 %3892
  %v3894 = vmul.f32 %v3884, %v792
  %v3895 = vmul.f32 %v3887, %v792
  %v3896 = vmul.f32 %v3890, %v792
  %v3897 = vmul.f32 %v3893, %v792
  %v3898 = vadd.f32 %v3894, 1e-05
  %v3899 = vadd.f32 %v3895, 1e-05
  %v3900 = vadd.f32 %v3896, 1e-05
  %v3901 = vadd.f32 %v3897, 1e-05
  %v3902 = vrsqrt.pop %v3898
  %v3903 = vrsqrt.pop %v3899
  %v3904 = vrsqrt.pop %v3900
  %v3905 = vrsqrt.pop %v3901
  %v3906 = vmul.f32 %v3874, %v3902
  %v3907 = vmul.f32 %v3875, %v3903
  %v3908 = vmul.f32 %v3876, %v3904
  %v3909 = vmul.f32 %v3877, %v3905
  %v3910 = vlaneseq
  %v3911 = vshrl.u32 %v3910, 7
  %v3912 = vsub.s32 0, %v3911
  %v3913 = vrot.slane %v3857, %v3912
  %v3914 = vmul.f32 %v3906, %v3913
  %v3915 = vmul.f32 %v3907, %v3913
  %v3916 = vmul.f32 %v3908, %v3913
  %v3917 = vmul.f32 %v3909, %v3913
  %v3918 = vlaneseq
  %v3919 = vshrl.u32 %v3918, 7
  %v3920 = vsub.s32 1, %v3919
  %v3921 = vrot.slane %v3857, %v3920
  %v3922 = vadd.f32 %v3914, %v3921
  %v3923 = vadd.f32 %v3915, %v3921
  %v3924 = vadd.f32 %v3916, %v3921
  %v3925 = vadd.f32 %v3917, %v3921
  %v3930 = vcombine.high %v3922, %v3922
  %v3931 = vcombine.high %v3924, %v3924
  %v3932 = vcombine.low %v3922, %v3930
  %v3933 = vcombine.low %v3923, %v3924
  %v3934 = vcombine.low %v3931, %v3925
  %v3938 = vpack.c.bf16 %v3933, %v3932
  %v3939 = vpack.c.bf16 %v3934, %v3934
  %v3940 = vld [vmem:[%s7] sm:$0xf]
  %v3941 = vld [vmem:[%s7 + $0x4] sm:$0xf]
  %v3942 = vld [vmem:[%s7 + $0x8] sm:$0xf]
  %v3943 = vld [vmem:[%s7 + $0xc] sm:$0xf]
  %v3948 = vunpack.c.l.b16 %v3940
  %v3949 = vunpack.c.l.b16 %v3941
  %v3950 = vunpack.c.l.b16 %v3942
  %v3951 = vunpack.c.l.b16 %v3943
  %v3952 = vpack.c.b16 %v3949, %v3948
  %v3953 = vpack.c.b16 %v3951, %v3950
  %v3957 = vsel %vm80, %v3938, 0
  %v3960 = vsel %vm80, %v3939, 0
  %3962 = vmatprep.subr.bf16.mxu0 0
  %3963 = vmatpush1.bf16.msra.mxu0 %v3952
  %3964 = vmatprep.subr.bf16.mxu0 0
  %3965 = vmatpush1.bf16.msra.mxu0 %v3953
  %3966 = vmatprep.subr.bf16.mxu0 0
  %3967 = vmatpush1.bf16.msra.mxu0 0
  %3968 = vmatprep.subr.bf16.mxu0 0
  %3969 = vmatpush1.bf16.msra.mxu0 0
  %3970 = vmatprep.subr.bf16.mxu0 0
  %3971 = vmatpush1.bf16.msra.mxu0 0
  %3972 = vmatprep.subr.bf16.mxu0 0
  %3973 = vmatpush1.bf16.msra.mxu0 0
  %3974 = vmatprep.subr.bf16.mxu0 0
  %3975 = vmatpush1.bf16.msra.mxu0 0
  %3976 = vmatprep.subr.bf16.mxu0 0
  %3977 = vmatpush1.bf16.msra.mxu0 0
  %3978 = vmatprep.subr.bf16.mxu0 0
  %3979 = vmatpush1.bf16.msra.mxu0 0
  %3980 = vmatprep.subr.bf16.mxu0 0
  %3981 = vmatpush1.bf16.msra.mxu0 0
  %3982 = vmatprep.subr.bf16.mxu0 0
  %3983 = vmatpush1.bf16.msra.mxu0 0
  %3984 = vmatprep.subr.bf16.mxu0 0
  %3985 = vmatpush1.bf16.msra.mxu0 0
  %3986 = vmatprep.subr.bf16.mxu0 0
  %3987 = vmatpush1.bf16.msra.mxu0 0
  %3988 = vmatprep.subr.bf16.mxu0 0
  %3989 = vmatpush1.bf16.msra.mxu0 0
  %3990 = vmatprep.subr.bf16.mxu0 0
  %3991 = vmatpush1.bf16.msra.mxu0 0
  %3992 = vmatprep.subr.bf16.mxu0 0
  %3993 = vmatpush1.bf16.msra.mxu0 0
  %3994 = vmatprep.mubr.bf16.mxu0 0
  %3995 = vmatmul.mubr.bf16.gmra.mrb[0].mxu0 %v3957
  %v3996 = vpop.f32.mrb[0].mxu0
  %v3997 = vadd.f32 0.0, %v3996
  %v3998 = vpop.f32.mrb[0].mxu0
  %v3999 = vpop.f32.mrb[0].mxu0
  %v4000 = vadd.f32 0.0, %v3999
  %v4001 = vpop.f32.mrb[0].mxu0
  %4002 = vmatprep.mubr.bf16.mxu0 0
  %4003 = vmatmul.mubr.bf16.gmra.mrb[0].mxu0 %v3960
  %v4004 = vpop.f32.mrb[0].mxu0
  %v4005 = vadd.f32 0.0, %v4004
  %v4006 = vpop.f32.mrb[0].mxu0
  %v4007 = vpop.f32.mrb[0].mxu0
  %v4008 = vpop.f32.mrb[0].mxu0
  %4009 = vdwg.mxu0
  %v4013 = vcombine.high %v3997, %v3997
  %v4014 = vcombine.high %v4000, %v4000
  %v4015 = vcombine.high %v4005, %v4005
  %v4017 = vcombine.low %v3997, %v4013
  %v4018 = vcombine.low %v4014, %v4005
  %4021 = vst [vmem:[%s17] sm:$0xff] %v4017
  %4022 = vst [vmem:[%s17 + $0x8] sm:$0xf] %v4000
  %4023 = vst [vmem:[%s17 + $0x10] sm:$0xff] %v4018
  %4024 = vst [vmem:[%s17 + $0x18] sm:$0xf] %v4015
  // Predicated region
  $region70: #{clip_caption_forward.1} parent=0 // pred_check
    _
  $region71: #{clip_caption_forward.1} parent=0 // pred_check_branch
    %4026 = sbr.rel (0) target = $region73
  $region72: #{clip_caption_forward.1} parent=0 // pred_region
    _
  $region73: #{clip_caption_forward.1} parent=0 // pred_fallthru
    _
  // Predicated region
  $region74: #{clip_caption_forward.1} parent=0 // pred_check
    _
  $region75: #{clip_caption_forward.1} parent=0 // pred_check_branch
    %4028 = sbr.rel (0) target = $region77
  $region76: #{clip_caption_forward.1} parent=0 // pred_region
    _
  $region77: #{clip_caption_forward.1} parent=0 // pred_fallthru
    _

</llo_original>
